<compile_context>
chip_gen: v6e
topology: v6e:2x2x1
jax: 0.10.0
libtpu: 0.0.40
codegen_flags: <defaults>
</compile_context>

<pallas_src>
import functools

import jax
import jax.numpy as jnp
from jax import lax
from jax.experimental import pallas as pl
from jax.experimental.pallas import tpu as pltpu

NUM_FLOW = 4      # args.num_flow
LATENT   = 32     # latent_size (d)
BATCH    = 256    # demo batch (grid over batch tiles)
TILE_B   = 128    # rows per grid step (multiple of 8 sublanes)


def nf_kernel(x_ref, u_ref, w_ref, b_ref, o_ref, *, num_flows):
    x = x_ref[...].astype(jnp.float32)                       # (TB, D)
    u = u_ref[...].astype(jnp.float32)                       # (K, D)
    w = w_ref[...].astype(jnp.float32)                       # (K, D)

    dn = (((1,), (1,)), ((), ()))                             # contract on D
    # A = x @ W^T  and  G = U @ W^T, each a single MXU matmul.
    a = lax.dot_general(x, w, dn, precision=lax.Precision.HIGHEST,
                        preferred_element_type=jnp.float32)   # (TB, K)
    g = lax.dot_general(u, w, dn, precision=lax.Precision.HIGHEST,
                        preferred_element_type=jnp.float32)   # (K, K)

    # Serial recursion over flows on (TB, 1) columns only (K tiny EUP tanh's).
    t_cols = []
    for k in range(num_flows):                                # static unroll, K small
        arg = a[:, k:k + 1] + b_ref[k]                        # b: scalar read from SMEM
        for j in range(k):
            arg = arg + g[j:j + 1, k:k + 1] * t_cols[j]       # (1,1) * (TB,1)
        t_cols.append(jnp.tanh(arg))
    t = jnp.concatenate(t_cols, axis=-1)                      # (TB, K)

    # z = x + T @ U : one MXU matmul + one full-width add.
    z = x + jnp.dot(t, u, precision=lax.Precision.HIGHEST,
                    preferred_element_type=jnp.float32)       # (TB, D)
    o_ref[...] = z.astype(o_ref.dtype)


def nf_forward(x, u, w, b, *, tile_b=TILE_B):
    B, D = x.shape
    K = u.shape[0]
    b = b.reshape(K).astype(jnp.float32)      # (K,) scalars for SMEM

    # Pad batch to a multiple of the tile so every grid step is a full block.
    pad = (-B) % tile_b
    if pad:
        x = jnp.pad(x, ((0, pad), (0, 0)))
    Bp = B + pad

    kernel = functools.partial(nf_kernel, num_flows=K)
    out = pl.pallas_call(
        kernel,
        out_shape=jax.ShapeDtypeStruct((Bp, D), x.dtype),
        grid=(Bp // tile_b,),
        in_specs=[
            pl.BlockSpec((tile_b, D), lambda i: (i, 0)),      # x tile per grid step
            pl.BlockSpec((K, D), lambda i: (0, 0)),           # u resident
            pl.BlockSpec((K, D), lambda i: (0, 0)),           # w resident
            pl.BlockSpec(memory_space=pltpu.MemorySpace.SMEM),  # b -> SMEM scalars
        ],
        out_specs=pl.BlockSpec((tile_b, D), lambda i: (i, 0)),
        compiler_params=pltpu.CompilerParams(
            dimension_semantics=("parallel",)),               # batch axis parallel (v7x 2 TCs)
    )(x, u, w, b)
    return out[:B]
    # TODO(synk): for very large batches, flatten (B, D=32) -> (B/4, 128) on the
    # store path for lane-dense (unmasked) vst; irrelevant at these sizes.


def nf_reference(x, u, w, b):
    # Pure-JAX reference matching the PyTorch module exactly (sequential flows).
    z = x.astype(jnp.float32)
    b = b.reshape(-1)
    for k in range(u.shape[0]):
        arg = jnp.sum(z * w[k][None, :], axis=-1, keepdims=True) + b[k]  # (B, 1)
        z = z + u[k][None, :] * jnp.tanh(arg)                            # (B, D)
    return z.astype(x.dtype)


if __name__ == "__main__":
    key = jax.random.PRNGKey(0)
    kx, ku, kw = jax.random.split(key, 3)

    # Deterministic "checkpoint": u, w ~ N(0, init_sigma=0.01), b = 0 (matches __init__).
    init_sigma = 0.01
    x = jax.random.normal(kx, (BATCH, LATENT), dtype=jnp.float32)
    u = init_sigma * jax.random.normal(ku, (NUM_FLOW, LATENT), dtype=jnp.float32)
    w = init_sigma * jax.random.normal(kw, (NUM_FLOW, LATENT), dtype=jnp.float32)
    b = jnp.zeros((NUM_FLOW,), dtype=jnp.float32)

    y = jax.block_until_ready(nf_forward(x, u, w, b))
    y_ref = nf_reference(x, u, w, b)

    assert y.shape == (BATCH, LATENT)
    assert jnp.allclose(y, y_ref, atol=1e-5, rtol=1e-5), "mismatch vs reference"

    print("KERNEL_OK")
</pallas_src>

<mosaic_0001>
module attributes {stable_mosaic.version = 11 : i64} {
  func.func @nf_kernel(%arg0: i32, %arg1: memref<128x32xf32, #tpu.memory_space<vmem>>, %arg2: memref<4x32xf32, #tpu.memory_space<vmem>>, %arg3: memref<4x32xf32, #tpu.memory_space<vmem>>, %arg4: memref<4xf32, #tpu.memory_space<smem>>, %arg5: memref<128x32xf32, #tpu.memory_space<vmem>>) attributes {dimension_semantics = [#tpu.dimension_semantics<parallel>], iteration_bounds = array<i64: 2>, scalar_prefetch = 0 : i64, scratch_operands = 0 : i64, tpu.core_type = #tpu.core_type<tc>, window_params = [{transform_indices = @transform_0, window_bounds = array<i64: 128, 32>}, {pipeline_mode = #tpu.pipeline_mode<synchronous>, transform_indices = @transform_1, window_bounds = array<i64: 4, 32>}, {pipeline_mode = #tpu.pipeline_mode<synchronous>, transform_indices = @transform_2, window_bounds = array<i64: 4, 32>}, {transform_indices = @transform_3, window_bounds = array<i64: 4>}, {transform_indices = @transform_4, window_bounds = array<i64: 128, 32>}]} {
    %c0 = arith.constant 0 : index
    %c0_0 = arith.constant 0 : index
    %0 = vector.load %arg1[%c0, %c0_0] : memref<128x32xf32, #tpu.memory_space<vmem>>, vector<128x32xf32>
    %c0_1 = arith.constant 0 : index
    %c0_2 = arith.constant 0 : index
    %1 = vector.load %arg2[%c0_1, %c0_2] : memref<4x32xf32, #tpu.memory_space<vmem>>, vector<4x32xf32>
    %c0_3 = arith.constant 0 : index
    %c0_4 = arith.constant 0 : index
    %2 = vector.load %arg3[%c0_3, %c0_4] : memref<4x32xf32, #tpu.memory_space<vmem>>, vector<4x32xf32>
    %cst = arith.constant dense<0.000000e+00> : vector<128x4xf32>
    %3 = tpu.matmul %0, %2, %cst {dimension_numbers = #tpu.dot_dimension_numbers<[1], [1], [0], [0], [0, 0, 1, 0], [], []>, precision = #tpu.contract_precision<fp32>} : vector<128x32xf32>, vector<4x32xf32>, vector<128x4xf32> -> vector<128x4xf32>
    %cst_5 = arith.constant dense<0.000000e+00> : vector<4x4xf32>
    %4 = tpu.matmul %1, %2, %cst_5 {dimension_numbers = #tpu.dot_dimension_numbers<[1], [1], [0], [0], [0, 0, 1, 0], [], []>, precision = #tpu.contract_precision<fp32>} : vector<4x32xf32>, vector<4x32xf32>, vector<4x4xf32> -> vector<4x4xf32>
    %5 = vector.extract_strided_slice %3 {offsets = [0, 0], sizes = [128, 1], strides = [1, 1]} : vector<128x4xf32> to vector<128x1xf32>
    %c0_6 = arith.constant 0 : index
    %6 = memref.load %arg4[%c0_6] : memref<4xf32, #tpu.memory_space<smem>>
    %7 = vector.broadcast %6 : f32 to vector<128x1xf32>
    %8 = arith.addf %5, %7 : vector<128x1xf32>
    %9 = math.tanh %8 : vector<128x1xf32>
    %10 = vector.extract_strided_slice %3 {offsets = [0, 1], sizes = [128, 1], strides = [1, 1]} : vector<128x4xf32> to vector<128x1xf32>
    %c1 = arith.constant 1 : index
    %11 = memref.load %arg4[%c1] : memref<4xf32, #tpu.memory_space<smem>>
    %12 = vector.broadcast %11 : f32 to vector<128x1xf32>
    %13 = arith.addf %10, %12 : vector<128x1xf32>
    %14 = vector.extract_strided_slice %4 {offsets = [0, 1], sizes = [1, 1], strides = [1, 1]} : vector<4x4xf32> to vector<1x1xf32>
    %15 = vector.broadcast %14 : vector<1x1xf32> to vector<128x1xf32>
    %16 = arith.mulf %15, %9 : vector<128x1xf32>
    %17 = arith.addf %13, %16 : vector<128x1xf32>
    %18 = math.tanh %17 : vector<128x1xf32>
    %19 = vector.extract_strided_slice %3 {offsets = [0, 2], sizes = [128, 1], strides = [1, 1]} : vector<128x4xf32> to vector<128x1xf32>
    %c2 = arith.constant 2 : index
    %20 = memref.load %arg4[%c2] : memref<4xf32, #tpu.memory_space<smem>>
    %21 = vector.broadcast %20 : f32 to vector<128x1xf32>
    %22 = arith.addf %19, %21 : vector<128x1xf32>
    %23 = vector.extract_strided_slice %4 {offsets = [0, 2], sizes = [1, 1], strides = [1, 1]} : vector<4x4xf32> to vector<1x1xf32>
    %24 = vector.broadcast %23 : vector<1x1xf32> to vector<128x1xf32>
    %25 = arith.mulf %24, %9 : vector<128x1xf32>
    %26 = arith.addf %22, %25 : vector<128x1xf32>
    %27 = vector.extract_strided_slice %4 {offsets = [1, 2], sizes = [1, 1], strides = [1, 1]} : vector<4x4xf32> to vector<1x1xf32>
    %28 = vector.broadcast %27 : vector<1x1xf32> to vector<128x1xf32>
    %29 = arith.mulf %28, %18 : vector<128x1xf32>
    %30 = arith.addf %26, %29 : vector<128x1xf32>
    %31 = math.tanh %30 : vector<128x1xf32>
    %32 = vector.extract_strided_slice %3 {offsets = [0, 3], sizes = [128, 1], strides = [1, 1]} : vector<128x4xf32> to vector<128x1xf32>
    %c3 = arith.constant 3 : index
    %33 = memref.load %arg4[%c3] : memref<4xf32, #tpu.memory_space<smem>>
    %34 = vector.broadcast %33 : f32 to vector<128x1xf32>
    %35 = arith.addf %32, %34 : vector<128x1xf32>
    %36 = vector.extract_strided_slice %4 {offsets = [0, 3], sizes = [1, 1], strides = [1, 1]} : vector<4x4xf32> to vector<1x1xf32>
    %37 = vector.broadcast %36 : vector<1x1xf32> to vector<128x1xf32>
    %38 = arith.mulf %37, %9 : vector<128x1xf32>
    %39 = arith.addf %35, %38 : vector<128x1xf32>
    %40 = vector.extract_strided_slice %4 {offsets = [1, 3], sizes = [1, 1], strides = [1, 1]} : vector<4x4xf32> to vector<1x1xf32>
    %41 = vector.broadcast %40 : vector<1x1xf32> to vector<128x1xf32>
    %42 = arith.mulf %41, %18 : vector<128x1xf32>
    %43 = arith.addf %39, %42 : vector<128x1xf32>
    %44 = vector.extract_strided_slice %4 {offsets = [2, 3], sizes = [1, 1], strides = [1, 1]} : vector<4x4xf32> to vector<1x1xf32>
    %45 = vector.broadcast %44 : vector<1x1xf32> to vector<128x1xf32>
    %46 = arith.mulf %45, %31 : vector<128x1xf32>
    %47 = arith.addf %43, %46 : vector<128x1xf32>
    %48 = math.tanh %47 : vector<128x1xf32>
    %49 = tpu.concatenate %9, %18, %31, %48 in 1 : vector<128x1xf32>, vector<128x1xf32>, vector<128x1xf32>, vector<128x1xf32> -> vector<128x4xf32>
    %cst_7 = arith.constant dense<0.000000e+00> : vector<128x32xf32>
    %50 = tpu.matmul %49, %1, %cst_7 {dimension_numbers = #tpu.dot_dimension_numbers<[1], [0], [0], [1], [0, 0, 1, 1], [], []>, precision = #tpu.contract_precision<fp32>} : vector<128x4xf32>, vector<4x32xf32>, vector<128x32xf32> -> vector<128x32xf32>
    %51 = arith.addf %0, %50 : vector<128x32xf32>
    %c0_8 = arith.constant 0 : index
    %c0_9 = arith.constant 0 : index
    %52 = vector.load %arg5[%c0_8, %c0_9] : memref<128x32xf32, #tpu.memory_space<vmem>>, vector<128x32xf32>
    tpu.vector_store %arg5[%c0_8, %c0_9], %51 {strides = array<i32>} : memref<128x32xf32, #tpu.memory_space<vmem>>, vector<128x32xf32>,
    return
  }
  func.func @transform_0(%arg0: i32) -> (i32, i32) {
    %c0_i32 = arith.constant 0 : i32
    %c0_i32_0 = arith.constant 0 : i32
    return %arg0, %c0_i32 : i32, i32
  }
  func.func @transform_1(%arg0: i32) -> (i32, i32) {
    %c0_i32 = arith.constant 0 : i32
    %c0_i32_0 = arith.constant 0 : i32
    %c0_i32_1 = arith.constant 0 : i32
    return %c0_i32, %c0_i32_0 : i32, i32
  }
  func.func @transform_2(%arg0: i32) -> (i32, i32) {
    %c0_i32 = arith.constant 0 : i32
    %c0_i32_0 = arith.constant 0 : i32
    %c0_i32_1 = arith.constant 0 : i32
    return %c0_i32, %c0_i32_0 : i32, i32
  }
  func.func @transform_3(%arg0: i32) -> i32 {
    %c0_i32 = arith.constant 0 : i32
    %c0_i32_0 = arith.constant 0 : i32
    return %c0_i32 : i32
  }
  func.func @transform_4(%arg0: i32) -> (i32, i32) {
    %c0_i32 = arith.constant 0 : i32
    %c0_i32_0 = arith.constant 0 : i32
    return %arg0, %c0_i32 : i32, i32
  }
}

</mosaic_0001>

<llo_original>
// kernel: tpu_custom_call.1
$region0: #{tpu_custom_call.1}
  #allocation0 [shape = 'u32[]', space=smem, size = 0x4, offset = 0x4, fixed_abs, tag = 'smem constant byte address 0x4 - core index']
  #allocation1 [shape = 'u32[144,128]{1,0:T(1,128)}', space=vmem, size = 0x12000, scoped, tag = 'internal scratch']
  %s0 = inlined_call_operand.vmem [shape: f32[256,32], index: 0, kind: input, shape index: {}]
  %s1 = inlined_call_operand.vmem [shape: f32[4,32], index: 1, kind: input, shape index: {}]
  %s2 = inlined_call_operand.vmem [shape: f32[4,32], index: 2, kind: input, shape index: {}]
  %s3 = inlined_call_operand.vmem [shape: f32[4], index: 3, kind: input, shape index: {}]
  %s4 = inlined_call_operand.vmem [shape: f32[256,32], index: 4, kind: output, shape index: {}]
  %s5 = sld [smem:[#allocation0]]
  $region53: #{tpu_custom_call.1} parent=0
    _
  %s7 = ssub.s32 1, %s5
  %s8 = scalar_select 0, %s7, %s5
  $region1: #{tpu_custom_call.1} parent=0
    #allocation2 [shape = 'u8[512]{0}', space=smem, size = 0x200, scoped, tag = 'input window, operand 3, single buffered']
    #allocation3 [shape = 's32[2]{0}', space=sflag, size = 0x8, scoped, tag = 'scoped memory for tpu_custom_call.1']
    %9 = vsyncpa [#allocation3], 0
    loop: start=0, step=1, limit=4
    $region2: #{tpu_custom_call.1} parent=1 // loop_pre_header
      _
    $region3: #{tpu_custom_call.1} parent=1 // loop_header
      %s11 = sphi 0, %s15
      %p12 = scmp.ge.s32.totalorder %s11, 4
      %s21 = sphi 0, %s23
      %s24 = sphi 0, %s21
      %s25 = sphi 0, %s24
      %s41 = sphi 0, %s25
      %s45 = sphi 0, %s45
      %s47 = sphi 0, %s45
      %s48 = sphi 0, %s47
      %s62 = sphi 0, %s48
      %s66 = sphi 0, %s66
      %s68 = sphi 0, %s66
      %s69 = sphi 0, %s68
      %s83 = sphi 0, %s69
      %s87 = sphi 0, %s87
      %s89 = sphi 0, %s87
      %s90 = sphi 0, %s89
      %s104 = sphi 0, %s90
      %s110 = sphi 0, %s112
      %s113 = sphi 0, %s110
      %s114 = sphi 0, %s113
      %s130 = sphi 0, %s114
    $region4: #{tpu_custom_call.1} parent=1 // loop_header_branch
      %14 = sbr.rel (%p12) target = $region8
    $region5: #{tpu_custom_call.1} parent=1 // loop_body
      %s16 = ssub.s32 %s11, 1
      %s17 = ssub.s32 %s11, 2
      %s18 = sadd.s32 %s11, 1
      %s19 = ssub.s32 %s11, %s18
      %p20 = scmp.eq.s32.totalorder %s19, 0
      %s22 = sadd.s32 %s21, 1
      %s23 = scalar_select %p20, %s21, %s22
      %p26 = pneg %p20
      %p27 = scmp.eq.s32.totalorder %s11, 1
      %p28 = por %p26, %p27
      %p29 = scmp.ne.s32.totalorder %s21, %s24
      %p30 = scmp.eq.s32.totalorder %s11, 0
      %p31 = por %p29, %p30
      %p32 = scmp.ne.s32.totalorder %s21, %s24
      %p33 = scmp.eq.s32.totalorder %s16, 1
      %p34 = por %p32, %p33
      %p35 = scmp.ne.s32.totalorder %s24, %s25
      %p36 = scmp.eq.s32.totalorder %s16, 0
      %p37 = por %p35, %p36
      %p38 = scmp.ne.s32.totalorder %s24, %s25
      %p39 = scmp.eq.s32.totalorder %s17, 1
      %p40 = por %p38, %p39
      %p42 = scmp.ne.s32.totalorder %s25, %s41
      %p43 = scmp.eq.s32.totalorder %s17, 0
      %p44 = por %p42, %p43
      %s46 = sadd.s32 %s45, 1
      %p49 = scmp.eq.s32.totalorder %s11, 1
      %p50 = scmp.ne.s32.totalorder %s45, %s47
      %p51 = scmp.eq.s32.totalorder %s11, 0
      %p52 = por %p50, %p51
      %p53 = scmp.ne.s32.totalorder %s45, %s47
      %p54 = scmp.eq.s32.totalorder %s16, 1
      %p55 = por %p53, %p54
      %p56 = scmp.ne.s32.totalorder %s47, %s48
      %p57 = scmp.eq.s32.totalorder %s16, 0
      %p58 = por %p56, %p57
      %p59 = scmp.ne.s32.totalorder %s47, %s48
      %p60 = scmp.eq.s32.totalorder %s17, 1
      %p61 = por %p59, %p60
      %p63 = scmp.ne.s32.totalorder %s48, %s62
      %p64 = scmp.eq.s32.totalorder %s17, 0
      %p65 = por %p63, %p64
      %s67 = sadd.s32 %s66, 1
      %p70 = scmp.eq.s32.totalorder %s11, 1
      %p71 = scmp.ne.s32.totalorder %s66, %s68
      %p72 = scmp.eq.s32.totalorder %s11, 0
      %p73 = por %p71, %p72
      %p74 = scmp.ne.s32.totalorder %s66, %s68
      %p75 = scmp.eq.s32.totalorder %s16, 1
      %p76 = por %p74, %p75
      %p77 = scmp.ne.s32.totalorder %s68, %s69
      %p78 = scmp.eq.s32.totalorder %s16, 0
      %p79 = por %p77, %p78
      %p80 = scmp.ne.s32.totalorder %s68, %s69
      %p81 = scmp.eq.s32.totalorder %s17, 1
      %p82 = por %p80, %p81
      %p84 = scmp.ne.s32.totalorder %s69, %s83
      %p85 = scmp.eq.s32.totalorder %s17, 0
      %p86 = por %p84, %p85
      %s88 = sadd.s32 %s87, 1
      %p91 = scmp.eq.s32.totalorder %s11, 1
      %p92 = scmp.ne.s32.totalorder %s87, %s89
      %p93 = scmp.eq.s32.totalorder %s11, 0
      %p94 = por %p92, %p93
      %p95 = scmp.ne.s32.totalorder %s87, %s89
      %p96 = scmp.eq.s32.totalorder %s16, 1
      %p97 = por %p95, %p96
      %p98 = scmp.ne.s32.totalorder %s89, %s90
      %p99 = scmp.eq.s32.totalorder %s16, 0
      %p100 = por %p98, %p99
      %p101 = scmp.ne.s32.totalorder %s89, %s90
      %p102 = scmp.eq.s32.totalorder %s17, 1
      %p103 = por %p101, %p102
      %p105 = scmp.ne.s32.totalorder %s90, %s104
      %p106 = scmp.eq.s32.totalorder %s17, 0
      %p107 = por %p105, %p106
      %s108 = ssub.s32 %s11, %s18
      %p109 = scmp.eq.s32.totalorder %s108, 0
      %s111 = sadd.s32 %s110, 1
      %s112 = scalar_select %p109, %s110, %s111
      %p115 = pneg %p109
      %p116 = scmp.eq.s32.totalorder %s11, 1
      %p117 = por %p115, %p116
      %p118 = scmp.ne.s32.totalorder %s110, %s113
      %p119 = scmp.eq.s32.totalorder %s11, 0
      %p120 = por %p118, %p119
      %p121 = scmp.ne.s32.totalorder %s110, %s113
      %p122 = scmp.eq.s32.totalorder %s16, 1
      %p123 = por %p121, %p122
      %p124 = scmp.ne.s32.totalorder %s113, %s114
      %p125 = scmp.eq.s32.totalorder %s16, 0
      %p126 = por %p124, %p125
      %p127 = scmp.ne.s32.totalorder %s113, %s114
      %p128 = scmp.eq.s32.totalorder %s17, 1
      %p129 = por %p127, %p128
      %p131 = scmp.ne.s32.totalorder %s114, %s130
      %p132 = scmp.eq.s32.totalorder %s17, 0
      %p133 = por %p131, %p132
      %p134 = scmp.le.s32.totalorder 1, %s11
      %p135 = scmp.lt.s32.totalorder %s11, 3
      %p136 = pnand %p134, %p135
      %p137 = pneg %p136
      // Predicated region
      $region9: #{tpu_custom_call.1} parent=5 // pred_check
        _
      $region10: #{tpu_custom_call.1} parent=5 // pred_check_branch
        %139 = sbr.rel (%p136) target = $region12
      $region11: #{tpu_custom_call.1} parent=5 // pred_region
        %s140 = ssub.s32 %s11, 1
        // Predicated region
        $region13: #{tpu_custom_call.1} parent=11 // pred_check
          %p141 = pneg %p58
        $region14: #{tpu_custom_call.1} parent=11 // pred_check_branch
          %143 = sbr.rel (%p141) target = $region16
        $region15: #{tpu_custom_call.1} parent=11 // pred_region
          _
        $region16: #{tpu_custom_call.1} parent=11 // pred_fallthru
          _
        // Predicated region
        $region17: #{tpu_custom_call.1} parent=11 // pred_check
          %p144 = pneg %p79
        $region18: #{tpu_custom_call.1} parent=11 // pred_check_branch
          %146 = sbr.rel (%p144) target = $region20
        $region19: #{tpu_custom_call.1} parent=11 // pred_region
          _
        $region20: #{tpu_custom_call.1} parent=11 // pred_fallthru
          _
        // Predicated region
        $region21: #{tpu_custom_call.1} parent=11 // pred_check
          %p147 = pneg %p100
        $region22: #{tpu_custom_call.1} parent=11 // pred_check_branch
          %149 = sbr.rel (%p147) target = $region24
        $region23: #{tpu_custom_call.1} parent=11 // pred_region
          %s151 = ssub.s32 16, 16
          %152 = vsyncadd [#allocation3], %s151
          %s154 = sshll.u32 %s3, 4
          %s155 = int_to_ptr.vmem [resolvable:$true] %s154
          %157 = dma.vmem_to_smem %s155, 16, [#allocation2], [#allocation3]
        $region24: #{tpu_custom_call.1} parent=11 // pred_fallthru
          _
      $region12: #{tpu_custom_call.1} parent=5 // pred_fallthru
        _
      %p158 = scmp.lt.s32.totalorder %s11, 2
      // Predicated region
      $region25: #{tpu_custom_call.1} parent=5 // pred_check
        %p159 = pneg %p158
      $region26: #{tpu_custom_call.1} parent=5 // pred_check_branch
        %161 = sbr.rel (%p159) target = $region28
      $region27: #{tpu_custom_call.1} parent=5 // pred_region
        // Predicated region
        $region29: #{tpu_custom_call.1} parent=27 // pred_check
          %p162 = pneg %p31
        $region30: #{tpu_custom_call.1} parent=27 // pred_check_branch
          %164 = sbr.rel (%p162) target = $region32
        $region31: #{tpu_custom_call.1} parent=27 // pred_region
          %s165 = smul.u32 16, %s11
          %p166 = scmp.lt.s32.totalorder %s165, 31
          %s167 = scalar_select %p166, %s165, 31
          %s168 = smul.addr %s167, 8
          %s169 = scalar_lea.vmem %s0, %s168
          %s170 = smul.u32 16, %s11
        $region32: #{tpu_custom_call.1} parent=27 // pred_fallthru
          _
      $region28: #{tpu_custom_call.1} parent=5 // pred_fallthru
        _
      %p171 = scmp.le.s32.totalorder 1, %s11
      %p172 = scmp.lt.s32.totalorder %s11, 3
      %p173 = pnand %p171, %p172
      %p174 = pneg %p173
      // Predicated region
      $region33: #{tpu_custom_call.1} parent=5 // pred_check
        _
      $region34: #{tpu_custom_call.1} parent=5 // pred_check_branch
        %176 = sbr.rel (%p173) target = $region36
      $region35: #{tpu_custom_call.1} parent=5 // pred_region
        %s177 = ssub.s32 %s11, 1
        // Predicated region
        $region37: #{tpu_custom_call.1} parent=35 // pred_check
          %p178 = pneg %p100
        $region38: #{tpu_custom_call.1} parent=35 // pred_check_branch
          %180 = sbr.rel (%p178) target = $region40
        $region39: #{tpu_custom_call.1} parent=35 // pred_region
          %181 = dma.done [#allocation3], 16
        $region40: #{tpu_custom_call.1} parent=35 // pred_fallthru
          _
        %182 = sfence
        %s183 = smul.u32 16, %s16
        %p184 = scmp.lt.s32.totalorder %s183, 31
        %s185 = scalar_select %p184, %s183, 31
        %s186 = smul.addr %s185, 8
        %s187 = scalar_lea.vmem %s0, %s186
        %p188 = pneg %p37
        %p189 = pneg %p34
        %p190 = pneg %p58
        %p191 = pneg %p55
        %p192 = pneg %p79
        %p193 = pneg %p76
        %p194 = pneg %p100
        %p195 = pneg %p97
        %p196 = pneg %p126
        %p197 = pneg %p123
        %s198 = smul.u32 16, %s16
        %p199 = scmp.lt.s32.totalorder %s198, 31
        %s200 = scalar_select %p199, %s198, 31
        %s201 = smul.addr %s200, 8
        %s202 = scalar_lea.vmem %s4, %s201
        %s203 = smul.u32 16, %s16
        %p204 = scmp.lt.s32.totalorder %s203, 31
        %s205 = scalar_select %p204, %s203, 31
        %s206 = smul.addr %s205, 8
        %s207 = scalar_lea.vmem %s0, %s206
        %s208 = smul.u32 16, %s16
        %s209 = smul.u32 16, %s16
        %p210 = scmp.lt.s32.totalorder %s209, 31
        %s211 = scalar_select %p210, %s209, 31
        %s212 = smul.addr %s211, 8
        %s213 = scalar_lea.vmem %s4, %s212
        %s214 = smul.u32 16, %s16
        %v215 = vld [vmem:[%s207] sm:$0xff]
        %v216 = vld [vmem:[%s207 + $0x8] sm:$0xff]
        %v217 = vld [vmem:[%s207 + $0x10] sm:$0xff]
        %v218 = vld [vmem:[%s207 + $0x18] sm:$0xff]
        %v219 = vld [vmem:[%s207 + $0x20] sm:$0xff]
        %v220 = vld [vmem:[%s207 + $0x28] sm:$0xff]
        %v221 = vld [vmem:[%s207 + $0x30] sm:$0xff]
        %v222 = vld [vmem:[%s207 + $0x38] sm:$0xff]
        %v223 = vld [vmem:[%s207 + $0x40] sm:$0xff]
        %v224 = vld [vmem:[%s207 + $0x48] sm:$0xff]
        %v225 = vld [vmem:[%s207 + $0x50] sm:$0xff]
        %v226 = vld [vmem:[%s207 + $0x58] sm:$0xff]
        %v227 = vld [vmem:[%s207 + $0x60] sm:$0xff]
        %v228 = vld [vmem:[%s207 + $0x68] sm:$0xff]
        %v229 = vld [vmem:[%s207 + $0x70] sm:$0xff]
        %v230 = vld [vmem:[%s207 + $0x78] sm:$0xff]
        %v231 = vld [vmem:[%s1] sm:$0xf]
        %v232 = vld [vmem:[%s2] sm:$0xf]
        %vm233 = vcmask 261120
        %v235 = vsel %vm233, %v215, 0
        %v238 = vsel %vm233, %v216, 0
        %v241 = vsel %vm233, %v217, 0
        %v244 = vsel %vm233, %v218, 0
        %v247 = vsel %vm233, %v219, 0
        %v250 = vsel %vm233, %v220, 0
        %v253 = vsel %vm233, %v221, 0
        %v256 = vsel %vm233, %v222, 0
        %v259 = vsel %vm233, %v223, 0
        %v262 = vsel %vm233, %v224, 0
        %v265 = vsel %vm233, %v225, 0
        %v268 = vsel %vm233, %v226, 0
        %v271 = vsel %vm233, %v227, 0
        %v274 = vsel %vm233, %v228, 0
        %v277 = vsel %vm233, %v229, 0
        %v280 = vsel %vm233, %v230, 0
        %v283 = vsel %vm233, %v232, 0
        %285 = vmatprep.subr.mxu0 0.0
        %286 = vmatpush1.xpose.msra.mxu0 0.0
        %287 = vmatprep.subr.mxu0 0.0
        %288 = vmatpush1.xpose.msra.mxu0 0.0
        %289 = vmatprep.subr.mxu0 0.0
        %290 = vmatpush1.xpose.msra.mxu0 0.0
        %291 = vmatprep.subr.mxu0 0.0
        %292 = vmatpush1.xpose.msra.mxu0 0.0
        %293 = vmatprep.subr.mxu0 0.0
        %294 = vmatpush1.xpose.msra.mxu0 0.0
        %295 = vmatprep.subr.mxu0 0.0
        %296 = vmatpush1.xpose.msra.mxu0 0.0
        %297 = vmatprep.subr.mxu0 0.0
        %298 = vmatpush1.xpose.msra.mxu0 0.0
        %299 = vmatprep.subr.mxu0 0.0
        %300 = vmatpush1.xpose.msra.mxu0 0.0
        %301 = vmatprep.subr.mxu0 0.0
        %302 = vmatpush1.xpose.msra.mxu0 0.0
        %303 = vmatprep.subr.mxu0 0.0
        %304 = vmatpush1.xpose.msra.mxu0 0.0
        %305 = vmatprep.subr.mxu0 0.0
        %306 = vmatpush1.xpose.msra.mxu0 0.0
        %307 = vmatprep.subr.mxu0 0.0
        %308 = vmatpush1.xpose.msra.mxu0 0.0
        %309 = vmatprep.subr.mxu0 0.0
        %310 = vmatpush1.xpose.msra.mxu0 0.0
        %311 = vmatprep.subr.mxu0 0.0
        %312 = vmatpush1.xpose.msra.mxu0 0.0
        %313 = vmatprep.subr.mxu0 0.0
        %314 = vmatpush1.xpose.msra.mxu0 0.0
        %315 = vmatprep.subr.mxu0 0.0
        %v316 = vand.u32 %v283, 4294901760
        %317 = vmatpush1.xpose.msra.mxu0 %v316
        %318 = vmatprep.subr.mxu0 0.0
        %319 = vmatpush2.xpose.msra.mxu0 0.0
        %320 = vmatprep.subr.mxu0 0.0
        %321 = vmatpush2.xpose.msra.mxu0 0.0
        %322 = vmatprep.subr.mxu0 0.0
        %323 = vmatpush2.xpose.msra.mxu0 0.0
        %324 = vmatprep.subr.mxu0 0.0
        %325 = vmatpush2.xpose.msra.mxu0 0.0
        %326 = vmatprep.subr.mxu0 0.0
        %327 = vmatpush2.xpose.msra.mxu0 0.0
        %328 = vmatprep.subr.mxu0 0.0
        %329 = vmatpush2.xpose.msra.mxu0 0.0
        %330 = vmatprep.subr.mxu0 0.0
        %331 = vmatpush2.xpose.msra.mxu0 0.0
        %332 = vmatprep.subr.mxu0 0.0
        %333 = vmatpush2.xpose.msra.mxu0 0.0
        %334 = vmatprep.subr.mxu0 0.0
        %335 = vmatpush2.xpose.msra.mxu0 0.0
        %336 = vmatprep.subr.mxu0 0.0
        %337 = vmatpush2.xpose.msra.mxu0 0.0
        %338 = vmatprep.subr.mxu0 0.0
        %339 = vmatpush2.xpose.msra.mxu0 0.0
        %340 = vmatprep.subr.mxu0 0.0
        %341 = vmatpush2.xpose.msra.mxu0 0.0
        %342 = vmatprep.subr.mxu0 0.0
        %343 = vmatpush2.xpose.msra.mxu0 0.0
        %344 = vmatprep.subr.mxu0 0.0
        %345 = vmatpush2.xpose.msra.mxu0 0.0
        %346 = vmatprep.subr.mxu0 0.0
        %347 = vmatpush2.xpose.msra.mxu0 0.0
        %348 = vmatprep.subr.mxu0 0.0
        %349 = vmatpush2.xpose.msra.mxu0 0.0
        %350 = vmatprep.mubr.f32.mxu0 0.0
        %v351 = vand.u32 %v235, 4294901760
        %v352 = vsub.f32 %v235, %v351
        %v353 = vand.u32 %v352, 4294901760
        %v354 = vsub.f32 %v352, %v353
        %v355 = vand.u32 %v354, 4294901760
        %356 = vmatmul.mubr.f32.gmra.mxu0 %v355
        %v357 = vpop.f32.mrf.mxu0
        %v358 = vadd.f32 0.0, %v357
        %v359 = vpop.f32.mrf.mxu0
        %360 = vmatprep.mubr.f32.mxu0 0.0
        %v361 = vand.u32 %v238, 4294901760
        %v362 = vsub.f32 %v238, %v361
        %v363 = vand.u32 %v362, 4294901760
        %v364 = vsub.f32 %v362, %v363
        %v365 = vand.u32 %v364, 4294901760
        %366 = vmatmul.mubr.f32.gmra.mxu0 %v365
        %v367 = vpop.f32.mrf.mxu0
        %v368 = vadd.f32 0.0, %v367
        %v369 = vpop.f32.mrf.mxu0
        %370 = vmatprep.mubr.f32.mxu0 0.0
        %v371 = vand.u32 %v241, 4294901760
        %v372 = vsub.f32 %v241, %v371
        %v373 = vand.u32 %v372, 4294901760
        %v374 = vsub.f32 %v372, %v373
        %v375 = vand.u32 %v374, 4294901760
        %376 = vmatmul.mubr.f32.gmra.mxu0 %v375
        %v377 = vpop.f32.mrf.mxu0
        %v378 = vadd.f32 0.0, %v377
        %v379 = vpop.f32.mrf.mxu0
        %380 = vmatprep.mubr.f32.mxu0 0.0
        %v381 = vand.u32 %v244, 4294901760
        %v382 = vsub.f32 %v244, %v381
        %v383 = vand.u32 %v382, 4294901760
        %v384 = vsub.f32 %v382, %v383
        %v385 = vand.u32 %v384, 4294901760
        %386 = vmatmul.mubr.f32.gmra.mxu0 %v385
        %v387 = vpop.f32.mrf.mxu0
        %v388 = vadd.f32 0.0, %v387
        %v389 = vpop.f32.mrf.mxu0
        %390 = vmatprep.mubr.f32.mxu0 0.0
        %v391 = vand.u32 %v247, 4294901760
        %v392 = vsub.f32 %v247, %v391
        %v393 = vand.u32 %v392, 4294901760
        %v394 = vsub.f32 %v392, %v393
        %v395 = vand.u32 %v394, 4294901760
        %396 = vmatmul.mubr.f32.gmra.mxu0 %v395
        %v397 = vpop.f32.mrf.mxu0
        %v398 = vadd.f32 0.0, %v397
        %v399 = vpop.f32.mrf.mxu0
        %400 = vmatprep.mubr.f32.mxu0 0.0
        %v401 = vand.u32 %v250, 4294901760
        %v402 = vsub.f32 %v250, %v401
        %v403 = vand.u32 %v402, 4294901760
        %v404 = vsub.f32 %v402, %v403
        %v405 = vand.u32 %v404, 4294901760
        %406 = vmatmul.mubr.f32.gmra.mxu0 %v405
        %v407 = vpop.f32.mrf.mxu0
        %v408 = vadd.f32 0.0, %v407
        %v409 = vpop.f32.mrf.mxu0
        %410 = vmatprep.mubr.f32.mxu0 0.0
        %v411 = vand.u32 %v253, 4294901760
        %v412 = vsub.f32 %v253, %v411
        %v413 = vand.u32 %v412, 4294901760
        %v414 = vsub.f32 %v412, %v413
        %v415 = vand.u32 %v414, 4294901760
        %416 = vmatmul.mubr.f32.gmra.mxu0 %v415
        %v417 = vpop.f32.mrf.mxu0
        %v418 = vadd.f32 0.0, %v417
        %v419 = vpop.f32.mrf.mxu0
        %420 = vmatprep.mubr.f32.mxu0 0.0
        %v421 = vand.u32 %v256, 4294901760
        %v422 = vsub.f32 %v256, %v421
        %v423 = vand.u32 %v422, 4294901760
        %v424 = vsub.f32 %v422, %v423
        %v425 = vand.u32 %v424, 4294901760
        %426 = vmatmul.mubr.f32.gmra.mxu0 %v425
        %v427 = vpop.f32.mrf.mxu0
        %v428 = vadd.f32 0.0, %v427
        %v429 = vpop.f32.mrf.mxu0
        %430 = vmatprep.mubr.f32.mxu0 0.0
        %v431 = vand.u32 %v259, 4294901760
        %v432 = vsub.f32 %v259, %v431
        %v433 = vand.u32 %v432, 4294901760
        %v434 = vsub.f32 %v432, %v433
        %v435 = vand.u32 %v434, 4294901760
        %436 = vmatmul.mubr.f32.gmra.mxu0 %v435
        %v437 = vpop.f32.mrf.mxu0
        %v438 = vadd.f32 0.0, %v437
        %v439 = vpop.f32.mrf.mxu0
        %440 = vmatprep.mubr.f32.mxu0 0.0
        %v441 = vand.u32 %v262, 4294901760
        %v442 = vsub.f32 %v262, %v441
        %v443 = vand.u32 %v442, 4294901760
        %v444 = vsub.f32 %v442, %v443
        %v445 = vand.u32 %v444, 4294901760
        %446 = vmatmul.mubr.f32.gmra.mxu0 %v445
        %v447 = vpop.f32.mrf.mxu0
        %v448 = vadd.f32 0.0, %v447
        %v449 = vpop.f32.mrf.mxu0
        %450 = vmatprep.mubr.f32.mxu0 0.0
        %v451 = vand.u32 %v265, 4294901760
        %v452 = vsub.f32 %v265, %v451
        %v453 = vand.u32 %v452, 4294901760
        %v454 = vsub.f32 %v452, %v453
        %v455 = vand.u32 %v454, 4294901760
        %456 = vmatmul.mubr.f32.gmra.mxu0 %v455
        %v457 = vpop.f32.mrf.mxu0
        %v458 = vadd.f32 0.0, %v457
        %v459 = vpop.f32.mrf.mxu0
        %460 = vmatprep.mubr.f32.mxu0 0.0
        %v461 = vand.u32 %v268, 4294901760
        %v462 = vsub.f32 %v268, %v461
        %v463 = vand.u32 %v462, 4294901760
        %v464 = vsub.f32 %v462, %v463
        %v465 = vand.u32 %v464, 4294901760
        %466 = vmatmul.mubr.f32.gmra.mxu0 %v465
        %v467 = vpop.f32.mrf.mxu0
        %v468 = vadd.f32 0.0, %v467
        %v469 = vpop.f32.mrf.mxu0
        %470 = vmatprep.mubr.f32.mxu0 0.0
        %v471 = vand.u32 %v271, 4294901760
        %v472 = vsub.f32 %v271, %v471
        %v473 = vand.u32 %v472, 4294901760
        %v474 = vsub.f32 %v472, %v473
        %v475 = vand.u32 %v474, 4294901760
        %476 = vmatmul.mubr.f32.gmra.mxu0 %v475
        %v477 = vpop.f32.mrf.mxu0
        %v478 = vadd.f32 0.0, %v477
        %v479 = vpop.f32.mrf.mxu0
        %480 = vmatprep.mubr.f32.mxu0 0.0
        %v481 = vand.u32 %v274, 4294901760
        %v482 = vsub.f32 %v274, %v481
        %v483 = vand.u32 %v482, 4294901760
        %v484 = vsub.f32 %v482, %v483
        %v485 = vand.u32 %v484, 4294901760
        %486 = vmatmul.mubr.f32.gmra.mxu0 %v485
        %v487 = vpop.f32.mrf.mxu0
        %v488 = vadd.f32 0.0, %v487
        %v489 = vpop.f32.mrf.mxu0
        %490 = vmatprep.mubr.f32.mxu0 0.0
        %v491 = vand.u32 %v277, 4294901760
        %v492 = vsub.f32 %v277, %v491
        %v493 = vand.u32 %v492, 4294901760
        %v494 = vsub.f32 %v492, %v493
        %v495 = vand.u32 %v494, 4294901760
        %496 = vmatmul.mubr.f32.gmra.mxu0 %v495
        %v497 = vpop.f32.mrf.mxu0
        %v498 = vadd.f32 0.0, %v497
        %v499 = vpop.f32.mrf.mxu0
        %500 = vmatprep.mubr.f32.mxu0 0.0
        %v501 = vand.u32 %v280, 4294901760
        %v502 = vsub.f32 %v280, %v501
        %v503 = vand.u32 %v502, 4294901760
        %v504 = vsub.f32 %v502, %v503
        %v505 = vand.u32 %v504, 4294901760
        %506 = vmatmul.mubr.f32.gmra.mxu0 %v505
        %v507 = vpop.f32.mrf.mxu0
        %v508 = vadd.f32 0.0, %v507
        %v509 = vpop.f32.mrf.mxu0
        %510 = vdwg.mxu0
        %511 = vmatprep.subr.mxu0 0.0
        %512 = vmatpush1.xpose.msra.mxu0 0.0
        %513 = vmatprep.subr.mxu0 0.0
        %514 = vmatpush1.xpose.msra.mxu0 0.0
        %515 = vmatprep.subr.mxu0 0.0
        %516 = vmatpush1.xpose.msra.mxu0 0.0
        %517 = vmatprep.subr.mxu0 0.0
        %518 = vmatpush1.xpose.msra.mxu0 0.0
        %519 = vmatprep.subr.mxu0 0.0
        %520 = vmatpush1.xpose.msra.mxu0 0.0
        %521 = vmatprep.subr.mxu0 0.0
        %522 = vmatpush1.xpose.msra.mxu0 0.0
        %523 = vmatprep.subr.mxu0 0.0
        %524 = vmatpush1.xpose.msra.mxu0 0.0
        %525 = vmatprep.subr.mxu0 0.0
        %526 = vmatpush1.xpose.msra.mxu0 0.0
        %527 = vmatprep.subr.mxu0 0.0
        %528 = vmatpush1.xpose.msra.mxu0 0.0
        %529 = vmatprep.subr.mxu0 0.0
        %530 = vmatpush1.xpose.msra.mxu0 0.0
        %531 = vmatprep.subr.mxu0 0.0
        %532 = vmatpush1.xpose.msra.mxu0 0.0
        %533 = vmatprep.subr.mxu0 0.0
        %534 = vmatpush1.xpose.msra.mxu0 0.0
        %535 = vmatprep.subr.mxu0 0.0
        %536 = vmatpush1.xpose.msra.mxu0 0.0
        %537 = vmatprep.subr.mxu0 0.0
        %538 = vmatpush1.xpose.msra.mxu0 0.0
        %539 = vmatprep.subr.mxu0 0.0
        %540 = vmatpush1.xpose.msra.mxu0 0.0
        %541 = vmatprep.subr.mxu0 0.0
        %v542 = vand.u32 %v283, 4294901760
        %v543 = vsub.f32 %v283, %v542
        %v544 = vand.u32 %v543, 4294901760
        %v545 = vsub.f32 %v543, %v544
        %v546 = vand.u32 %v545, 4294901760
        %547 = vmatpush1.xpose.msra.mxu0 %v546
        %548 = vmatprep.subr.mxu0 0.0
        %549 = vmatpush2.xpose.msra.mxu0 0.0
        %550 = vmatprep.subr.mxu0 0.0
        %551 = vmatpush2.xpose.msra.mxu0 0.0
        %552 = vmatprep.subr.mxu0 0.0
        %553 = vmatpush2.xpose.msra.mxu0 0.0
        %554 = vmatprep.subr.mxu0 0.0
        %555 = vmatpush2.xpose.msra.mxu0 0.0
        %556 = vmatprep.subr.mxu0 0.0
        %557 = vmatpush2.xpose.msra.mxu0 0.0
        %558 = vmatprep.subr.mxu0 0.0
        %559 = vmatpush2.xpose.msra.mxu0 0.0
        %560 = vmatprep.subr.mxu0 0.0
        %561 = vmatpush2.xpose.msra.mxu0 0.0
        %562 = vmatprep.subr.mxu0 0.0
        %563 = vmatpush2.xpose.msra.mxu0 0.0
        %564 = vmatprep.subr.mxu0 0.0
        %565 = vmatpush2.xpose.msra.mxu0 0.0
        %566 = vmatprep.subr.mxu0 0.0
        %567 = vmatpush2.xpose.msra.mxu0 0.0
        %568 = vmatprep.subr.mxu0 0.0
        %569 = vmatpush2.xpose.msra.mxu0 0.0
        %570 = vmatprep.subr.mxu0 0.0
        %571 = vmatpush2.xpose.msra.mxu0 0.0
        %572 = vmatprep.subr.mxu0 0.0
        %573 = vmatpush2.xpose.msra.mxu0 0.0
        %574 = vmatprep.subr.mxu0 0.0
        %575 = vmatpush2.xpose.msra.mxu0 0.0
        %576 = vmatprep.subr.mxu0 0.0
        %577 = vmatpush2.xpose.msra.mxu0 0.0
        %578 = vmatprep.subr.mxu0 0.0
        %579 = vmatpush2.xpose.msra.mxu0 0.0
        %580 = vmatprep.mubr.f32.mxu0 0.0
        %v581 = vand.u32 %v235, 4294901760
        %582 = vmatmul.mubr.f32.gmra.mxu0 %v581
        %v583 = vpop.f32.mrf.mxu0
        %v584 = vadd.f32 %v358, %v583
        %v585 = vpop.f32.mrf.mxu0
        %586 = vmatprep.mubr.f32.mxu0 0.0
        %v587 = vand.u32 %v238, 4294901760
        %588 = vmatmul.mubr.f32.gmra.mxu0 %v587
        %v589 = vpop.f32.mrf.mxu0
        %v590 = vadd.f32 %v368, %v589
        %v591 = vpop.f32.mrf.mxu0
        %592 = vmatprep.mubr.f32.mxu0 0.0
        %v593 = vand.u32 %v241, 4294901760
        %594 = vmatmul.mubr.f32.gmra.mxu0 %v593
        %v595 = vpop.f32.mrf.mxu0
        %v596 = vadd.f32 %v378, %v595
        %v597 = vpop.f32.mrf.mxu0
        %598 = vmatprep.mubr.f32.mxu0 0.0
        %v599 = vand.u32 %v244, 4294901760
        %600 = vmatmul.mubr.f32.gmra.mxu0 %v599
        %v601 = vpop.f32.mrf.mxu0
        %v602 = vadd.f32 %v388, %v601
        %v603 = vpop.f32.mrf.mxu0
        %604 = vmatprep.mubr.f32.mxu0 0.0
        %v605 = vand.u32 %v247, 4294901760
        %606 = vmatmul.mubr.f32.gmra.mxu0 %v605
        %v607 = vpop.f32.mrf.mxu0
        %v608 = vadd.f32 %v398, %v607
        %v609 = vpop.f32.mrf.mxu0
        %610 = vmatprep.mubr.f32.mxu0 0.0
        %v611 = vand.u32 %v250, 4294901760
        %612 = vmatmul.mubr.f32.gmra.mxu0 %v611
        %v613 = vpop.f32.mrf.mxu0
        %v614 = vadd.f32 %v408, %v613
        %v615 = vpop.f32.mrf.mxu0
        %616 = vmatprep.mubr.f32.mxu0 0.0
        %v617 = vand.u32 %v253, 4294901760
        %618 = vmatmul.mubr.f32.gmra.mxu0 %v617
        %v619 = vpop.f32.mrf.mxu0
        %v620 = vadd.f32 %v418, %v619
        %v621 = vpop.f32.mrf.mxu0
        %622 = vmatprep.mubr.f32.mxu0 0.0
        %v623 = vand.u32 %v256, 4294901760
        %624 = vmatmul.mubr.f32.gmra.mxu0 %v623
        %v625 = vpop.f32.mrf.mxu0
        %v626 = vadd.f32 %v428, %v625
        %v627 = vpop.f32.mrf.mxu0
        %628 = vmatprep.mubr.f32.mxu0 0.0
        %v629 = vand.u32 %v259, 4294901760
        %630 = vmatmul.mubr.f32.gmra.mxu0 %v629
        %v631 = vpop.f32.mrf.mxu0
        %v632 = vadd.f32 %v438, %v631
        %v633 = vpop.f32.mrf.mxu0
        %634 = vmatprep.mubr.f32.mxu0 0.0
        %v635 = vand.u32 %v262, 4294901760
        %636 = vmatmul.mubr.f32.gmra.mxu0 %v635
        %v637 = vpop.f32.mrf.mxu0
        %v638 = vadd.f32 %v448, %v637
        %v639 = vpop.f32.mrf.mxu0
        %640 = vmatprep.mubr.f32.mxu0 0.0
        %v641 = vand.u32 %v265, 4294901760
        %642 = vmatmul.mubr.f32.gmra.mxu0 %v641
        %v643 = vpop.f32.mrf.mxu0
        %v644 = vadd.f32 %v458, %v643
        %v645 = vpop.f32.mrf.mxu0
        %646 = vmatprep.mubr.f32.mxu0 0.0
        %v647 = vand.u32 %v268, 4294901760
        %648 = vmatmul.mubr.f32.gmra.mxu0 %v647
        %v649 = vpop.f32.mrf.mxu0
        %v650 = vadd.f32 %v468, %v649
        %v651 = vpop.f32.mrf.mxu0
        %652 = vmatprep.mubr.f32.mxu0 0.0
        %v653 = vand.u32 %v271, 4294901760
        %654 = vmatmul.mubr.f32.gmra.mxu0 %v653
        %v655 = vpop.f32.mrf.mxu0
        %v656 = vadd.f32 %v478, %v655
        %v657 = vpop.f32.mrf.mxu0
        %658 = vmatprep.mubr.f32.mxu0 0.0
        %v659 = vand.u32 %v274, 4294901760
        %660 = vmatmul.mubr.f32.gmra.mxu0 %v659
        %v661 = vpop.f32.mrf.mxu0
        %v662 = vadd.f32 %v488, %v661
        %v663 = vpop.f32.mrf.mxu0
        %664 = vmatprep.mubr.f32.mxu0 0.0
        %v665 = vand.u32 %v277, 4294901760
        %666 = vmatmul.mubr.f32.gmra.mxu0 %v665
        %v667 = vpop.f32.mrf.mxu0
        %v668 = vadd.f32 %v498, %v667
        %v669 = vpop.f32.mrf.mxu0
        %670 = vmatprep.mubr.f32.mxu0 0.0
        %v671 = vand.u32 %v280, 4294901760
        %672 = vmatmul.mubr.f32.gmra.mxu0 %v671
        %v673 = vpop.f32.mrf.mxu0
        %v674 = vadd.f32 %v508, %v673
        %v675 = vpop.f32.mrf.mxu0
        %676 = vdwg.mxu0
        %677 = vmatprep.subr.mxu0 0.0
        %678 = vmatpush1.xpose.msra.mxu0 0.0
        %679 = vmatprep.subr.mxu0 0.0
        %680 = vmatpush1.xpose.msra.mxu0 0.0
        %681 = vmatprep.subr.mxu0 0.0
        %682 = vmatpush1.xpose.msra.mxu0 0.0
        %683 = vmatprep.subr.mxu0 0.0
        %684 = vmatpush1.xpose.msra.mxu0 0.0
        %685 = vmatprep.subr.mxu0 0.0
        %686 = vmatpush1.xpose.msra.mxu0 0.0
        %687 = vmatprep.subr.mxu0 0.0
        %688 = vmatpush1.xpose.msra.mxu0 0.0
        %689 = vmatprep.subr.mxu0 0.0
        %690 = vmatpush1.xpose.msra.mxu0 0.0
        %691 = vmatprep.subr.mxu0 0.0
        %692 = vmatpush1.xpose.msra.mxu0 0.0
        %693 = vmatprep.subr.mxu0 0.0
        %694 = vmatpush1.xpose.msra.mxu0 0.0
        %695 = vmatprep.subr.mxu0 0.0
        %696 = vmatpush1.xpose.msra.mxu0 0.0
        %697 = vmatprep.subr.mxu0 0.0
        %698 = vmatpush1.xpose.msra.mxu0 0.0
        %699 = vmatprep.subr.mxu0 0.0
        %700 = vmatpush1.xpose.msra.mxu0 0.0
        %701 = vmatprep.subr.mxu0 0.0
        %702 = vmatpush1.xpose.msra.mxu0 0.0
        %703 = vmatprep.subr.mxu0 0.0
        %704 = vmatpush1.xpose.msra.mxu0 0.0
        %705 = vmatprep.subr.mxu0 0.0
        %706 = vmatpush1.xpose.msra.mxu0 0.0
        %707 = vmatprep.subr.mxu0 0.0
        %v708 = vand.u32 %v283, 4294901760
        %v709 = vsub.f32 %v283, %v708
        %710 = vmatpush1.xpose.msra.mxu0 %v709
        %711 = vmatprep.subr.mxu0 0.0
        %712 = vmatpush2.xpose.msra.mxu0 0.0
        %713 = vmatprep.subr.mxu0 0.0
        %714 = vmatpush2.xpose.msra.mxu0 0.0
        %715 = vmatprep.subr.mxu0 0.0
        %716 = vmatpush2.xpose.msra.mxu0 0.0
        %717 = vmatprep.subr.mxu0 0.0
        %718 = vmatpush2.xpose.msra.mxu0 0.0
        %719 = vmatprep.subr.mxu0 0.0
        %720 = vmatpush2.xpose.msra.mxu0 0.0
        %721 = vmatprep.subr.mxu0 0.0
        %722 = vmatpush2.xpose.msra.mxu0 0.0
        %723 = vmatprep.subr.mxu0 0.0
        %724 = vmatpush2.xpose.msra.mxu0 0.0
        %725 = vmatprep.subr.mxu0 0.0
        %726 = vmatpush2.xpose.msra.mxu0 0.0
        %727 = vmatprep.subr.mxu0 0.0
        %728 = vmatpush2.xpose.msra.mxu0 0.0
        %729 = vmatprep.subr.mxu0 0.0
        %730 = vmatpush2.xpose.msra.mxu0 0.0
        %731 = vmatprep.subr.mxu0 0.0
        %732 = vmatpush2.xpose.msra.mxu0 0.0
        %733 = vmatprep.subr.mxu0 0.0
        %734 = vmatpush2.xpose.msra.mxu0 0.0
        %735 = vmatprep.subr.mxu0 0.0
        %736 = vmatpush2.xpose.msra.mxu0 0.0
        %737 = vmatprep.subr.mxu0 0.0
        %738 = vmatpush2.xpose.msra.mxu0 0.0
        %739 = vmatprep.subr.mxu0 0.0
        %740 = vmatpush2.xpose.msra.mxu0 0.0
        %741 = vmatprep.subr.mxu0 0.0
        %742 = vmatpush2.xpose.msra.mxu0 0.0
        %743 = vmatprep.mubr.f32.mxu0 0.0
        %v744 = vand.u32 %v235, 4294901760
        %v745 = vsub.f32 %v235, %v744
        %746 = vmatmul.mubr.f32.gmra.mxu0 %v745
        %v747 = vpop.f32.mrf.mxu0
        %v748 = vadd.f32 %v584, %v747
        %v749 = vpop.f32.mrf.mxu0
        %750 = vmatprep.mubr.f32.mxu0 0.0
        %v751 = vand.u32 %v238, 4294901760
        %v752 = vsub.f32 %v238, %v751
        %753 = vmatmul.mubr.f32.gmra.mxu0 %v752
        %v754 = vpop.f32.mrf.mxu0
        %v755 = vadd.f32 %v590, %v754
        %v756 = vpop.f32.mrf.mxu0
        %757 = vmatprep.mubr.f32.mxu0 0.0
        %v758 = vand.u32 %v241, 4294901760
        %v759 = vsub.f32 %v241, %v758
        %760 = vmatmul.mubr.f32.gmra.mxu0 %v759
        %v761 = vpop.f32.mrf.mxu0
        %v762 = vadd.f32 %v596, %v761
        %v763 = vpop.f32.mrf.mxu0
        %764 = vmatprep.mubr.f32.mxu0 0.0
        %v765 = vand.u32 %v244, 4294901760
        %v766 = vsub.f32 %v244, %v765
        %767 = vmatmul.mubr.f32.gmra.mxu0 %v766
        %v768 = vpop.f32.mrf.mxu0
        %v769 = vadd.f32 %v602, %v768
        %v770 = vpop.f32.mrf.mxu0
        %771 = vmatprep.mubr.f32.mxu0 0.0
        %v772 = vand.u32 %v247, 4294901760
        %v773 = vsub.f32 %v247, %v772
        %774 = vmatmul.mubr.f32.gmra.mxu0 %v773
        %v775 = vpop.f32.mrf.mxu0
        %v776 = vadd.f32 %v608, %v775
        %v777 = vpop.f32.mrf.mxu0
        %778 = vmatprep.mubr.f32.mxu0 0.0
        %v779 = vand.u32 %v250, 4294901760
        %v780 = vsub.f32 %v250, %v779
        %781 = vmatmul.mubr.f32.gmra.mxu0 %v780
        %v782 = vpop.f32.mrf.mxu0
        %v783 = vadd.f32 %v614, %v782
        %v784 = vpop.f32.mrf.mxu0
        %785 = vmatprep.mubr.f32.mxu0 0.0
        %v786 = vand.u32 %v253, 4294901760
        %v787 = vsub.f32 %v253, %v786
        %788 = vmatmul.mubr.f32.gmra.mxu0 %v787
        %v789 = vpop.f32.mrf.mxu0
        %v790 = vadd.f32 %v620, %v789
        %v791 = vpop.f32.mrf.mxu0
        %792 = vmatprep.mubr.f32.mxu0 0.0
        %v793 = vand.u32 %v256, 4294901760
        %v794 = vsub.f32 %v256, %v793
        %795 = vmatmul.mubr.f32.gmra.mxu0 %v794
        %v796 = vpop.f32.mrf.mxu0
        %v797 = vadd.f32 %v626, %v796
        %v798 = vpop.f32.mrf.mxu0
        %799 = vmatprep.mubr.f32.mxu0 0.0
        %v800 = vand.u32 %v259, 4294901760
        %v801 = vsub.f32 %v259, %v800
        %802 = vmatmul.mubr.f32.gmra.mxu0 %v801
        %v803 = vpop.f32.mrf.mxu0
        %v804 = vadd.f32 %v632, %v803
        %v805 = vpop.f32.mrf.mxu0
        %806 = vmatprep.mubr.f32.mxu0 0.0
        %v807 = vand.u32 %v262, 4294901760
        %v808 = vsub.f32 %v262, %v807
        %809 = vmatmul.mubr.f32.gmra.mxu0 %v808
        %v810 = vpop.f32.mrf.mxu0
        %v811 = vadd.f32 %v638, %v810
        %v812 = vpop.f32.mrf.mxu0
        %813 = vmatprep.mubr.f32.mxu0 0.0
        %v814 = vand.u32 %v265, 4294901760
        %v815 = vsub.f32 %v265, %v814
        %816 = vmatmul.mubr.f32.gmra.mxu0 %v815
        %v817 = vpop.f32.mrf.mxu0
        %v818 = vadd.f32 %v644, %v817
        %v819 = vpop.f32.mrf.mxu0
        %820 = vmatprep.mubr.f32.mxu0 0.0
        %v821 = vand.u32 %v268, 4294901760
        %v822 = vsub.f32 %v268, %v821
        %823 = vmatmul.mubr.f32.gmra.mxu0 %v822
        %v824 = vpop.f32.mrf.mxu0
        %v825 = vadd.f32 %v650, %v824
        %v826 = vpop.f32.mrf.mxu0
        %827 = vmatprep.mubr.f32.mxu0 0.0
        %v828 = vand.u32 %v271, 4294901760
        %v829 = vsub.f32 %v271, %v828
        %830 = vmatmul.mubr.f32.gmra.mxu0 %v829
        %v831 = vpop.f32.mrf.mxu0
        %v832 = vadd.f32 %v656, %v831
        %v833 = vpop.f32.mrf.mxu0
        %834 = vmatprep.mubr.f32.mxu0 0.0
        %v835 = vand.u32 %v274, 4294901760
        %v836 = vsub.f32 %v274, %v835
        %837 = vmatmul.mubr.f32.gmra.mxu0 %v836
        %v838 = vpop.f32.mrf.mxu0
        %v839 = vadd.f32 %v662, %v838
        %v840 = vpop.f32.mrf.mxu0
        %841 = vmatprep.mubr.f32.mxu0 0.0
        %v842 = vand.u32 %v277, 4294901760
        %v843 = vsub.f32 %v277, %v842
        %844 = vmatmul.mubr.f32.gmra.mxu0 %v843
        %v845 = vpop.f32.mrf.mxu0
        %v846 = vadd.f32 %v668, %v845
        %v847 = vpop.f32.mrf.mxu0
        %848 = vmatprep.mubr.f32.mxu0 0.0
        %v849 = vand.u32 %v280, 4294901760
        %v850 = vsub.f32 %v280, %v849
        %851 = vmatmul.mubr.f32.gmra.mxu0 %v850
        %v852 = vpop.f32.mrf.mxu0
        %v853 = vadd.f32 %v674, %v852
        %v854 = vpop.f32.mrf.mxu0
        %855 = vdwg.mxu0
        %856 = vmatprep.subr.mxu0 0.0
        %857 = vmatpush1.xpose.msra.mxu0 0.0
        %858 = vmatprep.subr.mxu0 0.0
        %859 = vmatpush1.xpose.msra.mxu0 0.0
        %860 = vmatprep.subr.mxu0 0.0
        %861 = vmatpush1.xpose.msra.mxu0 0.0
        %862 = vmatprep.subr.mxu0 0.0
        %863 = vmatpush1.xpose.msra.mxu0 0.0
        %864 = vmatprep.subr.mxu0 0.0
        %865 = vmatpush1.xpose.msra.mxu0 0.0
        %866 = vmatprep.subr.mxu0 0.0
        %867 = vmatpush1.xpose.msra.mxu0 0.0
        %868 = vmatprep.subr.mxu0 0.0
        %869 = vmatpush1.xpose.msra.mxu0 0.0
        %870 = vmatprep.subr.mxu0 0.0
        %871 = vmatpush1.xpose.msra.mxu0 0.0
        %872 = vmatprep.subr.mxu0 0.0
        %873 = vmatpush1.xpose.msra.mxu0 0.0
        %874 = vmatprep.subr.mxu0 0.0
        %875 = vmatpush1.xpose.msra.mxu0 0.0
        %876 = vmatprep.subr.mxu0 0.0
        %877 = vmatpush1.xpose.msra.mxu0 0.0
        %878 = vmatprep.subr.mxu0 0.0
        %879 = vmatpush1.xpose.msra.mxu0 0.0
        %880 = vmatprep.subr.mxu0 0.0
        %881 = vmatpush1.xpose.msra.mxu0 0.0
        %882 = vmatprep.subr.mxu0 0.0
        %883 = vmatpush1.xpose.msra.mxu0 0.0
        %884 = vmatprep.subr.mxu0 0.0
        %885 = vmatpush1.xpose.msra.mxu0 0.0
        %886 = vmatprep.subr.mxu0 0.0
        %v887 = vand.u32 %v283, 4294901760
        %888 = vmatpush1.xpose.msra.mxu0 %v887
        %889 = vmatprep.subr.mxu0 0.0
        %890 = vmatpush2.xpose.msra.mxu0 0.0
        %891 = vmatprep.subr.mxu0 0.0
        %892 = vmatpush2.xpose.msra.mxu0 0.0
        %893 = vmatprep.subr.mxu0 0.0
        %894 = vmatpush2.xpose.msra.mxu0 0.0
        %895 = vmatprep.subr.mxu0 0.0
        %896 = vmatpush2.xpose.msra.mxu0 0.0
        %897 = vmatprep.subr.mxu0 0.0
        %898 = vmatpush2.xpose.msra.mxu0 0.0
        %899 = vmatprep.subr.mxu0 0.0
        %900 = vmatpush2.xpose.msra.mxu0 0.0
        %901 = vmatprep.subr.mxu0 0.0
        %902 = vmatpush2.xpose.msra.mxu0 0.0
        %903 = vmatprep.subr.mxu0 0.0
        %904 = vmatpush2.xpose.msra.mxu0 0.0
        %905 = vmatprep.subr.mxu0 0.0
        %906 = vmatpush2.xpose.msra.mxu0 0.0
        %907 = vmatprep.subr.mxu0 0.0
        %908 = vmatpush2.xpose.msra.mxu0 0.0
        %909 = vmatprep.subr.mxu0 0.0
        %910 = vmatpush2.xpose.msra.mxu0 0.0
        %911 = vmatprep.subr.mxu0 0.0
        %912 = vmatpush2.xpose.msra.mxu0 0.0
        %913 = vmatprep.subr.mxu0 0.0
        %914 = vmatpush2.xpose.msra.mxu0 0.0
        %915 = vmatprep.subr.mxu0 0.0
        %916 = vmatpush2.xpose.msra.mxu0 0.0
        %917 = vmatprep.subr.mxu0 0.0
        %918 = vmatpush2.xpose.msra.mxu0 0.0
        %919 = vmatprep.subr.mxu0 0.0
        %920 = vmatpush2.xpose.msra.mxu0 0.0
        %921 = vmatprep.mubr.f32.mxu0 0.0
        %v922 = vand.u32 %v235, 4294901760
        %v923 = vsub.f32 %v235, %v922
        %v924 = vand.u32 %v923, 4294901760
        %925 = vmatmul.mubr.f32.gmra.mxu0 %v924
        %v926 = vpop.f32.mrf.mxu0
        %v927 = vadd.f32 %v748, %v926
        %v928 = vpop.f32.mrf.mxu0
        %929 = vmatprep.mubr.f32.mxu0 0.0
        %v930 = vand.u32 %v238, 4294901760
        %v931 = vsub.f32 %v238, %v930
        %v932 = vand.u32 %v931, 4294901760
        %933 = vmatmul.mubr.f32.gmra.mxu0 %v932
        %v934 = vpop.f32.mrf.mxu0
        %v935 = vadd.f32 %v755, %v934
        %v936 = vpop.f32.mrf.mxu0
        %937 = vmatprep.mubr.f32.mxu0 0.0
        %v938 = vand.u32 %v241, 4294901760
        %v939 = vsub.f32 %v241, %v938
        %v940 = vand.u32 %v939, 4294901760
        %941 = vmatmul.mubr.f32.gmra.mxu0 %v940
        %v942 = vpop.f32.mrf.mxu0
        %v943 = vadd.f32 %v762, %v942
        %v944 = vpop.f32.mrf.mxu0
        %945 = vmatprep.mubr.f32.mxu0 0.0
        %v946 = vand.u32 %v244, 4294901760
        %v947 = vsub.f32 %v244, %v946
        %v948 = vand.u32 %v947, 4294901760
        %949 = vmatmul.mubr.f32.gmra.mxu0 %v948
        %v950 = vpop.f32.mrf.mxu0
        %v951 = vadd.f32 %v769, %v950
        %v952 = vpop.f32.mrf.mxu0
        %953 = vmatprep.mubr.f32.mxu0 0.0
        %v954 = vand.u32 %v247, 4294901760
        %v955 = vsub.f32 %v247, %v954
        %v956 = vand.u32 %v955, 4294901760
        %957 = vmatmul.mubr.f32.gmra.mxu0 %v956
        %v958 = vpop.f32.mrf.mxu0
        %v959 = vadd.f32 %v776, %v958
        %v960 = vpop.f32.mrf.mxu0
        %961 = vmatprep.mubr.f32.mxu0 0.0
        %v962 = vand.u32 %v250, 4294901760
        %v963 = vsub.f32 %v250, %v962
        %v964 = vand.u32 %v963, 4294901760
        %965 = vmatmul.mubr.f32.gmra.mxu0 %v964
        %v966 = vpop.f32.mrf.mxu0
        %v967 = vadd.f32 %v783, %v966
        %v968 = vpop.f32.mrf.mxu0
        %969 = vmatprep.mubr.f32.mxu0 0.0
        %v970 = vand.u32 %v253, 4294901760
        %v971 = vsub.f32 %v253, %v970
        %v972 = vand.u32 %v971, 4294901760
        %973 = vmatmul.mubr.f32.gmra.mxu0 %v972
        %v974 = vpop.f32.mrf.mxu0
        %v975 = vadd.f32 %v790, %v974
        %v976 = vpop.f32.mrf.mxu0
        %977 = vmatprep.mubr.f32.mxu0 0.0
        %v978 = vand.u32 %v256, 4294901760
        %v979 = vsub.f32 %v256, %v978
        %v980 = vand.u32 %v979, 4294901760
        %981 = vmatmul.mubr.f32.gmra.mxu0 %v980
        %v982 = vpop.f32.mrf.mxu0
        %v983 = vadd.f32 %v797, %v982
        %v984 = vpop.f32.mrf.mxu0
        %985 = vmatprep.mubr.f32.mxu0 0.0
        %v986 = vand.u32 %v259, 4294901760
        %v987 = vsub.f32 %v259, %v986
        %v988 = vand.u32 %v987, 4294901760
        %989 = vmatmul.mubr.f32.gmra.mxu0 %v988
        %v990 = vpop.f32.mrf.mxu0
        %v991 = vadd.f32 %v804, %v990
        %v992 = vpop.f32.mrf.mxu0
        %993 = vmatprep.mubr.f32.mxu0 0.0
        %v994 = vand.u32 %v262, 4294901760
        %v995 = vsub.f32 %v262, %v994
        %v996 = vand.u32 %v995, 4294901760
        %997 = vmatmul.mubr.f32.gmra.mxu0 %v996
        %v998 = vpop.f32.mrf.mxu0
        %v999 = vadd.f32 %v811, %v998
        %v1000 = vpop.f32.mrf.mxu0
        %1001 = vmatprep.mubr.f32.mxu0 0.0
        %v1002 = vand.u32 %v265, 4294901760
        %v1003 = vsub.f32 %v265, %v1002
        %v1004 = vand.u32 %v1003, 4294901760
        %1005 = vmatmul.mubr.f32.gmra.mxu0 %v1004
        %v1006 = vpop.f32.mrf.mxu0
        %v1007 = vadd.f32 %v818, %v1006
        %v1008 = vpop.f32.mrf.mxu0
        %1009 = vmatprep.mubr.f32.mxu0 0.0
        %v1010 = vand.u32 %v268, 4294901760
        %v1011 = vsub.f32 %v268, %v1010
        %v1012 = vand.u32 %v1011, 4294901760
        %1013 = vmatmul.mubr.f32.gmra.mxu0 %v1012
        %v1014 = vpop.f32.mrf.mxu0
        %v1015 = vadd.f32 %v825, %v1014
        %v1016 = vpop.f32.mrf.mxu0
        %1017 = vmatprep.mubr.f32.mxu0 0.0
        %v1018 = vand.u32 %v271, 4294901760
        %v1019 = vsub.f32 %v271, %v1018
        %v1020 = vand.u32 %v1019, 4294901760
        %1021 = vmatmul.mubr.f32.gmra.mxu0 %v1020
        %v1022 = vpop.f32.mrf.mxu0
        %v1023 = vadd.f32 %v832, %v1022
        %v1024 = vpop.f32.mrf.mxu0
        %1025 = vmatprep.mubr.f32.mxu0 0.0
        %v1026 = vand.u32 %v274, 4294901760
        %v1027 = vsub.f32 %v274, %v1026
        %v1028 = vand.u32 %v1027, 4294901760
        %1029 = vmatmul.mubr.f32.gmra.mxu0 %v1028
        %v1030 = vpop.f32.mrf.mxu0
        %v1031 = vadd.f32 %v839, %v1030
        %v1032 = vpop.f32.mrf.mxu0
        %1033 = vmatprep.mubr.f32.mxu0 0.0
        %v1034 = vand.u32 %v277, 4294901760
        %v1035 = vsub.f32 %v277, %v1034
        %v1036 = vand.u32 %v1035, 4294901760
        %1037 = vmatmul.mubr.f32.gmra.mxu0 %v1036
        %v1038 = vpop.f32.mrf.mxu0
        %v1039 = vadd.f32 %v846, %v1038
        %v1040 = vpop.f32.mrf.mxu0
        %1041 = vmatprep.mubr.f32.mxu0 0.0
        %v1042 = vand.u32 %v280, 4294901760
        %v1043 = vsub.f32 %v280, %v1042
        %v1044 = vand.u32 %v1043, 4294901760
        %1045 = vmatmul.mubr.f32.gmra.mxu0 %v1044
        %v1046 = vpop.f32.mrf.mxu0
        %v1047 = vadd.f32 %v853, %v1046
        %v1048 = vpop.f32.mrf.mxu0
        %1049 = vdwg.mxu0
        %1050 = vmatprep.subr.mxu0 0.0
        %1051 = vmatpush1.xpose.msra.mxu0 0.0
        %1052 = vmatprep.subr.mxu0 0.0
        %1053 = vmatpush1.xpose.msra.mxu0 0.0
        %1054 = vmatprep.subr.mxu0 0.0
        %1055 = vmatpush1.xpose.msra.mxu0 0.0
        %1056 = vmatprep.subr.mxu0 0.0
        %1057 = vmatpush1.xpose.msra.mxu0 0.0
        %1058 = vmatprep.subr.mxu0 0.0
        %1059 = vmatpush1.xpose.msra.mxu0 0.0
        %1060 = vmatprep.subr.mxu0 0.0
        %1061 = vmatpush1.xpose.msra.mxu0 0.0
        %1062 = vmatprep.subr.mxu0 0.0
        %1063 = vmatpush1.xpose.msra.mxu0 0.0
        %1064 = vmatprep.subr.mxu0 0.0
        %1065 = vmatpush1.xpose.msra.mxu0 0.0
        %1066 = vmatprep.subr.mxu0 0.0
        %1067 = vmatpush1.xpose.msra.mxu0 0.0
        %1068 = vmatprep.subr.mxu0 0.0
        %1069 = vmatpush1.xpose.msra.mxu0 0.0
        %1070 = vmatprep.subr.mxu0 0.0
        %1071 = vmatpush1.xpose.msra.mxu0 0.0
        %1072 = vmatprep.subr.mxu0 0.0
        %1073 = vmatpush1.xpose.msra.mxu0 0.0
        %1074 = vmatprep.subr.mxu0 0.0
        %1075 = vmatpush1.xpose.msra.mxu0 0.0
        %1076 = vmatprep.subr.mxu0 0.0
        %1077 = vmatpush1.xpose.msra.mxu0 0.0
        %1078 = vmatprep.subr.mxu0 0.0
        %1079 = vmatpush1.xpose.msra.mxu0 0.0
        %1080 = vmatprep.subr.mxu0 0.0
        %v1081 = vand.u32 %v283, 4294901760
        %v1082 = vsub.f32 %v283, %v1081
        %v1083 = vand.u32 %v1082, 4294901760
        %1084 = vmatpush1.xpose.msra.mxu0 %v1083
        %1085 = vmatprep.subr.mxu0 0.0
        %1086 = vmatpush2.xpose.msra.mxu0 0.0
        %1087 = vmatprep.subr.mxu0 0.0
        %1088 = vmatpush2.xpose.msra.mxu0 0.0
        %1089 = vmatprep.subr.mxu0 0.0
        %1090 = vmatpush2.xpose.msra.mxu0 0.0
        %1091 = vmatprep.subr.mxu0 0.0
        %1092 = vmatpush2.xpose.msra.mxu0 0.0
        %1093 = vmatprep.subr.mxu0 0.0
        %1094 = vmatpush2.xpose.msra.mxu0 0.0
        %1095 = vmatprep.subr.mxu0 0.0
        %1096 = vmatpush2.xpose.msra.mxu0 0.0
        %1097 = vmatprep.subr.mxu0 0.0
        %1098 = vmatpush2.xpose.msra.mxu0 0.0
        %1099 = vmatprep.subr.mxu0 0.0
        %1100 = vmatpush2.xpose.msra.mxu0 0.0
        %1101 = vmatprep.subr.mxu0 0.0
        %1102 = vmatpush2.xpose.msra.mxu0 0.0
        %1103 = vmatprep.subr.mxu0 0.0
        %1104 = vmatpush2.xpose.msra.mxu0 0.0
        %1105 = vmatprep.subr.mxu0 0.0
        %1106 = vmatpush2.xpose.msra.mxu0 0.0
        %1107 = vmatprep.subr.mxu0 0.0
        %1108 = vmatpush2.xpose.msra.mxu0 0.0
        %1109 = vmatprep.subr.mxu0 0.0
        %1110 = vmatpush2.xpose.msra.mxu0 0.0
        %1111 = vmatprep.subr.mxu0 0.0
        %1112 = vmatpush2.xpose.msra.mxu0 0.0
        %1113 = vmatprep.subr.mxu0 0.0
        %1114 = vmatpush2.xpose.msra.mxu0 0.0
        %1115 = vmatprep.subr.mxu0 0.0
        %1116 = vmatpush2.xpose.msra.mxu0 0.0
        %1117 = vmatprep.mubr.f32.mxu0 0.0
        %v1118 = vand.u32 %v235, 4294901760
        %1119 = vmatmul.mubr.f32.gmra.mxu0 %v1118
        %v1120 = vpop.f32.mrf.mxu0
        %v1121 = vadd.f32 %v927, %v1120
        %v1122 = vpop.f32.mrf.mxu0
        %1123 = vmatprep.mubr.f32.mxu0 0.0
        %v1124 = vand.u32 %v238, 4294901760
        %1125 = vmatmul.mubr.f32.gmra.mxu0 %v1124
        %v1126 = vpop.f32.mrf.mxu0
        %v1127 = vadd.f32 %v935, %v1126
        %v1128 = vpop.f32.mrf.mxu0
        %1129 = vmatprep.mubr.f32.mxu0 0.0
        %v1130 = vand.u32 %v241, 4294901760
        %1131 = vmatmul.mubr.f32.gmra.mxu0 %v1130
        %v1132 = vpop.f32.mrf.mxu0
        %v1133 = vadd.f32 %v943, %v1132
        %v1134 = vpop.f32.mrf.mxu0
        %1135 = vmatprep.mubr.f32.mxu0 0.0
        %v1136 = vand.u32 %v244, 4294901760
        %1137 = vmatmul.mubr.f32.gmra.mxu0 %v1136
        %v1138 = vpop.f32.mrf.mxu0
        %v1139 = vadd.f32 %v951, %v1138
        %v1140 = vpop.f32.mrf.mxu0
        %1141 = vmatprep.mubr.f32.mxu0 0.0
        %v1142 = vand.u32 %v247, 4294901760
        %1143 = vmatmul.mubr.f32.gmra.mxu0 %v1142
        %v1144 = vpop.f32.mrf.mxu0
        %v1145 = vadd.f32 %v959, %v1144
        %v1146 = vpop.f32.mrf.mxu0
        %1147 = vmatprep.mubr.f32.mxu0 0.0
        %v1148 = vand.u32 %v250, 4294901760
        %1149 = vmatmul.mubr.f32.gmra.mxu0 %v1148
        %v1150 = vpop.f32.mrf.mxu0
        %v1151 = vadd.f32 %v967, %v1150
        %v1152 = vpop.f32.mrf.mxu0
        %1153 = vmatprep.mubr.f32.mxu0 0.0
        %v1154 = vand.u32 %v253, 4294901760
        %1155 = vmatmul.mubr.f32.gmra.mxu0 %v1154
        %v1156 = vpop.f32.mrf.mxu0
        %v1157 = vadd.f32 %v975, %v1156
        %v1158 = vpop.f32.mrf.mxu0
        %1159 = vmatprep.mubr.f32.mxu0 0.0
        %v1160 = vand.u32 %v256, 4294901760
        %1161 = vmatmul.mubr.f32.gmra.mxu0 %v1160
        %v1162 = vpop.f32.mrf.mxu0
        %v1163 = vadd.f32 %v983, %v1162
        %v1164 = vpop.f32.mrf.mxu0
        %1165 = vmatprep.mubr.f32.mxu0 0.0
        %v1166 = vand.u32 %v259, 4294901760
        %1167 = vmatmul.mubr.f32.gmra.mxu0 %v1166
        %v1168 = vpop.f32.mrf.mxu0
        %v1169 = vadd.f32 %v991, %v1168
        %v1170 = vpop.f32.mrf.mxu0
        %1171 = vmatprep.mubr.f32.mxu0 0.0
        %v1172 = vand.u32 %v262, 4294901760
        %1173 = vmatmul.mubr.f32.gmra.mxu0 %v1172
        %v1174 = vpop.f32.mrf.mxu0
        %v1175 = vadd.f32 %v999, %v1174
        %v1176 = vpop.f32.mrf.mxu0
        %1177 = vmatprep.mubr.f32.mxu0 0.0
        %v1178 = vand.u32 %v265, 4294901760
        %1179 = vmatmul.mubr.f32.gmra.mxu0 %v1178
        %v1180 = vpop.f32.mrf.mxu0
        %v1181 = vadd.f32 %v1007, %v1180
        %v1182 = vpop.f32.mrf.mxu0
        %1183 = vmatprep.mubr.f32.mxu0 0.0
        %v1184 = vand.u32 %v268, 4294901760
        %1185 = vmatmul.mubr.f32.gmra.mxu0 %v1184
        %v1186 = vpop.f32.mrf.mxu0
        %v1187 = vadd.f32 %v1015, %v1186
        %v1188 = vpop.f32.mrf.mxu0
        %1189 = vmatprep.mubr.f32.mxu0 0.0
        %v1190 = vand.u32 %v271, 4294901760
        %1191 = vmatmul.mubr.f32.gmra.mxu0 %v1190
        %v1192 = vpop.f32.mrf.mxu0
        %v1193 = vadd.f32 %v1023, %v1192
        %v1194 = vpop.f32.mrf.mxu0
        %1195 = vmatprep.mubr.f32.mxu0 0.0
        %v1196 = vand.u32 %v274, 4294901760
        %1197 = vmatmul.mubr.f32.gmra.mxu0 %v1196
        %v1198 = vpop.f32.mrf.mxu0
        %v1199 = vadd.f32 %v1031, %v1198
        %v1200 = vpop.f32.mrf.mxu0
        %1201 = vmatprep.mubr.f32.mxu0 0.0
        %v1202 = vand.u32 %v277, 4294901760
        %1203 = vmatmul.mubr.f32.gmra.mxu0 %v1202
        %v1204 = vpop.f32.mrf.mxu0
        %v1205 = vadd.f32 %v1039, %v1204
        %v1206 = vpop.f32.mrf.mxu0
        %1207 = vmatprep.mubr.f32.mxu0 0.0
        %v1208 = vand.u32 %v280, 4294901760
        %1209 = vmatmul.mubr.f32.gmra.mxu0 %v1208
        %v1210 = vpop.f32.mrf.mxu0
        %v1211 = vadd.f32 %v1047, %v1210
        %v1212 = vpop.f32.mrf.mxu0
        %1213 = vdwg.mxu0
        %1214 = vmatprep.subr.mxu0 0.0
        %1215 = vmatpush1.xpose.msra.mxu0 0.0
        %1216 = vmatprep.subr.mxu0 0.0
        %1217 = vmatpush1.xpose.msra.mxu0 0.0
        %1218 = vmatprep.subr.mxu0 0.0
        %1219 = vmatpush1.xpose.msra.mxu0 0.0
        %1220 = vmatprep.subr.mxu0 0.0
        %1221 = vmatpush1.xpose.msra.mxu0 0.0
        %1222 = vmatprep.subr.mxu0 0.0
        %1223 = vmatpush1.xpose.msra.mxu0 0.0
        %1224 = vmatprep.subr.mxu0 0.0
        %1225 = vmatpush1.xpose.msra.mxu0 0.0
        %1226 = vmatprep.subr.mxu0 0.0
        %1227 = vmatpush1.xpose.msra.mxu0 0.0
        %1228 = vmatprep.subr.mxu0 0.0
        %1229 = vmatpush1.xpose.msra.mxu0 0.0
        %1230 = vmatprep.subr.mxu0 0.0
        %1231 = vmatpush1.xpose.msra.mxu0 0.0
        %1232 = vmatprep.subr.mxu0 0.0
        %1233 = vmatpush1.xpose.msra.mxu0 0.0
        %1234 = vmatprep.subr.mxu0 0.0
        %1235 = vmatpush1.xpose.msra.mxu0 0.0
        %1236 = vmatprep.subr.mxu0 0.0
        %1237 = vmatpush1.xpose.msra.mxu0 0.0
        %1238 = vmatprep.subr.mxu0 0.0
        %1239 = vmatpush1.xpose.msra.mxu0 0.0
        %1240 = vmatprep.subr.mxu0 0.0
        %1241 = vmatpush1.xpose.msra.mxu0 0.0
        %1242 = vmatprep.subr.mxu0 0.0
        %1243 = vmatpush1.xpose.msra.mxu0 0.0
        %1244 = vmatprep.subr.mxu0 0.0
        %v1245 = vand.u32 %v283, 4294901760
        %1246 = vmatpush1.xpose.msra.mxu0 %v1245
        %1247 = vmatprep.subr.mxu0 0.0
        %1248 = vmatpush2.xpose.msra.mxu0 0.0
        %1249 = vmatprep.subr.mxu0 0.0
        %1250 = vmatpush2.xpose.msra.mxu0 0.0
        %1251 = vmatprep.subr.mxu0 0.0
        %1252 = vmatpush2.xpose.msra.mxu0 0.0
        %1253 = vmatprep.subr.mxu0 0.0
        %1254 = vmatpush2.xpose.msra.mxu0 0.0
        %1255 = vmatprep.subr.mxu0 0.0
        %1256 = vmatpush2.xpose.msra.mxu0 0.0
        %1257 = vmatprep.subr.mxu0 0.0
        %1258 = vmatpush2.xpose.msra.mxu0 0.0
        %1259 = vmatprep.subr.mxu0 0.0
        %1260 = vmatpush2.xpose.msra.mxu0 0.0
        %1261 = vmatprep.subr.mxu0 0.0
        %1262 = vmatpush2.xpose.msra.mxu0 0.0
        %1263 = vmatprep.subr.mxu0 0.0
        %1264 = vmatpush2.xpose.msra.mxu0 0.0
        %1265 = vmatprep.subr.mxu0 0.0
        %1266 = vmatpush2.xpose.msra.mxu0 0.0
        %1267 = vmatprep.subr.mxu0 0.0
        %1268 = vmatpush2.xpose.msra.mxu0 0.0
        %1269 = vmatprep.subr.mxu0 0.0
        %1270 = vmatpush2.xpose.msra.mxu0 0.0
        %1271 = vmatprep.subr.mxu0 0.0
        %1272 = vmatpush2.xpose.msra.mxu0 0.0
        %1273 = vmatprep.subr.mxu0 0.0
        %1274 = vmatpush2.xpose.msra.mxu0 0.0
        %1275 = vmatprep.subr.mxu0 0.0
        %1276 = vmatpush2.xpose.msra.mxu0 0.0
        %1277 = vmatprep.subr.mxu0 0.0
        %1278 = vmatpush2.xpose.msra.mxu0 0.0
        %1279 = vmatprep.mubr.f32.mxu0 0.0
        %v1280 = vand.u32 %v235, 4294901760
        %1281 = vmatmul.mubr.f32.gmra.mxu0 %v1280
        %v1282 = vpop.f32.mrf.mxu0
        %v1283 = vadd.f32 %v1121, %v1282
        %v1284 = vpop.f32.mrf.mxu0
        %1285 = vmatprep.mubr.f32.mxu0 0.0
        %v1286 = vand.u32 %v238, 4294901760
        %1287 = vmatmul.mubr.f32.gmra.mxu0 %v1286
        %v1288 = vpop.f32.mrf.mxu0
        %v1289 = vadd.f32 %v1127, %v1288
        %v1290 = vpop.f32.mrf.mxu0
        %1291 = vmatprep.mubr.f32.mxu0 0.0
        %v1292 = vand.u32 %v241, 4294901760
        %1293 = vmatmul.mubr.f32.gmra.mxu0 %v1292
        %v1294 = vpop.f32.mrf.mxu0
        %v1295 = vadd.f32 %v1133, %v1294
        %v1296 = vpop.f32.mrf.mxu0
        %1297 = vmatprep.mubr.f32.mxu0 0.0
        %v1298 = vand.u32 %v244, 4294901760
        %1299 = vmatmul.mubr.f32.gmra.mxu0 %v1298
        %v1300 = vpop.f32.mrf.mxu0
        %v1301 = vadd.f32 %v1139, %v1300
        %v1302 = vpop.f32.mrf.mxu0
        %1303 = vmatprep.mubr.f32.mxu0 0.0
        %v1304 = vand.u32 %v247, 4294901760
        %1305 = vmatmul.mubr.f32.gmra.mxu0 %v1304
        %v1306 = vpop.f32.mrf.mxu0
        %v1307 = vadd.f32 %v1145, %v1306
        %v1308 = vpop.f32.mrf.mxu0
        %1309 = vmatprep.mubr.f32.mxu0 0.0
        %v1310 = vand.u32 %v250, 4294901760
        %1311 = vmatmul.mubr.f32.gmra.mxu0 %v1310
        %v1312 = vpop.f32.mrf.mxu0
        %v1313 = vadd.f32 %v1151, %v1312
        %v1314 = vpop.f32.mrf.mxu0
        %1315 = vmatprep.mubr.f32.mxu0 0.0
        %v1316 = vand.u32 %v253, 4294901760
        %1317 = vmatmul.mubr.f32.gmra.mxu0 %v1316
        %v1318 = vpop.f32.mrf.mxu0
        %v1319 = vadd.f32 %v1157, %v1318
        %v1320 = vpop.f32.mrf.mxu0
        %1321 = vmatprep.mubr.f32.mxu0 0.0
        %v1322 = vand.u32 %v256, 4294901760
        %1323 = vmatmul.mubr.f32.gmra.mxu0 %v1322
        %v1324 = vpop.f32.mrf.mxu0
        %v1325 = vadd.f32 %v1163, %v1324
        %v1326 = vpop.f32.mrf.mxu0
        %1327 = vmatprep.mubr.f32.mxu0 0.0
        %v1328 = vand.u32 %v259, 4294901760
        %1329 = vmatmul.mubr.f32.gmra.mxu0 %v1328
        %v1330 = vpop.f32.mrf.mxu0
        %v1331 = vadd.f32 %v1169, %v1330
        %v1332 = vpop.f32.mrf.mxu0
        %1333 = vmatprep.mubr.f32.mxu0 0.0
        %v1334 = vand.u32 %v262, 4294901760
        %1335 = vmatmul.mubr.f32.gmra.mxu0 %v1334
        %v1336 = vpop.f32.mrf.mxu0
        %v1337 = vadd.f32 %v1175, %v1336
        %v1338 = vpop.f32.mrf.mxu0
        %1339 = vmatprep.mubr.f32.mxu0 0.0
        %v1340 = vand.u32 %v265, 4294901760
        %1341 = vmatmul.mubr.f32.gmra.mxu0 %v1340
        %v1342 = vpop.f32.mrf.mxu0
        %v1343 = vadd.f32 %v1181, %v1342
        %v1344 = vpop.f32.mrf.mxu0
        %1345 = vmatprep.mubr.f32.mxu0 0.0
        %v1346 = vand.u32 %v268, 4294901760
        %1347 = vmatmul.mubr.f32.gmra.mxu0 %v1346
        %v1348 = vpop.f32.mrf.mxu0
        %v1349 = vadd.f32 %v1187, %v1348
        %v1350 = vpop.f32.mrf.mxu0
        %1351 = vmatprep.mubr.f32.mxu0 0.0
        %v1352 = vand.u32 %v271, 4294901760
        %1353 = vmatmul.mubr.f32.gmra.mxu0 %v1352
        %v1354 = vpop.f32.mrf.mxu0
        %v1355 = vadd.f32 %v1193, %v1354
        %v1356 = vpop.f32.mrf.mxu0
        %1357 = vmatprep.mubr.f32.mxu0 0.0
        %v1358 = vand.u32 %v274, 4294901760
        %1359 = vmatmul.mubr.f32.gmra.mxu0 %v1358
        %v1360 = vpop.f32.mrf.mxu0
        %v1361 = vadd.f32 %v1199, %v1360
        %v1362 = vpop.f32.mrf.mxu0
        %1363 = vmatprep.mubr.f32.mxu0 0.0
        %v1364 = vand.u32 %v277, 4294901760
        %1365 = vmatmul.mubr.f32.gmra.mxu0 %v1364
        %v1366 = vpop.f32.mrf.mxu0
        %v1367 = vadd.f32 %v1205, %v1366
        %v1368 = vpop.f32.mrf.mxu0
        %1369 = vmatprep.mubr.f32.mxu0 0.0
        %v1370 = vand.u32 %v280, 4294901760
        %1371 = vmatmul.mubr.f32.gmra.mxu0 %v1370
        %v1372 = vpop.f32.mrf.mxu0
        %v1373 = vadd.f32 %v1211, %v1372
        %v1374 = vpop.f32.mrf.mxu0
        %1375 = vdwg.mxu0
        %v1377 = vsel %vm233, %v231, 0
        %1379 = vmatprep.subr.mxu0 0.0
        %1380 = vmatpush1.xpose.msra.mxu0 0.0
        %1381 = vmatprep.subr.mxu0 0.0
        %1382 = vmatpush1.xpose.msra.mxu0 0.0
        %1383 = vmatprep.subr.mxu0 0.0
        %1384 = vmatpush1.xpose.msra.mxu0 0.0
        %1385 = vmatprep.subr.mxu0 0.0
        %1386 = vmatpush1.xpose.msra.mxu0 0.0
        %1387 = vmatprep.subr.mxu0 0.0
        %1388 = vmatpush1.xpose.msra.mxu0 0.0
        %1389 = vmatprep.subr.mxu0 0.0
        %1390 = vmatpush1.xpose.msra.mxu0 0.0
        %1391 = vmatprep.subr.mxu0 0.0
        %1392 = vmatpush1.xpose.msra.mxu0 0.0
        %1393 = vmatprep.subr.mxu0 0.0
        %1394 = vmatpush1.xpose.msra.mxu0 0.0
        %1395 = vmatprep.subr.mxu0 0.0
        %1396 = vmatpush1.xpose.msra.mxu0 0.0
        %1397 = vmatprep.subr.mxu0 0.0
        %1398 = vmatpush1.xpose.msra.mxu0 0.0
        %1399 = vmatprep.subr.mxu0 0.0
        %1400 = vmatpush1.xpose.msra.mxu0 0.0
        %1401 = vmatprep.subr.mxu0 0.0
        %1402 = vmatpush1.xpose.msra.mxu0 0.0
        %1403 = vmatprep.subr.mxu0 0.0
        %1404 = vmatpush1.xpose.msra.mxu0 0.0
        %1405 = vmatprep.subr.mxu0 0.0
        %1406 = vmatpush1.xpose.msra.mxu0 0.0
        %1407 = vmatprep.subr.mxu0 0.0
        %1408 = vmatpush1.xpose.msra.mxu0 0.0
        %1409 = vmatprep.subr.mxu0 0.0
        %v1410 = vand.u32 %v283, 4294901760
        %1411 = vmatpush1.xpose.msra.mxu0 %v1410
        %1412 = vmatprep.subr.mxu0 0.0
        %1413 = vmatpush2.xpose.msra.mxu0 0.0
        %1414 = vmatprep.subr.mxu0 0.0
        %1415 = vmatpush2.xpose.msra.mxu0 0.0
        %1416 = vmatprep.subr.mxu0 0.0
        %1417 = vmatpush2.xpose.msra.mxu0 0.0
        %1418 = vmatprep.subr.mxu0 0.0
        %1419 = vmatpush2.xpose.msra.mxu0 0.0
        %1420 = vmatprep.subr.mxu0 0.0
        %1421 = vmatpush2.xpose.msra.mxu0 0.0
        %1422 = vmatprep.subr.mxu0 0.0
        %1423 = vmatpush2.xpose.msra.mxu0 0.0
        %1424 = vmatprep.subr.mxu0 0.0
        %1425 = vmatpush2.xpose.msra.mxu0 0.0
        %1426 = vmatprep.subr.mxu0 0.0
        %1427 = vmatpush2.xpose.msra.mxu0 0.0
        %1428 = vmatprep.subr.mxu0 0.0
        %1429 = vmatpush2.xpose.msra.mxu0 0.0
        %1430 = vmatprep.subr.mxu0 0.0
        %1431 = vmatpush2.xpose.msra.mxu0 0.0
        %1432 = vmatprep.subr.mxu0 0.0
        %1433 = vmatpush2.xpose.msra.mxu0 0.0
        %1434 = vmatprep.subr.mxu0 0.0
        %1435 = vmatpush2.xpose.msra.mxu0 0.0
        %1436 = vmatprep.subr.mxu0 0.0
        %1437 = vmatpush2.xpose.msra.mxu0 0.0
        %1438 = vmatprep.subr.mxu0 0.0
        %1439 = vmatpush2.xpose.msra.mxu0 0.0
        %1440 = vmatprep.subr.mxu0 0.0
        %1441 = vmatpush2.xpose.msra.mxu0 0.0
        %1442 = vmatprep.subr.mxu0 0.0
        %1443 = vmatpush2.xpose.msra.mxu0 0.0
        %1444 = vmatprep.mubr.f32.mxu0 0.0
        %v1445 = vand.u32 %v1377, 4294901760
        %v1446 = vsub.f32 %v1377, %v1445
        %v1447 = vand.u32 %v1446, 4294901760
        %v1448 = vsub.f32 %v1446, %v1447
        %v1449 = vand.u32 %v1448, 4294901760
        %1450 = vmatmul.mubr.f32.gmra.mxu0 %v1449
        %v1451 = vpop.f32.mrf.mxu0
        %v1452 = vadd.f32 0.0, %v1451
        %v1453 = vpop.f32.mrf.mxu0
        %1454 = vdwg.mxu0
        %1455 = vmatprep.subr.mxu0 0.0
        %1456 = vmatpush1.xpose.msra.mxu0 0.0
        %1457 = vmatprep.subr.mxu0 0.0
        %1458 = vmatpush1.xpose.msra.mxu0 0.0
        %1459 = vmatprep.subr.mxu0 0.0
        %1460 = vmatpush1.xpose.msra.mxu0 0.0
        %1461 = vmatprep.subr.mxu0 0.0
        %1462 = vmatpush1.xpose.msra.mxu0 0.0
        %1463 = vmatprep.subr.mxu0 0.0
        %1464 = vmatpush1.xpose.msra.mxu0 0.0
        %1465 = vmatprep.subr.mxu0 0.0
        %1466 = vmatpush1.xpose.msra.mxu0 0.0
        %1467 = vmatprep.subr.mxu0 0.0
        %1468 = vmatpush1.xpose.msra.mxu0 0.0
        %1469 = vmatprep.subr.mxu0 0.0
        %1470 = vmatpush1.xpose.msra.mxu0 0.0
        %1471 = vmatprep.subr.mxu0 0.0
        %1472 = vmatpush1.xpose.msra.mxu0 0.0
        %1473 = vmatprep.subr.mxu0 0.0
        %1474 = vmatpush1.xpose.msra.mxu0 0.0
        %1475 = vmatprep.subr.mxu0 0.0
        %1476 = vmatpush1.xpose.msra.mxu0 0.0
        %1477 = vmatprep.subr.mxu0 0.0
        %1478 = vmatpush1.xpose.msra.mxu0 0.0
        %1479 = vmatprep.subr.mxu0 0.0
        %1480 = vmatpush1.xpose.msra.mxu0 0.0
        %1481 = vmatprep.subr.mxu0 0.0
        %1482 = vmatpush1.xpose.msra.mxu0 0.0
        %1483 = vmatprep.subr.mxu0 0.0
        %1484 = vmatpush1.xpose.msra.mxu0 0.0
        %1485 = vmatprep.subr.mxu0 0.0
        %v1486 = vand.u32 %v283, 4294901760
        %v1487 = vsub.f32 %v283, %v1486
        %v1488 = vand.u32 %v1487, 4294901760
        %v1489 = vsub.f32 %v1487, %v1488
        %v1490 = vand.u32 %v1489, 4294901760
        %1491 = vmatpush1.xpose.msra.mxu0 %v1490
        %1492 = vmatprep.subr.mxu0 0.0
        %1493 = vmatpush2.xpose.msra.mxu0 0.0
        %1494 = vmatprep.subr.mxu0 0.0
        %1495 = vmatpush2.xpose.msra.mxu0 0.0
        %1496 = vmatprep.subr.mxu0 0.0
        %1497 = vmatpush2.xpose.msra.mxu0 0.0
        %1498 = vmatprep.subr.mxu0 0.0
        %1499 = vmatpush2.xpose.msra.mxu0 0.0
        %1500 = vmatprep.subr.mxu0 0.0
        %1501 = vmatpush2.xpose.msra.mxu0 0.0
        %1502 = vmatprep.subr.mxu0 0.0
        %1503 = vmatpush2.xpose.msra.mxu0 0.0
        %1504 = vmatprep.subr.mxu0 0.0
        %1505 = vmatpush2.xpose.msra.mxu0 0.0
        %1506 = vmatprep.subr.mxu0 0.0
        %1507 = vmatpush2.xpose.msra.mxu0 0.0
        %1508 = vmatprep.subr.mxu0 0.0
        %1509 = vmatpush2.xpose.msra.mxu0 0.0
        %1510 = vmatprep.subr.mxu0 0.0
        %1511 = vmatpush2.xpose.msra.mxu0 0.0
        %1512 = vmatprep.subr.mxu0 0.0
        %1513 = vmatpush2.xpose.msra.mxu0 0.0
        %1514 = vmatprep.subr.mxu0 0.0
        %1515 = vmatpush2.xpose.msra.mxu0 0.0
        %1516 = vmatprep.subr.mxu0 0.0
        %1517 = vmatpush2.xpose.msra.mxu0 0.0
        %1518 = vmatprep.subr.mxu0 0.0
        %1519 = vmatpush2.xpose.msra.mxu0 0.0
        %1520 = vmatprep.subr.mxu0 0.0
        %1521 = vmatpush2.xpose.msra.mxu0 0.0
        %1522 = vmatprep.subr.mxu0 0.0
        %1523 = vmatpush2.xpose.msra.mxu0 0.0
        %1524 = vmatprep.mubr.f32.mxu0 0.0
        %v1525 = vand.u32 %v1377, 4294901760
        %1526 = vmatmul.mubr.f32.gmra.mxu0 %v1525
        %v1527 = vpop.f32.mrf.mxu0
        %v1528 = vadd.f32 %v1452, %v1527
        %v1529 = vpop.f32.mrf.mxu0
        %1530 = vdwg.mxu0
        %1531 = vmatprep.subr.mxu0 0.0
        %1532 = vmatpush1.xpose.msra.mxu0 0.0
        %1533 = vmatprep.subr.mxu0 0.0
        %1534 = vmatpush1.xpose.msra.mxu0 0.0
        %1535 = vmatprep.subr.mxu0 0.0
        %1536 = vmatpush1.xpose.msra.mxu0 0.0
        %1537 = vmatprep.subr.mxu0 0.0
        %1538 = vmatpush1.xpose.msra.mxu0 0.0
        %1539 = vmatprep.subr.mxu0 0.0
        %1540 = vmatpush1.xpose.msra.mxu0 0.0
        %1541 = vmatprep.subr.mxu0 0.0
        %1542 = vmatpush1.xpose.msra.mxu0 0.0
        %1543 = vmatprep.subr.mxu0 0.0
        %1544 = vmatpush1.xpose.msra.mxu0 0.0
        %1545 = vmatprep.subr.mxu0 0.0
        %1546 = vmatpush1.xpose.msra.mxu0 0.0
        %1547 = vmatprep.subr.mxu0 0.0
        %1548 = vmatpush1.xpose.msra.mxu0 0.0
        %1549 = vmatprep.subr.mxu0 0.0
        %1550 = vmatpush1.xpose.msra.mxu0 0.0
        %1551 = vmatprep.subr.mxu0 0.0
        %1552 = vmatpush1.xpose.msra.mxu0 0.0
        %1553 = vmatprep.subr.mxu0 0.0
        %1554 = vmatpush1.xpose.msra.mxu0 0.0
        %1555 = vmatprep.subr.mxu0 0.0
        %1556 = vmatpush1.xpose.msra.mxu0 0.0
        %1557 = vmatprep.subr.mxu0 0.0
        %1558 = vmatpush1.xpose.msra.mxu0 0.0
        %1559 = vmatprep.subr.mxu0 0.0
        %1560 = vmatpush1.xpose.msra.mxu0 0.0
        %1561 = vmatprep.subr.mxu0 0.0
        %v1562 = vand.u32 %v283, 4294901760
        %v1563 = vsub.f32 %v283, %v1562
        %1564 = vmatpush1.xpose.msra.mxu0 %v1563
        %1565 = vmatprep.subr.mxu0 0.0
        %1566 = vmatpush2.xpose.msra.mxu0 0.0
        %1567 = vmatprep.subr.mxu0 0.0
        %1568 = vmatpush2.xpose.msra.mxu0 0.0
        %1569 = vmatprep.subr.mxu0 0.0
        %1570 = vmatpush2.xpose.msra.mxu0 0.0
        %1571 = vmatprep.subr.mxu0 0.0
        %1572 = vmatpush2.xpose.msra.mxu0 0.0
        %1573 = vmatprep.subr.mxu0 0.0
        %1574 = vmatpush2.xpose.msra.mxu0 0.0
        %1575 = vmatprep.subr.mxu0 0.0
        %1576 = vmatpush2.xpose.msra.mxu0 0.0
        %1577 = vmatprep.subr.mxu0 0.0
        %1578 = vmatpush2.xpose.msra.mxu0 0.0
        %1579 = vmatprep.subr.mxu0 0.0
        %1580 = vmatpush2.xpose.msra.mxu0 0.0
        %1581 = vmatprep.subr.mxu0 0.0
        %1582 = vmatpush2.xpose.msra.mxu0 0.0
        %1583 = vmatprep.subr.mxu0 0.0
        %1584 = vmatpush2.xpose.msra.mxu0 0.0
        %1585 = vmatprep.subr.mxu0 0.0
        %1586 = vmatpush2.xpose.msra.mxu0 0.0
        %1587 = vmatprep.subr.mxu0 0.0
        %1588 = vmatpush2.xpose.msra.mxu0 0.0
        %1589 = vmatprep.subr.mxu0 0.0
        %1590 = vmatpush2.xpose.msra.mxu0 0.0
        %1591 = vmatprep.subr.mxu0 0.0
        %1592 = vmatpush2.xpose.msra.mxu0 0.0
        %1593 = vmatprep.subr.mxu0 0.0
        %1594 = vmatpush2.xpose.msra.mxu0 0.0
        %1595 = vmatprep.subr.mxu0 0.0
        %1596 = vmatpush2.xpose.msra.mxu0 0.0
        %1597 = vmatprep.mubr.f32.mxu0 0.0
        %v1598 = vand.u32 %v1377, 4294901760
        %v1599 = vsub.f32 %v1377, %v1598
        %1600 = vmatmul.mubr.f32.gmra.mxu0 %v1599
        %v1601 = vpop.f32.mrf.mxu0
        %v1602 = vadd.f32 %v1528, %v1601
        %v1603 = vpop.f32.mrf.mxu0
        %1604 = vdwg.mxu0
        %1605 = vmatprep.subr.mxu0 0.0
        %1606 = vmatpush1.xpose.msra.mxu0 0.0
        %1607 = vmatprep.subr.mxu0 0.0
        %1608 = vmatpush1.xpose.msra.mxu0 0.0
        %1609 = vmatprep.subr.mxu0 0.0
        %1610 = vmatpush1.xpose.msra.mxu0 0.0
        %1611 = vmatprep.subr.mxu0 0.0
        %1612 = vmatpush1.xpose.msra.mxu0 0.0
        %1613 = vmatprep.subr.mxu0 0.0
        %1614 = vmatpush1.xpose.msra.mxu0 0.0
        %1615 = vmatprep.subr.mxu0 0.0
        %1616 = vmatpush1.xpose.msra.mxu0 0.0
        %1617 = vmatprep.subr.mxu0 0.0
        %1618 = vmatpush1.xpose.msra.mxu0 0.0
        %1619 = vmatprep.subr.mxu0 0.0
        %1620 = vmatpush1.xpose.msra.mxu0 0.0
        %1621 = vmatprep.subr.mxu0 0.0
        %1622 = vmatpush1.xpose.msra.mxu0 0.0
        %1623 = vmatprep.subr.mxu0 0.0
        %1624 = vmatpush1.xpose.msra.mxu0 0.0
        %1625 = vmatprep.subr.mxu0 0.0
        %1626 = vmatpush1.xpose.msra.mxu0 0.0
        %1627 = vmatprep.subr.mxu0 0.0
        %1628 = vmatpush1.xpose.msra.mxu0 0.0
        %1629 = vmatprep.subr.mxu0 0.0
        %1630 = vmatpush1.xpose.msra.mxu0 0.0
        %1631 = vmatprep.subr.mxu0 0.0
        %1632 = vmatpush1.xpose.msra.mxu0 0.0
        %1633 = vmatprep.subr.mxu0 0.0
        %1634 = vmatpush1.xpose.msra.mxu0 0.0
        %1635 = vmatprep.subr.mxu0 0.0
        %v1636 = vand.u32 %v283, 4294901760
        %1637 = vmatpush1.xpose.msra.mxu0 %v1636
        %1638 = vmatprep.subr.mxu0 0.0
        %1639 = vmatpush2.xpose.msra.mxu0 0.0
        %1640 = vmatprep.subr.mxu0 0.0
        %1641 = vmatpush2.xpose.msra.mxu0 0.0
        %1642 = vmatprep.subr.mxu0 0.0
        %1643 = vmatpush2.xpose.msra.mxu0 0.0
        %1644 = vmatprep.subr.mxu0 0.0
        %1645 = vmatpush2.xpose.msra.mxu0 0.0
        %1646 = vmatprep.subr.mxu0 0.0
        %1647 = vmatpush2.xpose.msra.mxu0 0.0
        %1648 = vmatprep.subr.mxu0 0.0
        %1649 = vmatpush2.xpose.msra.mxu0 0.0
        %1650 = vmatprep.subr.mxu0 0.0
        %1651 = vmatpush2.xpose.msra.mxu0 0.0
        %1652 = vmatprep.subr.mxu0 0.0
        %1653 = vmatpush2.xpose.msra.mxu0 0.0
        %1654 = vmatprep.subr.mxu0 0.0
        %1655 = vmatpush2.xpose.msra.mxu0 0.0
        %1656 = vmatprep.subr.mxu0 0.0
        %1657 = vmatpush2.xpose.msra.mxu0 0.0
        %1658 = vmatprep.subr.mxu0 0.0
        %1659 = vmatpush2.xpose.msra.mxu0 0.0
        %1660 = vmatprep.subr.mxu0 0.0
        %1661 = vmatpush2.xpose.msra.mxu0 0.0
        %1662 = vmatprep.subr.mxu0 0.0
        %1663 = vmatpush2.xpose.msra.mxu0 0.0
        %1664 = vmatprep.subr.mxu0 0.0
        %1665 = vmatpush2.xpose.msra.mxu0 0.0
        %1666 = vmatprep.subr.mxu0 0.0
        %1667 = vmatpush2.xpose.msra.mxu0 0.0
        %1668 = vmatprep.subr.mxu0 0.0
        %1669 = vmatpush2.xpose.msra.mxu0 0.0
        %1670 = vmatprep.mubr.f32.mxu0 0.0
        %v1671 = vand.u32 %v1377, 4294901760
        %v1672 = vsub.f32 %v1377, %v1671
        %v1673 = vand.u32 %v1672, 4294901760
        %1674 = vmatmul.mubr.f32.gmra.mxu0 %v1673
        %v1675 = vpop.f32.mrf.mxu0
        %v1676 = vadd.f32 %v1602, %v1675
        %v1677 = vpop.f32.mrf.mxu0
        %1678 = vdwg.mxu0
        %1679 = vmatprep.subr.mxu0 0.0
        %1680 = vmatpush1.xpose.msra.mxu0 0.0
        %1681 = vmatprep.subr.mxu0 0.0
        %1682 = vmatpush1.xpose.msra.mxu0 0.0
        %1683 = vmatprep.subr.mxu0 0.0
        %1684 = vmatpush1.xpose.msra.mxu0 0.0
        %1685 = vmatprep.subr.mxu0 0.0
        %1686 = vmatpush1.xpose.msra.mxu0 0.0
        %1687 = vmatprep.subr.mxu0 0.0
        %1688 = vmatpush1.xpose.msra.mxu0 0.0
        %1689 = vmatprep.subr.mxu0 0.0
        %1690 = vmatpush1.xpose.msra.mxu0 0.0
        %1691 = vmatprep.subr.mxu0 0.0
        %1692 = vmatpush1.xpose.msra.mxu0 0.0
        %1693 = vmatprep.subr.mxu0 0.0
        %1694 = vmatpush1.xpose.msra.mxu0 0.0
        %1695 = vmatprep.subr.mxu0 0.0
        %1696 = vmatpush1.xpose.msra.mxu0 0.0
        %1697 = vmatprep.subr.mxu0 0.0
        %1698 = vmatpush1.xpose.msra.mxu0 0.0
        %1699 = vmatprep.subr.mxu0 0.0
        %1700 = vmatpush1.xpose.msra.mxu0 0.0
        %1701 = vmatprep.subr.mxu0 0.0
        %1702 = vmatpush1.xpose.msra.mxu0 0.0
        %1703 = vmatprep.subr.mxu0 0.0
        %1704 = vmatpush1.xpose.msra.mxu0 0.0
        %1705 = vmatprep.subr.mxu0 0.0
        %1706 = vmatpush1.xpose.msra.mxu0 0.0
        %1707 = vmatprep.subr.mxu0 0.0
        %1708 = vmatpush1.xpose.msra.mxu0 0.0
        %1709 = vmatprep.subr.mxu0 0.0
        %v1710 = vand.u32 %v283, 4294901760
        %v1711 = vsub.f32 %v283, %v1710
        %v1712 = vand.u32 %v1711, 4294901760
        %1713 = vmatpush1.xpose.msra.mxu0 %v1712
        %1714 = vmatprep.subr.mxu0 0.0
        %1715 = vmatpush2.xpose.msra.mxu0 0.0
        %1716 = vmatprep.subr.mxu0 0.0
        %1717 = vmatpush2.xpose.msra.mxu0 0.0
        %1718 = vmatprep.subr.mxu0 0.0
        %1719 = vmatpush2.xpose.msra.mxu0 0.0
        %1720 = vmatprep.subr.mxu0 0.0
        %1721 = vmatpush2.xpose.msra.mxu0 0.0
        %1722 = vmatprep.subr.mxu0 0.0
        %1723 = vmatpush2.xpose.msra.mxu0 0.0
        %1724 = vmatprep.subr.mxu0 0.0
        %1725 = vmatpush2.xpose.msra.mxu0 0.0
        %1726 = vmatprep.subr.mxu0 0.0
        %1727 = vmatpush2.xpose.msra.mxu0 0.0
        %1728 = vmatprep.subr.mxu0 0.0
        %1729 = vmatpush2.xpose.msra.mxu0 0.0
        %1730 = vmatprep.subr.mxu0 0.0
        %1731 = vmatpush2.xpose.msra.mxu0 0.0
        %1732 = vmatprep.subr.mxu0 0.0
        %1733 = vmatpush2.xpose.msra.mxu0 0.0
        %1734 = vmatprep.subr.mxu0 0.0
        %1735 = vmatpush2.xpose.msra.mxu0 0.0
        %1736 = vmatprep.subr.mxu0 0.0
        %1737 = vmatpush2.xpose.msra.mxu0 0.0
        %1738 = vmatprep.subr.mxu0 0.0
        %1739 = vmatpush2.xpose.msra.mxu0 0.0
        %1740 = vmatprep.subr.mxu0 0.0
        %1741 = vmatpush2.xpose.msra.mxu0 0.0
        %1742 = vmatprep.subr.mxu0 0.0
        %1743 = vmatpush2.xpose.msra.mxu0 0.0
        %1744 = vmatprep.subr.mxu0 0.0
        %1745 = vmatpush2.xpose.msra.mxu0 0.0
        %1746 = vmatprep.mubr.f32.mxu0 0.0
        %v1747 = vand.u32 %v1377, 4294901760
        %1748 = vmatmul.mubr.f32.gmra.mxu0 %v1747
        %v1749 = vpop.f32.mrf.mxu0
        %v1750 = vadd.f32 %v1676, %v1749
        %v1751 = vpop.f32.mrf.mxu0
        %1752 = vdwg.mxu0
        %1753 = vmatprep.subr.mxu0 0.0
        %1754 = vmatpush1.xpose.msra.mxu0 0.0
        %1755 = vmatprep.subr.mxu0 0.0
        %1756 = vmatpush1.xpose.msra.mxu0 0.0
        %1757 = vmatprep.subr.mxu0 0.0
        %1758 = vmatpush1.xpose.msra.mxu0 0.0
        %1759 = vmatprep.subr.mxu0 0.0
        %1760 = vmatpush1.xpose.msra.mxu0 0.0
        %1761 = vmatprep.subr.mxu0 0.0
        %1762 = vmatpush1.xpose.msra.mxu0 0.0
        %1763 = vmatprep.subr.mxu0 0.0
        %1764 = vmatpush1.xpose.msra.mxu0 0.0
        %1765 = vmatprep.subr.mxu0 0.0
        %1766 = vmatpush1.xpose.msra.mxu0 0.0
        %1767 = vmatprep.subr.mxu0 0.0
        %1768 = vmatpush1.xpose.msra.mxu0 0.0
        %1769 = vmatprep.subr.mxu0 0.0
        %1770 = vmatpush1.xpose.msra.mxu0 0.0
        %1771 = vmatprep.subr.mxu0 0.0
        %1772 = vmatpush1.xpose.msra.mxu0 0.0
        %1773 = vmatprep.subr.mxu0 0.0
        %1774 = vmatpush1.xpose.msra.mxu0 0.0
        %1775 = vmatprep.subr.mxu0 0.0
        %1776 = vmatpush1.xpose.msra.mxu0 0.0
        %1777 = vmatprep.subr.mxu0 0.0
        %1778 = vmatpush1.xpose.msra.mxu0 0.0
        %1779 = vmatprep.subr.mxu0 0.0
        %1780 = vmatpush1.xpose.msra.mxu0 0.0
        %1781 = vmatprep.subr.mxu0 0.0
        %1782 = vmatpush1.xpose.msra.mxu0 0.0
        %1783 = vmatprep.subr.mxu0 0.0
        %v1784 = vand.u32 %v283, 4294901760
        %1785 = vmatpush1.xpose.msra.mxu0 %v1784
        %1786 = vmatprep.subr.mxu0 0.0
        %1787 = vmatpush2.xpose.msra.mxu0 0.0
        %1788 = vmatprep.subr.mxu0 0.0
        %1789 = vmatpush2.xpose.msra.mxu0 0.0
        %1790 = vmatprep.subr.mxu0 0.0
        %1791 = vmatpush2.xpose.msra.mxu0 0.0
        %1792 = vmatprep.subr.mxu0 0.0
        %1793 = vmatpush2.xpose.msra.mxu0 0.0
        %1794 = vmatprep.subr.mxu0 0.0
        %1795 = vmatpush2.xpose.msra.mxu0 0.0
        %1796 = vmatprep.subr.mxu0 0.0
        %1797 = vmatpush2.xpose.msra.mxu0 0.0
        %1798 = vmatprep.subr.mxu0 0.0
        %1799 = vmatpush2.xpose.msra.mxu0 0.0
        %1800 = vmatprep.subr.mxu0 0.0
        %1801 = vmatpush2.xpose.msra.mxu0 0.0
        %1802 = vmatprep.subr.mxu0 0.0
        %1803 = vmatpush2.xpose.msra.mxu0 0.0
        %1804 = vmatprep.subr.mxu0 0.0
        %1805 = vmatpush2.xpose.msra.mxu0 0.0
        %1806 = vmatprep.subr.mxu0 0.0
        %1807 = vmatpush2.xpose.msra.mxu0 0.0
        %1808 = vmatprep.subr.mxu0 0.0
        %1809 = vmatpush2.xpose.msra.mxu0 0.0
        %1810 = vmatprep.subr.mxu0 0.0
        %1811 = vmatpush2.xpose.msra.mxu0 0.0
        %1812 = vmatprep.subr.mxu0 0.0
        %1813 = vmatpush2.xpose.msra.mxu0 0.0
        %1814 = vmatprep.subr.mxu0 0.0
        %1815 = vmatpush2.xpose.msra.mxu0 0.0
        %1816 = vmatprep.subr.mxu0 0.0
        %1817 = vmatpush2.xpose.msra.mxu0 0.0
        %1818 = vmatprep.mubr.f32.mxu0 0.0
        %v1819 = vand.u32 %v1377, 4294901760
        %1820 = vmatmul.mubr.f32.gmra.mxu0 %v1819
        %v1821 = vpop.f32.mrf.mxu0
        %v1822 = vadd.f32 %v1750, %v1821
        %v1823 = vpop.f32.mrf.mxu0
        %1824 = vdwg.mxu0
        %s1825 = sld [smem:[#allocation2]]
        %v1826 = vstv %s1825
        %v1827 = vadd.f32 %v1283, %v1826
        %v1828 = vadd.f32 %v1289, %v1826
        %v1829 = vadd.f32 %v1295, %v1826
        %v1830 = vadd.f32 %v1301, %v1826
        %v1831 = vadd.f32 %v1307, %v1826
        %v1832 = vadd.f32 %v1313, %v1826
        %v1833 = vadd.f32 %v1319, %v1826
        %v1834 = vadd.f32 %v1325, %v1826
        %v1835 = vadd.f32 %v1331, %v1826
        %v1836 = vadd.f32 %v1337, %v1826
        %v1837 = vadd.f32 %v1343, %v1826
        %v1838 = vadd.f32 %v1349, %v1826
        %v1839 = vadd.f32 %v1355, %v1826
        %v1840 = vadd.f32 %v1361, %v1826
        %v1841 = vadd.f32 %v1367, %v1826
        %v1842 = vadd.f32 %v1373, %v1826
        %v1843 = vtanh.pop %v1827
        %v1844 = vtanh.pop %v1828
        %v1845 = vtanh.pop %v1829
        %v1846 = vtanh.pop %v1830
        %v1847 = vtanh.pop %v1831
        %v1848 = vtanh.pop %v1832
        %v1849 = vtanh.pop %v1833
        %v1850 = vtanh.pop %v1834
        %v1851 = vtanh.pop %v1835
        %v1852 = vtanh.pop %v1836
        %v1853 = vtanh.pop %v1837
        %v1854 = vtanh.pop %v1838
        %v1855 = vtanh.pop %v1839
        %v1856 = vtanh.pop %v1840
        %v1857 = vtanh.pop %v1841
        %v1858 = vtanh.pop %v1842
        %s1859 = sld [smem:[#allocation2 + $0x1]]
        %v1860 = vstv %s1859
        %v1861 = vadd.f32 %v1283, %v1860
        %v1862 = vadd.f32 %v1289, %v1860
        %v1863 = vadd.f32 %v1295, %v1860
        %v1864 = vadd.f32 %v1301, %v1860
        %v1865 = vadd.f32 %v1307, %v1860
        %v1866 = vadd.f32 %v1313, %v1860
        %v1867 = vadd.f32 %v1319, %v1860
        %v1868 = vadd.f32 %v1325, %v1860
        %v1869 = vadd.f32 %v1331, %v1860
        %v1870 = vadd.f32 %v1337, %v1860
        %v1871 = vadd.f32 %v1343, %v1860
        %v1872 = vadd.f32 %v1349, %v1860
        %v1873 = vadd.f32 %v1355, %v1860
        %v1874 = vadd.f32 %v1361, %v1860
        %v1875 = vadd.f32 %v1367, %v1860
        %v1876 = vadd.f32 %v1373, %v1860
        %v1877 = vlaneseq
        %v1878 = vshrl.u32 %v1877, 7
        %v1879 = vsub.s32 0, %v1878
        %v1880 = vrot.slane %v1822, %v1879
        %1897 = vrot.lane.b32.xlu0 %v1843, 1
        %v1898 = vpop.permute.xlu0 %1897
        %1899 = vrot.lane.b32.xlu0 %v1844, 1
        %v1900 = vpop.permute.xlu0 %1899
        %1901 = vrot.lane.b32.xlu0 %v1845, 1
        %v1902 = vpop.permute.xlu0 %1901
        %1903 = vrot.lane.b32.xlu0 %v1846, 1
        %v1904 = vpop.permute.xlu0 %1903
        %1905 = vrot.lane.b32.xlu0 %v1847, 1
        %v1906 = vpop.permute.xlu0 %1905
        %1907 = vrot.lane.b32.xlu0 %v1848, 1
        %v1908 = vpop.permute.xlu0 %1907
        %1909 = vrot.lane.b32.xlu0 %v1849, 1
        %v1910 = vpop.permute.xlu0 %1909
        %1911 = vrot.lane.b32.xlu0 %v1850, 1
        %v1912 = vpop.permute.xlu0 %1911
        %1913 = vrot.lane.b32.xlu0 %v1851, 1
        %v1914 = vpop.permute.xlu0 %1913
        %1915 = vrot.lane.b32.xlu0 %v1852, 1
        %v1916 = vpop.permute.xlu0 %1915
        %1917 = vrot.lane.b32.xlu0 %v1853, 1
        %v1918 = vpop.permute.xlu0 %1917
        %1919 = vrot.lane.b32.xlu0 %v1854, 1
        %v1920 = vpop.permute.xlu0 %1919
        %1921 = vrot.lane.b32.xlu0 %v1855, 1
        %v1922 = vpop.permute.xlu0 %1921
        %1923 = vrot.lane.b32.xlu0 %v1856, 1
        %v1924 = vpop.permute.xlu0 %1923
        %1925 = vrot.lane.b32.xlu0 %v1857, 1
        %v1926 = vpop.permute.xlu0 %1925
        %1927 = vrot.lane.b32.xlu0 %v1858, 1
        %v1928 = vpop.permute.xlu0 %1927
        %v1945 = vmul.f32 %v1880, %v1898
        %v1946 = vmul.f32 %v1880, %v1900
        %v1947 = vmul.f32 %v1880, %v1902
        %v1948 = vmul.f32 %v1880, %v1904
        %v1949 = vmul.f32 %v1880, %v1906
        %v1950 = vmul.f32 %v1880, %v1908
        %v1951 = vmul.f32 %v1880, %v1910
        %v1952 = vmul.f32 %v1880, %v1912
        %v1953 = vmul.f32 %v1880, %v1914
        %v1954 = vmul.f32 %v1880, %v1916
        %v1955 = vmul.f32 %v1880, %v1918
        %v1956 = vmul.f32 %v1880, %v1920
        %v1957 = vmul.f32 %v1880, %v1922
        %v1958 = vmul.f32 %v1880, %v1924
        %v1959 = vmul.f32 %v1880, %v1926
        %v1960 = vmul.f32 %v1880, %v1928
        %v1961 = vadd.f32 %v1861, %v1945
        %v1962 = vadd.f32 %v1862, %v1946
        %v1963 = vadd.f32 %v1863, %v1947
        %v1964 = vadd.f32 %v1864, %v1948
        %v1965 = vadd.f32 %v1865, %v1949
        %v1966 = vadd.f32 %v1866, %v1950
        %v1967 = vadd.f32 %v1867, %v1951
        %v1968 = vadd.f32 %v1868, %v1952
        %v1969 = vadd.f32 %v1869, %v1953
        %v1970 = vadd.f32 %v1870, %v1954
        %v1971 = vadd.f32 %v1871, %v1955
        %v1972 = vadd.f32 %v1872, %v1956
        %v1973 = vadd.f32 %v1873, %v1957
        %v1974 = vadd.f32 %v1874, %v1958
        %v1975 = vadd.f32 %v1875, %v1959
        %v1976 = vadd.f32 %v1876, %v1960
        %v1977 = vtanh.pop %v1961
        %v1978 = vtanh.pop %v1962
        %v1979 = vtanh.pop %v1963
        %v1980 = vtanh.pop %v1964
        %v1981 = vtanh.pop %v1965
        %v1982 = vtanh.pop %v1966
        %v1983 = vtanh.pop %v1967
        %v1984 = vtanh.pop %v1968
        %v1985 = vtanh.pop %v1969
        %v1986 = vtanh.pop %v1970
        %v1987 = vtanh.pop %v1971
        %v1988 = vtanh.pop %v1972
        %v1989 = vtanh.pop %v1973
        %v1990 = vtanh.pop %v1974
        %v1991 = vtanh.pop %v1975
        %v1992 = vtanh.pop %v1976
        %s1993 = sld [smem:[#allocation2 + $0x2]]
        %v1994 = vstv %s1993
        %v1995 = vadd.f32 %v1283, %v1994
        %v1996 = vadd.f32 %v1289, %v1994
        %v1997 = vadd.f32 %v1295, %v1994
        %v1998 = vadd.f32 %v1301, %v1994
        %v1999 = vadd.f32 %v1307, %v1994
        %v2000 = vadd.f32 %v1313, %v1994
        %v2001 = vadd.f32 %v1319, %v1994
        %v2002 = vadd.f32 %v1325, %v1994
        %v2003 = vadd.f32 %v1331, %v1994
        %v2004 = vadd.f32 %v1337, %v1994
        %v2005 = vadd.f32 %v1343, %v1994
        %v2006 = vadd.f32 %v1349, %v1994
        %v2007 = vadd.f32 %v1355, %v1994
        %v2008 = vadd.f32 %v1361, %v1994
        %v2009 = vadd.f32 %v1367, %v1994
        %v2010 = vadd.f32 %v1373, %v1994
        %2011 = vrot.lane.b32.xlu0 %v1843, 2
        %v2012 = vpop.permute.xlu0 %2011
        %2013 = vrot.lane.b32.xlu0 %v1844, 2
        %v2014 = vpop.permute.xlu0 %2013
        %2015 = vrot.lane.b32.xlu0 %v1845, 2
        %v2016 = vpop.permute.xlu0 %2015
        %2017 = vrot.lane.b32.xlu0 %v1846, 2
        %v2018 = vpop.permute.xlu0 %2017
        %2019 = vrot.lane.b32.xlu0 %v1847, 2
        %v2020 = vpop.permute.xlu0 %2019
        %2021 = vrot.lane.b32.xlu0 %v1848, 2
        %v2022 = vpop.permute.xlu0 %2021
        %2023 = vrot.lane.b32.xlu0 %v1849, 2
        %v2024 = vpop.permute.xlu0 %2023
        %2025 = vrot.lane.b32.xlu0 %v1850, 2
        %v2026 = vpop.permute.xlu0 %2025
        %2027 = vrot.lane.b32.xlu0 %v1851, 2
        %v2028 = vpop.permute.xlu0 %2027
        %2029 = vrot.lane.b32.xlu0 %v1852, 2
        %v2030 = vpop.permute.xlu0 %2029
        %2031 = vrot.lane.b32.xlu0 %v1853, 2
        %v2032 = vpop.permute.xlu0 %2031
        %2033 = vrot.lane.b32.xlu0 %v1854, 2
        %v2034 = vpop.permute.xlu0 %2033
        %2035 = vrot.lane.b32.xlu0 %v1855, 2
        %v2036 = vpop.permute.xlu0 %2035
        %2037 = vrot.lane.b32.xlu0 %v1856, 2
        %v2038 = vpop.permute.xlu0 %2037
        %2039 = vrot.lane.b32.xlu0 %v1857, 2
        %v2040 = vpop.permute.xlu0 %2039
        %2041 = vrot.lane.b32.xlu0 %v1858, 2
        %v2042 = vpop.permute.xlu0 %2041
        %v2059 = vmul.f32 %v1880, %v2012
        %v2060 = vmul.f32 %v1880, %v2014
        %v2061 = vmul.f32 %v1880, %v2016
        %v2062 = vmul.f32 %v1880, %v2018
        %v2063 = vmul.f32 %v1880, %v2020
        %v2064 = vmul.f32 %v1880, %v2022
        %v2065 = vmul.f32 %v1880, %v2024
        %v2066 = vmul.f32 %v1880, %v2026
        %v2067 = vmul.f32 %v1880, %v2028
        %v2068 = vmul.f32 %v1880, %v2030
        %v2069 = vmul.f32 %v1880, %v2032
        %v2070 = vmul.f32 %v1880, %v2034
        %v2071 = vmul.f32 %v1880, %v2036
        %v2072 = vmul.f32 %v1880, %v2038
        %v2073 = vmul.f32 %v1880, %v2040
        %v2074 = vmul.f32 %v1880, %v2042
        %v2075 = vadd.f32 %v1995, %v2059
        %v2076 = vadd.f32 %v1996, %v2060
        %v2077 = vadd.f32 %v1997, %v2061
        %v2078 = vadd.f32 %v1998, %v2062
        %v2079 = vadd.f32 %v1999, %v2063
        %v2080 = vadd.f32 %v2000, %v2064
        %v2081 = vadd.f32 %v2001, %v2065
        %v2082 = vadd.f32 %v2002, %v2066
        %v2083 = vadd.f32 %v2003, %v2067
        %v2084 = vadd.f32 %v2004, %v2068
        %v2085 = vadd.f32 %v2005, %v2069
        %v2086 = vadd.f32 %v2006, %v2070
        %v2087 = vadd.f32 %v2007, %v2071
        %v2088 = vadd.f32 %v2008, %v2072
        %v2089 = vadd.f32 %v2009, %v2073
        %v2090 = vadd.f32 %v2010, %v2074
        %v2091 = vlaneseq
        %v2092 = vshrl.u32 %v2091, 7
        %v2093 = vsub.s32 1, %v2092
        %v2094 = vrot.slane %v1822, %v2093
        %2111 = vrot.lane.b32.xlu0 %v1977, 1
        %v2112 = vpop.permute.xlu0 %2111
        %2113 = vrot.lane.b32.xlu0 %v1978, 1
        %v2114 = vpop.permute.xlu0 %2113
        %2115 = vrot.lane.b32.xlu0 %v1979, 1
        %v2116 = vpop.permute.xlu0 %2115
        %2117 = vrot.lane.b32.xlu0 %v1980, 1
        %v2118 = vpop.permute.xlu0 %2117
        %2119 = vrot.lane.b32.xlu0 %v1981, 1
        %v2120 = vpop.permute.xlu0 %2119
        %2121 = vrot.lane.b32.xlu0 %v1982, 1
        %v2122 = vpop.permute.xlu0 %2121
        %2123 = vrot.lane.b32.xlu0 %v1983, 1
        %v2124 = vpop.permute.xlu0 %2123
        %2125 = vrot.lane.b32.xlu0 %v1984, 1
        %v2126 = vpop.permute.xlu0 %2125
        %2127 = vrot.lane.b32.xlu0 %v1985, 1
        %v2128 = vpop.permute.xlu0 %2127
        %2129 = vrot.lane.b32.xlu0 %v1986, 1
        %v2130 = vpop.permute.xlu0 %2129
        %2131 = vrot.lane.b32.xlu0 %v1987, 1
        %v2132 = vpop.permute.xlu0 %2131
        %2133 = vrot.lane.b32.xlu0 %v1988, 1
        %v2134 = vpop.permute.xlu0 %2133
        %2135 = vrot.lane.b32.xlu0 %v1989, 1
        %v2136 = vpop.permute.xlu0 %2135
        %2137 = vrot.lane.b32.xlu0 %v1990, 1
        %v2138 = vpop.permute.xlu0 %2137
        %2139 = vrot.lane.b32.xlu0 %v1991, 1
        %v2140 = vpop.permute.xlu0 %2139
        %2141 = vrot.lane.b32.xlu0 %v1992, 1
        %v2142 = vpop.permute.xlu0 %2141
        %v2159 = vmul.f32 %v2094, %v2112
        %v2160 = vmul.f32 %v2094, %v2114
        %v2161 = vmul.f32 %v2094, %v2116
        %v2162 = vmul.f32 %v2094, %v2118
        %v2163 = vmul.f32 %v2094, %v2120
        %v2164 = vmul.f32 %v2094, %v2122
        %v2165 = vmul.f32 %v2094, %v2124
        %v2166 = vmul.f32 %v2094, %v2126
        %v2167 = vmul.f32 %v2094, %v2128
        %v2168 = vmul.f32 %v2094, %v2130
        %v2169 = vmul.f32 %v2094, %v2132
        %v2170 = vmul.f32 %v2094, %v2134
        %v2171 = vmul.f32 %v2094, %v2136
        %v2172 = vmul.f32 %v2094, %v2138
        %v2173 = vmul.f32 %v2094, %v2140
        %v2174 = vmul.f32 %v2094, %v2142
        %v2175 = vadd.f32 %v2075, %v2159
        %v2176 = vadd.f32 %v2076, %v2160
        %v2177 = vadd.f32 %v2077, %v2161
        %v2178 = vadd.f32 %v2078, %v2162
        %v2179 = vadd.f32 %v2079, %v2163
        %v2180 = vadd.f32 %v2080, %v2164
        %v2181 = vadd.f32 %v2081, %v2165
        %v2182 = vadd.f32 %v2082, %v2166
        %v2183 = vadd.f32 %v2083, %v2167
        %v2184 = vadd.f32 %v2084, %v2168
        %v2185 = vadd.f32 %v2085, %v2169
        %v2186 = vadd.f32 %v2086, %v2170
        %v2187 = vadd.f32 %v2087, %v2171
        %v2188 = vadd.f32 %v2088, %v2172
        %v2189 = vadd.f32 %v2089, %v2173
        %v2190 = vadd.f32 %v2090, %v2174
        %v2191 = vtanh.pop %v2175
        %v2192 = vtanh.pop %v2176
        %v2193 = vtanh.pop %v2177
        %v2194 = vtanh.pop %v2178
        %v2195 = vtanh.pop %v2179
        %v2196 = vtanh.pop %v2180
        %v2197 = vtanh.pop %v2181
        %v2198 = vtanh.pop %v2182
        %v2199 = vtanh.pop %v2183
        %v2200 = vtanh.pop %v2184
        %v2201 = vtanh.pop %v2185
        %v2202 = vtanh.pop %v2186
        %v2203 = vtanh.pop %v2187
        %v2204 = vtanh.pop %v2188
        %v2205 = vtanh.pop %v2189
        %v2206 = vtanh.pop %v2190
        %s2207 = sld [smem:[#allocation2 + $0x3]]
        %v2208 = vstv %s2207
        %v2209 = vadd.f32 %v1283, %v2208
        %v2210 = vadd.f32 %v1289, %v2208
        %v2211 = vadd.f32 %v1295, %v2208
        %v2212 = vadd.f32 %v1301, %v2208
        %v2213 = vadd.f32 %v1307, %v2208
        %v2214 = vadd.f32 %v1313, %v2208
        %v2215 = vadd.f32 %v1319, %v2208
        %v2216 = vadd.f32 %v1325, %v2208
        %v2217 = vadd.f32 %v1331, %v2208
        %v2218 = vadd.f32 %v1337, %v2208
        %v2219 = vadd.f32 %v1343, %v2208
        %v2220 = vadd.f32 %v1349, %v2208
        %v2221 = vadd.f32 %v1355, %v2208
        %v2222 = vadd.f32 %v1361, %v2208
        %v2223 = vadd.f32 %v1367, %v2208
        %v2224 = vadd.f32 %v1373, %v2208
        %2225 = vrot.lane.b32.xlu0 %v1843, 3
        %v2226 = vpop.permute.xlu0 %2225
        %2227 = vrot.lane.b32.xlu0 %v1844, 3
        %v2228 = vpop.permute.xlu0 %2227
        %2229 = vrot.lane.b32.xlu0 %v1845, 3
        %v2230 = vpop.permute.xlu0 %2229
        %2231 = vrot.lane.b32.xlu0 %v1846, 3
        %v2232 = vpop.permute.xlu0 %2231
        %2233 = vrot.lane.b32.xlu0 %v1847, 3
        %v2234 = vpop.permute.xlu0 %2233
        %2235 = vrot.lane.b32.xlu0 %v1848, 3
        %v2236 = vpop.permute.xlu0 %2235
        %2237 = vrot.lane.b32.xlu0 %v1849, 3
        %v2238 = vpop.permute.xlu0 %2237
        %2239 = vrot.lane.b32.xlu0 %v1850, 3
        %v2240 = vpop.permute.xlu0 %2239
        %2241 = vrot.lane.b32.xlu0 %v1851, 3
        %v2242 = vpop.permute.xlu0 %2241
        %2243 = vrot.lane.b32.xlu0 %v1852, 3
        %v2244 = vpop.permute.xlu0 %2243
        %2245 = vrot.lane.b32.xlu0 %v1853, 3
        %v2246 = vpop.permute.xlu0 %2245
        %2247 = vrot.lane.b32.xlu0 %v1854, 3
        %v2248 = vpop.permute.xlu0 %2247
        %2249 = vrot.lane.b32.xlu0 %v1855, 3
        %v2250 = vpop.permute.xlu0 %2249
        %2251 = vrot.lane.b32.xlu0 %v1856, 3
        %v2252 = vpop.permute.xlu0 %2251
        %2253 = vrot.lane.b32.xlu0 %v1857, 3
        %v2254 = vpop.permute.xlu0 %2253
        %2255 = vrot.lane.b32.xlu0 %v1858, 3
        %v2256 = vpop.permute.xlu0 %2255
        %v2273 = vmul.f32 %v1880, %v2226
        %v2274 = vmul.f32 %v1880, %v2228
        %v2275 = vmul.f32 %v1880, %v2230
        %v2276 = vmul.f32 %v1880, %v2232
        %v2277 = vmul.f32 %v1880, %v2234
        %v2278 = vmul.f32 %v1880, %v2236
        %v2279 = vmul.f32 %v1880, %v2238
        %v2280 = vmul.f32 %v1880, %v2240
        %v2281 = vmul.f32 %v1880, %v2242
        %v2282 = vmul.f32 %v1880, %v2244
        %v2283 = vmul.f32 %v1880, %v2246
        %v2284 = vmul.f32 %v1880, %v2248
        %v2285 = vmul.f32 %v1880, %v2250
        %v2286 = vmul.f32 %v1880, %v2252
        %v2287 = vmul.f32 %v1880, %v2254
        %v2288 = vmul.f32 %v1880, %v2256
        %v2289 = vadd.f32 %v2209, %v2273
        %v2290 = vadd.f32 %v2210, %v2274
        %v2291 = vadd.f32 %v2211, %v2275
        %v2292 = vadd.f32 %v2212, %v2276
        %v2293 = vadd.f32 %v2213, %v2277
        %v2294 = vadd.f32 %v2214, %v2278
        %v2295 = vadd.f32 %v2215, %v2279
        %v2296 = vadd.f32 %v2216, %v2280
        %v2297 = vadd.f32 %v2217, %v2281
        %v2298 = vadd.f32 %v2218, %v2282
        %v2299 = vadd.f32 %v2219, %v2283
        %v2300 = vadd.f32 %v2220, %v2284
        %v2301 = vadd.f32 %v2221, %v2285
        %v2302 = vadd.f32 %v2222, %v2286
        %v2303 = vadd.f32 %v2223, %v2287
        %v2304 = vadd.f32 %v2224, %v2288
        %2305 = vrot.lane.b32.xlu0 %v1977, 2
        %v2306 = vpop.permute.xlu0 %2305
        %2307 = vrot.lane.b32.xlu0 %v1978, 2
        %v2308 = vpop.permute.xlu0 %2307
        %2309 = vrot.lane.b32.xlu0 %v1979, 2
        %v2310 = vpop.permute.xlu0 %2309
        %2311 = vrot.lane.b32.xlu0 %v1980, 2
        %v2312 = vpop.permute.xlu0 %2311
        %2313 = vrot.lane.b32.xlu0 %v1981, 2
        %v2314 = vpop.permute.xlu0 %2313
        %2315 = vrot.lane.b32.xlu0 %v1982, 2
        %v2316 = vpop.permute.xlu0 %2315
        %2317 = vrot.lane.b32.xlu0 %v1983, 2
        %v2318 = vpop.permute.xlu0 %2317
        %2319 = vrot.lane.b32.xlu0 %v1984, 2
        %v2320 = vpop.permute.xlu0 %2319
        %2321 = vrot.lane.b32.xlu0 %v1985, 2
        %v2322 = vpop.permute.xlu0 %2321
        %2323 = vrot.lane.b32.xlu0 %v1986, 2
        %v2324 = vpop.permute.xlu0 %2323
        %2325 = vrot.lane.b32.xlu0 %v1987, 2
        %v2326 = vpop.permute.xlu0 %2325
        %2327 = vrot.lane.b32.xlu0 %v1988, 2
        %v2328 = vpop.permute.xlu0 %2327
        %2329 = vrot.lane.b32.xlu0 %v1989, 2
        %v2330 = vpop.permute.xlu0 %2329
        %2331 = vrot.lane.b32.xlu0 %v1990, 2
        %v2332 = vpop.permute.xlu0 %2331
        %2333 = vrot.lane.b32.xlu0 %v1991, 2
        %v2334 = vpop.permute.xlu0 %2333
        %2335 = vrot.lane.b32.xlu0 %v1992, 2
        %v2336 = vpop.permute.xlu0 %2335
        %v2353 = vmul.f32 %v2094, %v2306
        %v2354 = vmul.f32 %v2094, %v2308
        %v2355 = vmul.f32 %v2094, %v2310
        %v2356 = vmul.f32 %v2094, %v2312
        %v2357 = vmul.f32 %v2094, %v2314
        %v2358 = vmul.f32 %v2094, %v2316
        %v2359 = vmul.f32 %v2094, %v2318
        %v2360 = vmul.f32 %v2094, %v2320
        %v2361 = vmul.f32 %v2094, %v2322
        %v2362 = vmul.f32 %v2094, %v2324
        %v2363 = vmul.f32 %v2094, %v2326
        %v2364 = vmul.f32 %v2094, %v2328
        %v2365 = vmul.f32 %v2094, %v2330
        %v2366 = vmul.f32 %v2094, %v2332
        %v2367 = vmul.f32 %v2094, %v2334
        %v2368 = vmul.f32 %v2094, %v2336
        %v2369 = vadd.f32 %v2289, %v2353
        %v2370 = vadd.f32 %v2290, %v2354
        %v2371 = vadd.f32 %v2291, %v2355
        %v2372 = vadd.f32 %v2292, %v2356
        %v2373 = vadd.f32 %v2293, %v2357
        %v2374 = vadd.f32 %v2294, %v2358
        %v2375 = vadd.f32 %v2295, %v2359
        %v2376 = vadd.f32 %v2296, %v2360
        %v2377 = vadd.f32 %v2297, %v2361
        %v2378 = vadd.f32 %v2298, %v2362
        %v2379 = vadd.f32 %v2299, %v2363
        %v2380 = vadd.f32 %v2300, %v2364
        %v2381 = vadd.f32 %v2301, %v2365
        %v2382 = vadd.f32 %v2302, %v2366
        %v2383 = vadd.f32 %v2303, %v2367
        %v2384 = vadd.f32 %v2304, %v2368
        %v2385 = vlaneseq
        %v2386 = vshrl.u32 %v2385, 7
        %v2387 = vsub.s32 2, %v2386
        %v2388 = vrot.slane %v1822, %v2387
        %2405 = vrot.lane.b32.xlu0 %v2191, 1
        %v2406 = vpop.permute.xlu0 %2405
        %2407 = vrot.lane.b32.xlu0 %v2192, 1
        %v2408 = vpop.permute.xlu0 %2407
        %2409 = vrot.lane.b32.xlu0 %v2193, 1
        %v2410 = vpop.permute.xlu0 %2409
        %2411 = vrot.lane.b32.xlu0 %v2194, 1
        %v2412 = vpop.permute.xlu0 %2411
        %2413 = vrot.lane.b32.xlu0 %v2195, 1
        %v2414 = vpop.permute.xlu0 %2413
        %2415 = vrot.lane.b32.xlu0 %v2196, 1
        %v2416 = vpop.permute.xlu0 %2415
        %2417 = vrot.lane.b32.xlu0 %v2197, 1
        %v2418 = vpop.permute.xlu0 %2417
        %2419 = vrot.lane.b32.xlu0 %v2198, 1
        %v2420 = vpop.permute.xlu0 %2419
        %2421 = vrot.lane.b32.xlu0 %v2199, 1
        %v2422 = vpop.permute.xlu0 %2421
        %2423 = vrot.lane.b32.xlu0 %v2200, 1
        %v2424 = vpop.permute.xlu0 %2423
        %2425 = vrot.lane.b32.xlu0 %v2201, 1
        %v2426 = vpop.permute.xlu0 %2425
        %2427 = vrot.lane.b32.xlu0 %v2202, 1
        %v2428 = vpop.permute.xlu0 %2427
        %2429 = vrot.lane.b32.xlu0 %v2203, 1
        %v2430 = vpop.permute.xlu0 %2429
        %2431 = vrot.lane.b32.xlu0 %v2204, 1
        %v2432 = vpop.permute.xlu0 %2431
        %2433 = vrot.lane.b32.xlu0 %v2205, 1
        %v2434 = vpop.permute.xlu0 %2433
        %2435 = vrot.lane.b32.xlu0 %v2206, 1
        %v2436 = vpop.permute.xlu0 %2435
        %v2453 = vmul.f32 %v2388, %v2406
        %v2454 = vmul.f32 %v2388, %v2408
        %v2455 = vmul.f32 %v2388, %v2410
        %v2456 = vmul.f32 %v2388, %v2412
        %v2457 = vmul.f32 %v2388, %v2414
        %v2458 = vmul.f32 %v2388, %v2416
        %v2459 = vmul.f32 %v2388, %v2418
        %v2460 = vmul.f32 %v2388, %v2420
        %v2461 = vmul.f32 %v2388, %v2422
        %v2462 = vmul.f32 %v2388, %v2424
        %v2463 = vmul.f32 %v2388, %v2426
        %v2464 = vmul.f32 %v2388, %v2428
        %v2465 = vmul.f32 %v2388, %v2430
        %v2466 = vmul.f32 %v2388, %v2432
        %v2467 = vmul.f32 %v2388, %v2434
        %v2468 = vmul.f32 %v2388, %v2436
        %v2469 = vadd.f32 %v2369, %v2453
        %v2470 = vadd.f32 %v2370, %v2454
        %v2471 = vadd.f32 %v2371, %v2455
        %v2472 = vadd.f32 %v2372, %v2456
        %v2473 = vadd.f32 %v2373, %v2457
        %v2474 = vadd.f32 %v2374, %v2458
        %v2475 = vadd.f32 %v2375, %v2459
        %v2476 = vadd.f32 %v2376, %v2460
        %v2477 = vadd.f32 %v2377, %v2461
        %v2478 = vadd.f32 %v2378, %v2462
        %v2479 = vadd.f32 %v2379, %v2463
        %v2480 = vadd.f32 %v2380, %v2464
        %v2481 = vadd.f32 %v2381, %v2465
        %v2482 = vadd.f32 %v2382, %v2466
        %v2483 = vadd.f32 %v2383, %v2467
        %v2484 = vadd.f32 %v2384, %v2468
        %v2485 = vtanh.pop %v2469
        %v2486 = vtanh.pop %v2470
        %v2487 = vtanh.pop %v2471
        %v2488 = vtanh.pop %v2472
        %v2489 = vtanh.pop %v2473
        %v2490 = vtanh.pop %v2474
        %v2491 = vtanh.pop %v2475
        %v2492 = vtanh.pop %v2476
        %v2493 = vtanh.pop %v2477
        %v2494 = vtanh.pop %v2478
        %v2495 = vtanh.pop %v2479
        %v2496 = vtanh.pop %v2480
        %v2497 = vtanh.pop %v2481
        %v2498 = vtanh.pop %v2482
        %v2499 = vtanh.pop %v2483
        %v2500 = vtanh.pop %v2484
        %vm2501 = vcmask 7168
        %v2502 = vsel %vm2501, %v1843, %v1977
        %v2503 = vsel %vm2501, %v1844, %v1978
        %v2504 = vsel %vm2501, %v1845, %v1979
        %v2505 = vsel %vm2501, %v1846, %v1980
        %v2506 = vsel %vm2501, %v1847, %v1981
        %v2507 = vsel %vm2501, %v1848, %v1982
        %v2508 = vsel %vm2501, %v1849, %v1983
        %v2509 = vsel %vm2501, %v1850, %v1984
        %v2510 = vsel %vm2501, %v1851, %v1985
        %v2511 = vsel %vm2501, %v1852, %v1986
        %v2512 = vsel %vm2501, %v1853, %v1987
        %v2513 = vsel %vm2501, %v1854, %v1988
        %v2514 = vsel %vm2501, %v1855, %v1989
        %v2515 = vsel %vm2501, %v1856, %v1990
        %v2516 = vsel %vm2501, %v1857, %v1991
        %v2517 = vsel %vm2501, %v1858, %v1992
        %vm2518 = vcmask 15360
        %v2519 = vsel %vm2518, %v2502, %v2191
        %v2520 = vsel %vm2518, %v2503, %v2192
        %v2521 = vsel %vm2518, %v2504, %v2193
        %v2522 = vsel %vm2518, %v2505, %v2194
        %v2523 = vsel %vm2518, %v2506, %v2195
        %v2524 = vsel %vm2518, %v2507, %v2196
        %v2525 = vsel %vm2518, %v2508, %v2197
        %v2526 = vsel %vm2518, %v2509, %v2198
        %v2527 = vsel %vm2518, %v2510, %v2199
        %v2528 = vsel %vm2518, %v2511, %v2200
        %v2529 = vsel %vm2518, %v2512, %v2201
        %v2530 = vsel %vm2518, %v2513, %v2202
        %v2531 = vsel %vm2518, %v2514, %v2203
        %v2532 = vsel %vm2518, %v2515, %v2204
        %v2533 = vsel %vm2518, %v2516, %v2205
        %v2534 = vsel %vm2518, %v2517, %v2206
        %vm2535 = vcmask 23552
        %v2536 = vsel %vm2535, %v2519, %v2485
        %v2537 = vsel %vm2535, %v2520, %v2486
        %v2538 = vsel %vm2535, %v2521, %v2487
        %v2539 = vsel %vm2535, %v2522, %v2488
        %v2540 = vsel %vm2535, %v2523, %v2489
        %v2541 = vsel %vm2535, %v2524, %v2490
        %v2542 = vsel %vm2535, %v2525, %v2491
        %v2543 = vsel %vm2535, %v2526, %v2492
        %v2544 = vsel %vm2535, %v2527, %v2493
        %v2545 = vsel %vm2535, %v2528, %v2494
        %v2546 = vsel %vm2535, %v2529, %v2495
        %v2547 = vsel %vm2535, %v2530, %v2496
        %v2548 = vsel %vm2535, %v2531, %v2497
        %v2549 = vsel %vm2535, %v2532, %v2498
        %v2550 = vsel %vm2535, %v2533, %v2499
        %v2551 = vsel %vm2535, %v2534, %v2500
        %vm2552 = vcmask 31744
        %v2554 = vsel %vm2552, %v2536, 0
        %v2557 = vsel %vm2552, %v2537, 0
        %v2560 = vsel %vm2552, %v2538, 0
        %v2563 = vsel %vm2552, %v2539, 0
        %v2566 = vsel %vm2552, %v2540, 0
        %v2569 = vsel %vm2552, %v2541, 0
        %v2572 = vsel %vm2552, %v2542, 0
        %v2575 = vsel %vm2552, %v2543, 0
        %v2578 = vsel %vm2552, %v2544, 0
        %v2581 = vsel %vm2552, %v2545, 0
        %v2584 = vsel %vm2552, %v2546, 0
        %v2587 = vsel %vm2552, %v2547, 0
        %v2590 = vsel %vm2552, %v2548, 0
        %v2593 = vsel %vm2552, %v2549, 0
        %v2596 = vsel %vm2552, %v2550, 0
        %v2599 = vsel %vm2552, %v2551, 0
        %vm2601 = vcmask 1043456
        %v2602 = vsel %vm2601, %v231, 0
        %2604 = vmatprep.subr.mxu0 0.0
        %2605 = vmatpush1.msra.mxu0 0.0
        %2606 = vmatprep.subr.mxu0 0.0
        %2607 = vmatpush1.msra.mxu0 0.0
        %2608 = vmatprep.subr.mxu0 0.0
        %2609 = vmatpush1.msra.mxu0 0.0
        %2610 = vmatprep.subr.mxu0 0.0
        %2611 = vmatpush1.msra.mxu0 0.0
        %2612 = vmatprep.subr.mxu0 0.0
        %2613 = vmatpush1.msra.mxu0 0.0
        %2614 = vmatprep.subr.mxu0 0.0
        %2615 = vmatpush1.msra.mxu0 0.0
        %2616 = vmatprep.subr.mxu0 0.0
        %2617 = vmatpush1.msra.mxu0 0.0
        %2618 = vmatprep.subr.mxu0 0.0
        %2619 = vmatpush1.msra.mxu0 0.0
        %2620 = vmatprep.subr.mxu0 0.0
        %2621 = vmatpush1.msra.mxu0 0.0
        %2622 = vmatprep.subr.mxu0 0.0
        %2623 = vmatpush1.msra.mxu0 0.0
        %2624 = vmatprep.subr.mxu0 0.0
        %2625 = vmatpush1.msra.mxu0 0.0
        %2626 = vmatprep.subr.mxu0 0.0
        %2627 = vmatpush1.msra.mxu0 0.0
        %2628 = vmatprep.subr.mxu0 0.0
        %2629 = vmatpush1.msra.mxu0 0.0
        %2630 = vmatprep.subr.mxu0 0.0
        %2631 = vmatpush1.msra.mxu0 0.0
        %2632 = vmatprep.subr.mxu0 0.0
        %2633 = vmatpush1.msra.mxu0 0.0
        %2634 = vmatprep.subr.mxu0 0.0
        %v2635 = vand.u32 %v2602, 4294901760
        %2636 = vmatpush1.msra.mxu0 %v2635
        %2637 = vmatprep.subr.mxu0 0.0
        %2638 = vmatpush2.msra.mxu0 0.0
        %2639 = vmatprep.subr.mxu0 0.0
        %2640 = vmatpush2.msra.mxu0 0.0
        %2641 = vmatprep.subr.mxu0 0.0
        %2642 = vmatpush2.msra.mxu0 0.0
        %2643 = vmatprep.subr.mxu0 0.0
        %2644 = vmatpush2.msra.mxu0 0.0
        %2645 = vmatprep.subr.mxu0 0.0
        %2646 = vmatpush2.msra.mxu0 0.0
        %2647 = vmatprep.subr.mxu0 0.0
        %2648 = vmatpush2.msra.mxu0 0.0
        %2649 = vmatprep.subr.mxu0 0.0
        %2650 = vmatpush2.msra.mxu0 0.0
        %2651 = vmatprep.subr.mxu0 0.0
        %2652 = vmatpush2.msra.mxu0 0.0
        %2653 = vmatprep.subr.mxu0 0.0
        %2654 = vmatpush2.msra.mxu0 0.0
        %2655 = vmatprep.subr.mxu0 0.0
        %2656 = vmatpush2.msra.mxu0 0.0
        %2657 = vmatprep.subr.mxu0 0.0
        %2658 = vmatpush2.msra.mxu0 0.0
        %2659 = vmatprep.subr.mxu0 0.0
        %2660 = vmatpush2.msra.mxu0 0.0
        %2661 = vmatprep.subr.mxu0 0.0
        %2662 = vmatpush2.msra.mxu0 0.0
        %2663 = vmatprep.subr.mxu0 0.0
        %2664 = vmatpush2.msra.mxu0 0.0
        %2665 = vmatprep.subr.mxu0 0.0
        %2666 = vmatpush2.msra.mxu0 0.0
        %2667 = vmatprep.subr.mxu0 0.0
        %2668 = vmatpush2.msra.mxu0 0.0
        %2669 = vmatprep.mubr.f32.mxu0 0.0
        %v2670 = vand.u32 %v2554, 4294901760
        %v2671 = vsub.f32 %v2554, %v2670
        %v2672 = vand.u32 %v2671, 4294901760
        %v2673 = vsub.f32 %v2671, %v2672
        %v2674 = vand.u32 %v2673, 4294901760
        %2675 = vmatmul.mubr.f32.gmra.mxu0 %v2674
        %v2676 = vpop.f32.mrf.mxu0
        %v2677 = vadd.f32 0.0, %v2676
        %v2678 = vpop.f32.mrf.mxu0
        %2679 = vmatprep.mubr.f32.mxu0 0.0
        %v2680 = vand.u32 %v2557, 4294901760
        %v2681 = vsub.f32 %v2557, %v2680
        %v2682 = vand.u32 %v2681, 4294901760
        %v2683 = vsub.f32 %v2681, %v2682
        %v2684 = vand.u32 %v2683, 4294901760
        %2685 = vmatmul.mubr.f32.gmra.mxu0 %v2684
        %v2686 = vpop.f32.mrf.mxu0
        %v2687 = vadd.f32 0.0, %v2686
        %v2688 = vpop.f32.mrf.mxu0
        %2689 = vmatprep.mubr.f32.mxu0 0.0
        %v2690 = vand.u32 %v2560, 4294901760
        %v2691 = vsub.f32 %v2560, %v2690
        %v2692 = vand.u32 %v2691, 4294901760
        %v2693 = vsub.f32 %v2691, %v2692
        %v2694 = vand.u32 %v2693, 4294901760
        %2695 = vmatmul.mubr.f32.gmra.mxu0 %v2694
        %v2696 = vpop.f32.mrf.mxu0
        %v2697 = vadd.f32 0.0, %v2696
        %v2698 = vpop.f32.mrf.mxu0
        %2699 = vmatprep.mubr.f32.mxu0 0.0
        %v2700 = vand.u32 %v2563, 4294901760
        %v2701 = vsub.f32 %v2563, %v2700
        %v2702 = vand.u32 %v2701, 4294901760
        %v2703 = vsub.f32 %v2701, %v2702
        %v2704 = vand.u32 %v2703, 4294901760
        %2705 = vmatmul.mubr.f32.gmra.mxu0 %v2704
        %v2706 = vpop.f32.mrf.mxu0
        %v2707 = vadd.f32 0.0, %v2706
        %v2708 = vpop.f32.mrf.mxu0
        %2709 = vmatprep.mubr.f32.mxu0 0.0
        %v2710 = vand.u32 %v2566, 4294901760
        %v2711 = vsub.f32 %v2566, %v2710
        %v2712 = vand.u32 %v2711, 4294901760
        %v2713 = vsub.f32 %v2711, %v2712
        %v2714 = vand.u32 %v2713, 4294901760
        %2715 = vmatmul.mubr.f32.gmra.mxu0 %v2714
        %v2716 = vpop.f32.mrf.mxu0
        %v2717 = vadd.f32 0.0, %v2716
        %v2718 = vpop.f32.mrf.mxu0
        %2719 = vmatprep.mubr.f32.mxu0 0.0
        %v2720 = vand.u32 %v2569, 4294901760
        %v2721 = vsub.f32 %v2569, %v2720
        %v2722 = vand.u32 %v2721, 4294901760
        %v2723 = vsub.f32 %v2721, %v2722
        %v2724 = vand.u32 %v2723, 4294901760
        %2725 = vmatmul.mubr.f32.gmra.mxu0 %v2724
        %v2726 = vpop.f32.mrf.mxu0
        %v2727 = vadd.f32 0.0, %v2726
        %v2728 = vpop.f32.mrf.mxu0
        %2729 = vmatprep.mubr.f32.mxu0 0.0
        %v2730 = vand.u32 %v2572, 4294901760
        %v2731 = vsub.f32 %v2572, %v2730
        %v2732 = vand.u32 %v2731, 4294901760
        %v2733 = vsub.f32 %v2731, %v2732
        %v2734 = vand.u32 %v2733, 4294901760
        %2735 = vmatmul.mubr.f32.gmra.mxu0 %v2734
        %v2736 = vpop.f32.mrf.mxu0
        %v2737 = vadd.f32 0.0, %v2736
        %v2738 = vpop.f32.mrf.mxu0
        %2739 = vmatprep.mubr.f32.mxu0 0.0
        %v2740 = vand.u32 %v2575, 4294901760
        %v2741 = vsub.f32 %v2575, %v2740
        %v2742 = vand.u32 %v2741, 4294901760
        %v2743 = vsub.f32 %v2741, %v2742
        %v2744 = vand.u32 %v2743, 4294901760
        %2745 = vmatmul.mubr.f32.gmra.mxu0 %v2744
        %v2746 = vpop.f32.mrf.mxu0
        %v2747 = vadd.f32 0.0, %v2746
        %v2748 = vpop.f32.mrf.mxu0
        %2749 = vmatprep.mubr.f32.mxu0 0.0
        %v2750 = vand.u32 %v2578, 4294901760
        %v2751 = vsub.f32 %v2578, %v2750
        %v2752 = vand.u32 %v2751, 4294901760
        %v2753 = vsub.f32 %v2751, %v2752
        %v2754 = vand.u32 %v2753, 4294901760
        %2755 = vmatmul.mubr.f32.gmra.mxu0 %v2754
        %v2756 = vpop.f32.mrf.mxu0
        %v2757 = vadd.f32 0.0, %v2756
        %v2758 = vpop.f32.mrf.mxu0
        %2759 = vmatprep.mubr.f32.mxu0 0.0
        %v2760 = vand.u32 %v2581, 4294901760
        %v2761 = vsub.f32 %v2581, %v2760
        %v2762 = vand.u32 %v2761, 4294901760
        %v2763 = vsub.f32 %v2761, %v2762
        %v2764 = vand.u32 %v2763, 4294901760
        %2765 = vmatmul.mubr.f32.gmra.mxu0 %v2764
        %v2766 = vpop.f32.mrf.mxu0
        %v2767 = vadd.f32 0.0, %v2766
        %v2768 = vpop.f32.mrf.mxu0
        %2769 = vmatprep.mubr.f32.mxu0 0.0
        %v2770 = vand.u32 %v2584, 4294901760
        %v2771 = vsub.f32 %v2584, %v2770
        %v2772 = vand.u32 %v2771, 4294901760
        %v2773 = vsub.f32 %v2771, %v2772
        %v2774 = vand.u32 %v2773, 4294901760
        %2775 = vmatmul.mubr.f32.gmra.mxu0 %v2774
        %v2776 = vpop.f32.mrf.mxu0
        %v2777 = vadd.f32 0.0, %v2776
        %v2778 = vpop.f32.mrf.mxu0
        %2779 = vmatprep.mubr.f32.mxu0 0.0
        %v2780 = vand.u32 %v2587, 4294901760
        %v2781 = vsub.f32 %v2587, %v2780
        %v2782 = vand.u32 %v2781, 4294901760
        %v2783 = vsub.f32 %v2781, %v2782
        %v2784 = vand.u32 %v2783, 4294901760
        %2785 = vmatmul.mubr.f32.gmra.mxu0 %v2784
        %v2786 = vpop.f32.mrf.mxu0
        %v2787 = vadd.f32 0.0, %v2786
        %v2788 = vpop.f32.mrf.mxu0
        %2789 = vmatprep.mubr.f32.mxu0 0.0
        %v2790 = vand.u32 %v2590, 4294901760
        %v2791 = vsub.f32 %v2590, %v2790
        %v2792 = vand.u32 %v2791, 4294901760
        %v2793 = vsub.f32 %v2791, %v2792
        %v2794 = vand.u32 %v2793, 4294901760
        %2795 = vmatmul.mubr.f32.gmra.mxu0 %v2794
        %v2796 = vpop.f32.mrf.mxu0
        %v2797 = vadd.f32 0.0, %v2796
        %v2798 = vpop.f32.mrf.mxu0
        %2799 = vmatprep.mubr.f32.mxu0 0.0
        %v2800 = vand.u32 %v2593, 4294901760
        %v2801 = vsub.f32 %v2593, %v2800
        %v2802 = vand.u32 %v2801, 4294901760
        %v2803 = vsub.f32 %v2801, %v2802
        %v2804 = vand.u32 %v2803, 4294901760
        %2805 = vmatmul.mubr.f32.gmra.mxu0 %v2804
        %v2806 = vpop.f32.mrf.mxu0
        %v2807 = vadd.f32 0.0, %v2806
        %v2808 = vpop.f32.mrf.mxu0
        %2809 = vmatprep.mubr.f32.mxu0 0.0
        %v2810 = vand.u32 %v2596, 4294901760
        %v2811 = vsub.f32 %v2596, %v2810
        %v2812 = vand.u32 %v2811, 4294901760
        %v2813 = vsub.f32 %v2811, %v2812
        %v2814 = vand.u32 %v2813, 4294901760
        %2815 = vmatmul.mubr.f32.gmra.mxu0 %v2814
        %v2816 = vpop.f32.mrf.mxu0
        %v2817 = vadd.f32 0.0, %v2816
        %v2818 = vpop.f32.mrf.mxu0
        %2819 = vmatprep.mubr.f32.mxu0 0.0
        %v2820 = vand.u32 %v2599, 4294901760
        %v2821 = vsub.f32 %v2599, %v2820
        %v2822 = vand.u32 %v2821, 4294901760
        %v2823 = vsub.f32 %v2821, %v2822
        %v2824 = vand.u32 %v2823, 4294901760
        %2825 = vmatmul.mubr.f32.gmra.mxu0 %v2824
        %v2826 = vpop.f32.mrf.mxu0
        %v2827 = vadd.f32 0.0, %v2826
        %v2828 = vpop.f32.mrf.mxu0
        %2829 = vdwg.mxu0
        %2830 = vmatprep.subr.mxu0 0.0
        %2831 = vmatpush1.msra.mxu0 0.0
        %2832 = vmatprep.subr.mxu0 0.0
        %2833 = vmatpush1.msra.mxu0 0.0
        %2834 = vmatprep.subr.mxu0 0.0
        %2835 = vmatpush1.msra.mxu0 0.0
        %2836 = vmatprep.subr.mxu0 0.0
        %2837 = vmatpush1.msra.mxu0 0.0
        %2838 = vmatprep.subr.mxu0 0.0
        %2839 = vmatpush1.msra.mxu0 0.0
        %2840 = vmatprep.subr.mxu0 0.0
        %2841 = vmatpush1.msra.mxu0 0.0
        %2842 = vmatprep.subr.mxu0 0.0
        %2843 = vmatpush1.msra.mxu0 0.0
        %2844 = vmatprep.subr.mxu0 0.0
        %2845 = vmatpush1.msra.mxu0 0.0
        %2846 = vmatprep.subr.mxu0 0.0
        %2847 = vmatpush1.msra.mxu0 0.0
        %2848 = vmatprep.subr.mxu0 0.0
        %2849 = vmatpush1.msra.mxu0 0.0
        %2850 = vmatprep.subr.mxu0 0.0
        %2851 = vmatpush1.msra.mxu0 0.0
        %2852 = vmatprep.subr.mxu0 0.0
        %2853 = vmatpush1.msra.mxu0 0.0
        %2854 = vmatprep.subr.mxu0 0.0
        %2855 = vmatpush1.msra.mxu0 0.0
        %2856 = vmatprep.subr.mxu0 0.0
        %2857 = vmatpush1.msra.mxu0 0.0
        %2858 = vmatprep.subr.mxu0 0.0
        %2859 = vmatpush1.msra.mxu0 0.0
        %2860 = vmatprep.subr.mxu0 0.0
        %v2861 = vand.u32 %v2602, 4294901760
        %v2862 = vsub.f32 %v2602, %v2861
        %v2863 = vand.u32 %v2862, 4294901760
        %v2864 = vsub.f32 %v2862, %v2863
        %v2865 = vand.u32 %v2864, 4294901760
        %2866 = vmatpush1.msra.mxu0 %v2865
        %2867 = vmatprep.subr.mxu0 0.0
        %2868 = vmatpush2.msra.mxu0 0.0
        %2869 = vmatprep.subr.mxu0 0.0
        %2870 = vmatpush2.msra.mxu0 0.0
        %2871 = vmatprep.subr.mxu0 0.0
        %2872 = vmatpush2.msra.mxu0 0.0
        %2873 = vmatprep.subr.mxu0 0.0
        %2874 = vmatpush2.msra.mxu0 0.0
        %2875 = vmatprep.subr.mxu0 0.0
        %2876 = vmatpush2.msra.mxu0 0.0
        %2877 = vmatprep.subr.mxu0 0.0
        %2878 = vmatpush2.msra.mxu0 0.0
        %2879 = vmatprep.subr.mxu0 0.0
        %2880 = vmatpush2.msra.mxu0 0.0
        %2881 = vmatprep.subr.mxu0 0.0
        %2882 = vmatpush2.msra.mxu0 0.0
        %2883 = vmatprep.subr.mxu0 0.0
        %2884 = vmatpush2.msra.mxu0 0.0
        %2885 = vmatprep.subr.mxu0 0.0
        %2886 = vmatpush2.msra.mxu0 0.0
        %2887 = vmatprep.subr.mxu0 0.0
        %2888 = vmatpush2.msra.mxu0 0.0
        %2889 = vmatprep.subr.mxu0 0.0
        %2890 = vmatpush2.msra.mxu0 0.0
        %2891 = vmatprep.subr.mxu0 0.0
        %2892 = vmatpush2.msra.mxu0 0.0
        %2893 = vmatprep.subr.mxu0 0.0
        %2894 = vmatpush2.msra.mxu0 0.0
        %2895 = vmatprep.subr.mxu0 0.0
        %2896 = vmatpush2.msra.mxu0 0.0
        %2897 = vmatprep.subr.mxu0 0.0
        %2898 = vmatpush2.msra.mxu0 0.0
        %2899 = vmatprep.mubr.f32.mxu0 0.0
        %v2900 = vand.u32 %v2554, 4294901760
        %2901 = vmatmul.mubr.f32.gmra.mxu0 %v2900
        %v2902 = vpop.f32.mrf.mxu0
        %v2903 = vadd.f32 %v2677, %v2902
        %v2904 = vpop.f32.mrf.mxu0
        %2905 = vmatprep.mubr.f32.mxu0 0.0
        %v2906 = vand.u32 %v2557, 4294901760
        %2907 = vmatmul.mubr.f32.gmra.mxu0 %v2906
        %v2908 = vpop.f32.mrf.mxu0
        %v2909 = vadd.f32 %v2687, %v2908
        %v2910 = vpop.f32.mrf.mxu0
        %2911 = vmatprep.mubr.f32.mxu0 0.0
        %v2912 = vand.u32 %v2560, 4294901760
        %2913 = vmatmul.mubr.f32.gmra.mxu0 %v2912
        %v2914 = vpop.f32.mrf.mxu0
        %v2915 = vadd.f32 %v2697, %v2914
        %v2916 = vpop.f32.mrf.mxu0
        %2917 = vmatprep.mubr.f32.mxu0 0.0
        %v2918 = vand.u32 %v2563, 4294901760
        %2919 = vmatmul.mubr.f32.gmra.mxu0 %v2918
        %v2920 = vpop.f32.mrf.mxu0
        %v2921 = vadd.f32 %v2707, %v2920
        %v2922 = vpop.f32.mrf.mxu0
        %2923 = vmatprep.mubr.f32.mxu0 0.0
        %v2924 = vand.u32 %v2566, 4294901760
        %2925 = vmatmul.mubr.f32.gmra.mxu0 %v2924
        %v2926 = vpop.f32.mrf.mxu0
        %v2927 = vadd.f32 %v2717, %v2926
        %v2928 = vpop.f32.mrf.mxu0
        %2929 = vmatprep.mubr.f32.mxu0 0.0
        %v2930 = vand.u32 %v2569, 4294901760
        %2931 = vmatmul.mubr.f32.gmra.mxu0 %v2930
        %v2932 = vpop.f32.mrf.mxu0
        %v2933 = vadd.f32 %v2727, %v2932
        %v2934 = vpop.f32.mrf.mxu0
        %2935 = vmatprep.mubr.f32.mxu0 0.0
        %v2936 = vand.u32 %v2572, 4294901760
        %2937 = vmatmul.mubr.f32.gmra.mxu0 %v2936
        %v2938 = vpop.f32.mrf.mxu0
        %v2939 = vadd.f32 %v2737, %v2938
        %v2940 = vpop.f32.mrf.mxu0
        %2941 = vmatprep.mubr.f32.mxu0 0.0
        %v2942 = vand.u32 %v2575, 4294901760
        %2943 = vmatmul.mubr.f32.gmra.mxu0 %v2942
        %v2944 = vpop.f32.mrf.mxu0
        %v2945 = vadd.f32 %v2747, %v2944
        %v2946 = vpop.f32.mrf.mxu0
        %2947 = vmatprep.mubr.f32.mxu0 0.0
        %v2948 = vand.u32 %v2578, 4294901760
        %2949 = vmatmul.mubr.f32.gmra.mxu0 %v2948
        %v2950 = vpop.f32.mrf.mxu0
        %v2951 = vadd.f32 %v2757, %v2950
        %v2952 = vpop.f32.mrf.mxu0
        %2953 = vmatprep.mubr.f32.mxu0 0.0
        %v2954 = vand.u32 %v2581, 4294901760
        %2955 = vmatmul.mubr.f32.gmra.mxu0 %v2954
        %v2956 = vpop.f32.mrf.mxu0
        %v2957 = vadd.f32 %v2767, %v2956
        %v2958 = vpop.f32.mrf.mxu0
        %2959 = vmatprep.mubr.f32.mxu0 0.0
        %v2960 = vand.u32 %v2584, 4294901760
        %2961 = vmatmul.mubr.f32.gmra.mxu0 %v2960
        %v2962 = vpop.f32.mrf.mxu0
        %v2963 = vadd.f32 %v2777, %v2962
        %v2964 = vpop.f32.mrf.mxu0
        %2965 = vmatprep.mubr.f32.mxu0 0.0
        %v2966 = vand.u32 %v2587, 4294901760
        %2967 = vmatmul.mubr.f32.gmra.mxu0 %v2966
        %v2968 = vpop.f32.mrf.mxu0
        %v2969 = vadd.f32 %v2787, %v2968
        %v2970 = vpop.f32.mrf.mxu0
        %2971 = vmatprep.mubr.f32.mxu0 0.0
        %v2972 = vand.u32 %v2590, 4294901760
        %2973 = vmatmul.mubr.f32.gmra.mxu0 %v2972
        %v2974 = vpop.f32.mrf.mxu0
        %v2975 = vadd.f32 %v2797, %v2974
        %v2976 = vpop.f32.mrf.mxu0
        %2977 = vmatprep.mubr.f32.mxu0 0.0
        %v2978 = vand.u32 %v2593, 4294901760
        %2979 = vmatmul.mubr.f32.gmra.mxu0 %v2978
        %v2980 = vpop.f32.mrf.mxu0
        %v2981 = vadd.f32 %v2807, %v2980
        %v2982 = vpop.f32.mrf.mxu0
        %2983 = vmatprep.mubr.f32.mxu0 0.0
        %v2984 = vand.u32 %v2596, 4294901760
        %2985 = vmatmul.mubr.f32.gmra.mxu0 %v2984
        %v2986 = vpop.f32.mrf.mxu0
        %v2987 = vadd.f32 %v2817, %v2986
        %v2988 = vpop.f32.mrf.mxu0
        %2989 = vmatprep.mubr.f32.mxu0 0.0
        %v2990 = vand.u32 %v2599, 4294901760
        %2991 = vmatmul.mubr.f32.gmra.mxu0 %v2990
        %v2992 = vpop.f32.mrf.mxu0
        %v2993 = vadd.f32 %v2827, %v2992
        %v2994 = vpop.f32.mrf.mxu0
        %2995 = vdwg.mxu0
        %2996 = vmatprep.subr.mxu0 0.0
        %2997 = vmatpush1.msra.mxu0 0.0
        %2998 = vmatprep.subr.mxu0 0.0
        %2999 = vmatpush1.msra.mxu0 0.0
        %3000 = vmatprep.subr.mxu0 0.0
        %3001 = vmatpush1.msra.mxu0 0.0
        %3002 = vmatprep.subr.mxu0 0.0
        %3003 = vmatpush1.msra.mxu0 0.0
        %3004 = vmatprep.subr.mxu0 0.0
        %3005 = vmatpush1.msra.mxu0 0.0
        %3006 = vmatprep.subr.mxu0 0.0
        %3007 = vmatpush1.msra.mxu0 0.0
        %3008 = vmatprep.subr.mxu0 0.0
        %3009 = vmatpush1.msra.mxu0 0.0
        %3010 = vmatprep.subr.mxu0 0.0
        %3011 = vmatpush1.msra.mxu0 0.0
        %3012 = vmatprep.subr.mxu0 0.0
        %3013 = vmatpush1.msra.mxu0 0.0
        %3014 = vmatprep.subr.mxu0 0.0
        %3015 = vmatpush1.msra.mxu0 0.0
        %3016 = vmatprep.subr.mxu0 0.0
        %3017 = vmatpush1.msra.mxu0 0.0
        %3018 = vmatprep.subr.mxu0 0.0
        %3019 = vmatpush1.msra.mxu0 0.0
        %3020 = vmatprep.subr.mxu0 0.0
        %3021 = vmatpush1.msra.mxu0 0.0
        %3022 = vmatprep.subr.mxu0 0.0
        %3023 = vmatpush1.msra.mxu0 0.0
        %3024 = vmatprep.subr.mxu0 0.0
        %3025 = vmatpush1.msra.mxu0 0.0
        %3026 = vmatprep.subr.mxu0 0.0
        %v3027 = vand.u32 %v2602, 4294901760
        %v3028 = vsub.f32 %v2602, %v3027
        %3029 = vmatpush1.msra.mxu0 %v3028
        %3030 = vmatprep.subr.mxu0 0.0
        %3031 = vmatpush2.msra.mxu0 0.0
        %3032 = vmatprep.subr.mxu0 0.0
        %3033 = vmatpush2.msra.mxu0 0.0
        %3034 = vmatprep.subr.mxu0 0.0
        %3035 = vmatpush2.msra.mxu0 0.0
        %3036 = vmatprep.subr.mxu0 0.0
        %3037 = vmatpush2.msra.mxu0 0.0
        %3038 = vmatprep.subr.mxu0 0.0
        %3039 = vmatpush2.msra.mxu0 0.0
        %3040 = vmatprep.subr.mxu0 0.0
        %3041 = vmatpush2.msra.mxu0 0.0
        %3042 = vmatprep.subr.mxu0 0.0
        %3043 = vmatpush2.msra.mxu0 0.0
        %3044 = vmatprep.subr.mxu0 0.0
        %3045 = vmatpush2.msra.mxu0 0.0
        %3046 = vmatprep.subr.mxu0 0.0
        %3047 = vmatpush2.msra.mxu0 0.0
        %3048 = vmatprep.subr.mxu0 0.0
        %3049 = vmatpush2.msra.mxu0 0.0
        %3050 = vmatprep.subr.mxu0 0.0
        %3051 = vmatpush2.msra.mxu0 0.0
        %3052 = vmatprep.subr.mxu0 0.0
        %3053 = vmatpush2.msra.mxu0 0.0
        %3054 = vmatprep.subr.mxu0 0.0
        %3055 = vmatpush2.msra.mxu0 0.0
        %3056 = vmatprep.subr.mxu0 0.0
        %3057 = vmatpush2.msra.mxu0 0.0
        %3058 = vmatprep.subr.mxu0 0.0
        %3059 = vmatpush2.msra.mxu0 0.0
        %3060 = vmatprep.subr.mxu0 0.0
        %3061 = vmatpush2.msra.mxu0 0.0
        %3062 = vmatprep.mubr.f32.mxu0 0.0
        %v3063 = vand.u32 %v2554, 4294901760
        %v3064 = vsub.f32 %v2554, %v3063
        %3065 = vmatmul.mubr.f32.gmra.mxu0 %v3064
        %v3066 = vpop.f32.mrf.mxu0
        %v3067 = vadd.f32 %v2903, %v3066
        %v3068 = vpop.f32.mrf.mxu0
        %3069 = vmatprep.mubr.f32.mxu0 0.0
        %v3070 = vand.u32 %v2557, 4294901760
        %v3071 = vsub.f32 %v2557, %v3070
        %3072 = vmatmul.mubr.f32.gmra.mxu0 %v3071
        %v3073 = vpop.f32.mrf.mxu0
        %v3074 = vadd.f32 %v2909, %v3073
        %v3075 = vpop.f32.mrf.mxu0
        %3076 = vmatprep.mubr.f32.mxu0 0.0
        %v3077 = vand.u32 %v2560, 4294901760
        %v3078 = vsub.f32 %v2560, %v3077
        %3079 = vmatmul.mubr.f32.gmra.mxu0 %v3078
        %v3080 = vpop.f32.mrf.mxu0
        %v3081 = vadd.f32 %v2915, %v3080
        %v3082 = vpop.f32.mrf.mxu0
        %3083 = vmatprep.mubr.f32.mxu0 0.0
        %v3084 = vand.u32 %v2563, 4294901760
        %v3085 = vsub.f32 %v2563, %v3084
        %3086 = vmatmul.mubr.f32.gmra.mxu0 %v3085
        %v3087 = vpop.f32.mrf.mxu0
        %v3088 = vadd.f32 %v2921, %v3087
        %v3089 = vpop.f32.mrf.mxu0
        %3090 = vmatprep.mubr.f32.mxu0 0.0
        %v3091 = vand.u32 %v2566, 4294901760
        %v3092 = vsub.f32 %v2566, %v3091
        %3093 = vmatmul.mubr.f32.gmra.mxu0 %v3092
        %v3094 = vpop.f32.mrf.mxu0
        %v3095 = vadd.f32 %v2927, %v3094
        %v3096 = vpop.f32.mrf.mxu0
        %3097 = vmatprep.mubr.f32.mxu0 0.0
        %v3098 = vand.u32 %v2569, 4294901760
        %v3099 = vsub.f32 %v2569, %v3098
        %3100 = vmatmul.mubr.f32.gmra.mxu0 %v3099
        %v3101 = vpop.f32.mrf.mxu0
        %v3102 = vadd.f32 %v2933, %v3101
        %v3103 = vpop.f32.mrf.mxu0
        %3104 = vmatprep.mubr.f32.mxu0 0.0
        %v3105 = vand.u32 %v2572, 4294901760
        %v3106 = vsub.f32 %v2572, %v3105
        %3107 = vmatmul.mubr.f32.gmra.mxu0 %v3106
        %v3108 = vpop.f32.mrf.mxu0
        %v3109 = vadd.f32 %v2939, %v3108
        %v3110 = vpop.f32.mrf.mxu0
        %3111 = vmatprep.mubr.f32.mxu0 0.0
        %v3112 = vand.u32 %v2575, 4294901760
        %v3113 = vsub.f32 %v2575, %v3112
        %3114 = vmatmul.mubr.f32.gmra.mxu0 %v3113
        %v3115 = vpop.f32.mrf.mxu0
        %v3116 = vadd.f32 %v2945, %v3115
        %v3117 = vpop.f32.mrf.mxu0
        %3118 = vmatprep.mubr.f32.mxu0 0.0
        %v3119 = vand.u32 %v2578, 4294901760
        %v3120 = vsub.f32 %v2578, %v3119
        %3121 = vmatmul.mubr.f32.gmra.mxu0 %v3120
        %v3122 = vpop.f32.mrf.mxu0
        %v3123 = vadd.f32 %v2951, %v3122
        %v3124 = vpop.f32.mrf.mxu0
        %3125 = vmatprep.mubr.f32.mxu0 0.0
        %v3126 = vand.u32 %v2581, 4294901760
        %v3127 = vsub.f32 %v2581, %v3126
        %3128 = vmatmul.mubr.f32.gmra.mxu0 %v3127
        %v3129 = vpop.f32.mrf.mxu0
        %v3130 = vadd.f32 %v2957, %v3129
        %v3131 = vpop.f32.mrf.mxu0
        %3132 = vmatprep.mubr.f32.mxu0 0.0
        %v3133 = vand.u32 %v2584, 4294901760
        %v3134 = vsub.f32 %v2584, %v3133
        %3135 = vmatmul.mubr.f32.gmra.mxu0 %v3134
        %v3136 = vpop.f32.mrf.mxu0
        %v3137 = vadd.f32 %v2963, %v3136
        %v3138 = vpop.f32.mrf.mxu0
        %3139 = vmatprep.mubr.f32.mxu0 0.0
        %v3140 = vand.u32 %v2587, 4294901760
        %v3141 = vsub.f32 %v2587, %v3140
        %3142 = vmatmul.mubr.f32.gmra.mxu0 %v3141
        %v3143 = vpop.f32.mrf.mxu0
        %v3144 = vadd.f32 %v2969, %v3143
        %v3145 = vpop.f32.mrf.mxu0
        %3146 = vmatprep.mubr.f32.mxu0 0.0
        %v3147 = vand.u32 %v2590, 4294901760
        %v3148 = vsub.f32 %v2590, %v3147
        %3149 = vmatmul.mubr.f32.gmra.mxu0 %v3148
        %v3150 = vpop.f32.mrf.mxu0
        %v3151 = vadd.f32 %v2975, %v3150
        %v3152 = vpop.f32.mrf.mxu0
        %3153 = vmatprep.mubr.f32.mxu0 0.0
        %v3154 = vand.u32 %v2593, 4294901760
        %v3155 = vsub.f32 %v2593, %v3154
        %3156 = vmatmul.mubr.f32.gmra.mxu0 %v3155
        %v3157 = vpop.f32.mrf.mxu0
        %v3158 = vadd.f32 %v2981, %v3157
        %v3159 = vpop.f32.mrf.mxu0
        %3160 = vmatprep.mubr.f32.mxu0 0.0
        %v3161 = vand.u32 %v2596, 4294901760
        %v3162 = vsub.f32 %v2596, %v3161
        %3163 = vmatmul.mubr.f32.gmra.mxu0 %v3162
        %v3164 = vpop.f32.mrf.mxu0
        %v3165 = vadd.f32 %v2987, %v3164
        %v3166 = vpop.f32.mrf.mxu0
        %3167 = vmatprep.mubr.f32.mxu0 0.0
        %v3168 = vand.u32 %v2599, 4294901760
        %v3169 = vsub.f32 %v2599, %v3168
        %3170 = vmatmul.mubr.f32.gmra.mxu0 %v3169
        %v3171 = vpop.f32.mrf.mxu0
        %v3172 = vadd.f32 %v2993, %v3171
        %v3173 = vpop.f32.mrf.mxu0
        %3174 = vdwg.mxu0
        %3175 = vmatprep.subr.mxu0 0.0
        %3176 = vmatpush1.msra.mxu0 0.0
        %3177 = vmatprep.subr.mxu0 0.0
        %3178 = vmatpush1.msra.mxu0 0.0
        %3179 = vmatprep.subr.mxu0 0.0
        %3180 = vmatpush1.msra.mxu0 0.0
        %3181 = vmatprep.subr.mxu0 0.0
        %3182 = vmatpush1.msra.mxu0 0.0
        %3183 = vmatprep.subr.mxu0 0.0
        %3184 = vmatpush1.msra.mxu0 0.0
        %3185 = vmatprep.subr.mxu0 0.0
        %3186 = vmatpush1.msra.mxu0 0.0
        %3187 = vmatprep.subr.mxu0 0.0
        %3188 = vmatpush1.msra.mxu0 0.0
        %3189 = vmatprep.subr.mxu0 0.0
        %3190 = vmatpush1.msra.mxu0 0.0
        %3191 = vmatprep.subr.mxu0 0.0
        %3192 = vmatpush1.msra.mxu0 0.0
        %3193 = vmatprep.subr.mxu0 0.0
        %3194 = vmatpush1.msra.mxu0 0.0
        %3195 = vmatprep.subr.mxu0 0.0
        %3196 = vmatpush1.msra.mxu0 0.0
        %3197 = vmatprep.subr.mxu0 0.0
        %3198 = vmatpush1.msra.mxu0 0.0
        %3199 = vmatprep.subr.mxu0 0.0
        %3200 = vmatpush1.msra.mxu0 0.0
        %3201 = vmatprep.subr.mxu0 0.0
        %3202 = vmatpush1.msra.mxu0 0.0
        %3203 = vmatprep.subr.mxu0 0.0
        %3204 = vmatpush1.msra.mxu0 0.0
        %3205 = vmatprep.subr.mxu0 0.0
        %v3206 = vand.u32 %v2602, 4294901760
        %3207 = vmatpush1.msra.mxu0 %v3206
        %3208 = vmatprep.subr.mxu0 0.0
        %3209 = vmatpush2.msra.mxu0 0.0
        %3210 = vmatprep.subr.mxu0 0.0
        %3211 = vmatpush2.msra.mxu0 0.0
        %3212 = vmatprep.subr.mxu0 0.0
        %3213 = vmatpush2.msra.mxu0 0.0
        %3214 = vmatprep.subr.mxu0 0.0
        %3215 = vmatpush2.msra.mxu0 0.0
        %3216 = vmatprep.subr.mxu0 0.0
        %3217 = vmatpush2.msra.mxu0 0.0
        %3218 = vmatprep.subr.mxu0 0.0
        %3219 = vmatpush2.msra.mxu0 0.0
        %3220 = vmatprep.subr.mxu0 0.0
        %3221 = vmatpush2.msra.mxu0 0.0
        %3222 = vmatprep.subr.mxu0 0.0
        %3223 = vmatpush2.msra.mxu0 0.0
        %3224 = vmatprep.subr.mxu0 0.0
        %3225 = vmatpush2.msra.mxu0 0.0
        %3226 = vmatprep.subr.mxu0 0.0
        %3227 = vmatpush2.msra.mxu0 0.0
        %3228 = vmatprep.subr.mxu0 0.0
        %3229 = vmatpush2.msra.mxu0 0.0
        %3230 = vmatprep.subr.mxu0 0.0
        %3231 = vmatpush2.msra.mxu0 0.0
        %3232 = vmatprep.subr.mxu0 0.0
        %3233 = vmatpush2.msra.mxu0 0.0
        %3234 = vmatprep.subr.mxu0 0.0
        %3235 = vmatpush2.msra.mxu0 0.0
        %3236 = vmatprep.subr.mxu0 0.0
        %3237 = vmatpush2.msra.mxu0 0.0
        %3238 = vmatprep.subr.mxu0 0.0
        %3239 = vmatpush2.msra.mxu0 0.0
        %3240 = vmatprep.mubr.f32.mxu0 0.0
        %v3241 = vand.u32 %v2554, 4294901760
        %v3242 = vsub.f32 %v2554, %v3241
        %v3243 = vand.u32 %v3242, 4294901760
        %3244 = vmatmul.mubr.f32.gmra.mxu0 %v3243
        %v3245 = vpop.f32.mrf.mxu0
        %v3246 = vadd.f32 %v3067, %v3245
        %v3247 = vpop.f32.mrf.mxu0
        %3248 = vmatprep.mubr.f32.mxu0 0.0
        %v3249 = vand.u32 %v2557, 4294901760
        %v3250 = vsub.f32 %v2557, %v3249
        %v3251 = vand.u32 %v3250, 4294901760
        %3252 = vmatmul.mubr.f32.gmra.mxu0 %v3251
        %v3253 = vpop.f32.mrf.mxu0
        %v3254 = vadd.f32 %v3074, %v3253
        %v3255 = vpop.f32.mrf.mxu0
        %3256 = vmatprep.mubr.f32.mxu0 0.0
        %v3257 = vand.u32 %v2560, 4294901760
        %v3258 = vsub.f32 %v2560, %v3257
        %v3259 = vand.u32 %v3258, 4294901760
        %3260 = vmatmul.mubr.f32.gmra.mxu0 %v3259
        %v3261 = vpop.f32.mrf.mxu0
        %v3262 = vadd.f32 %v3081, %v3261
        %v3263 = vpop.f32.mrf.mxu0
        %3264 = vmatprep.mubr.f32.mxu0 0.0
        %v3265 = vand.u32 %v2563, 4294901760
        %v3266 = vsub.f32 %v2563, %v3265
        %v3267 = vand.u32 %v3266, 4294901760
        %3268 = vmatmul.mubr.f32.gmra.mxu0 %v3267
        %v3269 = vpop.f32.mrf.mxu0
        %v3270 = vadd.f32 %v3088, %v3269
        %v3271 = vpop.f32.mrf.mxu0
        %3272 = vmatprep.mubr.f32.mxu0 0.0
        %v3273 = vand.u32 %v2566, 4294901760
        %v3274 = vsub.f32 %v2566, %v3273
        %v3275 = vand.u32 %v3274, 4294901760
        %3276 = vmatmul.mubr.f32.gmra.mxu0 %v3275
        %v3277 = vpop.f32.mrf.mxu0
        %v3278 = vadd.f32 %v3095, %v3277
        %v3279 = vpop.f32.mrf.mxu0
        %3280 = vmatprep.mubr.f32.mxu0 0.0
        %v3281 = vand.u32 %v2569, 4294901760
        %v3282 = vsub.f32 %v2569, %v3281
        %v3283 = vand.u32 %v3282, 4294901760
        %3284 = vmatmul.mubr.f32.gmra.mxu0 %v3283
        %v3285 = vpop.f32.mrf.mxu0
        %v3286 = vadd.f32 %v3102, %v3285
        %v3287 = vpop.f32.mrf.mxu0
        %3288 = vmatprep.mubr.f32.mxu0 0.0
        %v3289 = vand.u32 %v2572, 4294901760
        %v3290 = vsub.f32 %v2572, %v3289
        %v3291 = vand.u32 %v3290, 4294901760
        %3292 = vmatmul.mubr.f32.gmra.mxu0 %v3291
        %v3293 = vpop.f32.mrf.mxu0
        %v3294 = vadd.f32 %v3109, %v3293
        %v3295 = vpop.f32.mrf.mxu0
        %3296 = vmatprep.mubr.f32.mxu0 0.0
        %v3297 = vand.u32 %v2575, 4294901760
        %v3298 = vsub.f32 %v2575, %v3297
        %v3299 = vand.u32 %v3298, 4294901760
        %3300 = vmatmul.mubr.f32.gmra.mxu0 %v3299
        %v3301 = vpop.f32.mrf.mxu0
        %v3302 = vadd.f32 %v3116, %v3301
        %v3303 = vpop.f32.mrf.mxu0
        %3304 = vmatprep.mubr.f32.mxu0 0.0
        %v3305 = vand.u32 %v2578, 4294901760
        %v3306 = vsub.f32 %v2578, %v3305
        %v3307 = vand.u32 %v3306, 4294901760
        %3308 = vmatmul.mubr.f32.gmra.mxu0 %v3307
        %v3309 = vpop.f32.mrf.mxu0
        %v3310 = vadd.f32 %v3123, %v3309
        %v3311 = vpop.f32.mrf.mxu0
        %3312 = vmatprep.mubr.f32.mxu0 0.0
        %v3313 = vand.u32 %v2581, 4294901760
        %v3314 = vsub.f32 %v2581, %v3313
        %v3315 = vand.u32 %v3314, 4294901760
        %3316 = vmatmul.mubr.f32.gmra.mxu0 %v3315
        %v3317 = vpop.f32.mrf.mxu0
        %v3318 = vadd.f32 %v3130, %v3317
        %v3319 = vpop.f32.mrf.mxu0
        %3320 = vmatprep.mubr.f32.mxu0 0.0
        %v3321 = vand.u32 %v2584, 4294901760
        %v3322 = vsub.f32 %v2584, %v3321
        %v3323 = vand.u32 %v3322, 4294901760
        %3324 = vmatmul.mubr.f32.gmra.mxu0 %v3323
        %v3325 = vpop.f32.mrf.mxu0
        %v3326 = vadd.f32 %v3137, %v3325
        %v3327 = vpop.f32.mrf.mxu0
        %3328 = vmatprep.mubr.f32.mxu0 0.0
        %v3329 = vand.u32 %v2587, 4294901760
        %v3330 = vsub.f32 %v2587, %v3329
        %v3331 = vand.u32 %v3330, 4294901760
        %3332 = vmatmul.mubr.f32.gmra.mxu0 %v3331
        %v3333 = vpop.f32.mrf.mxu0
        %v3334 = vadd.f32 %v3144, %v3333
        %v3335 = vpop.f32.mrf.mxu0
        %3336 = vmatprep.mubr.f32.mxu0 0.0
        %v3337 = vand.u32 %v2590, 4294901760
        %v3338 = vsub.f32 %v2590, %v3337
        %v3339 = vand.u32 %v3338, 4294901760
        %3340 = vmatmul.mubr.f32.gmra.mxu0 %v3339
        %v3341 = vpop.f32.mrf.mxu0
        %v3342 = vadd.f32 %v3151, %v3341
        %v3343 = vpop.f32.mrf.mxu0
        %3344 = vmatprep.mubr.f32.mxu0 0.0
        %v3345 = vand.u32 %v2593, 4294901760
        %v3346 = vsub.f32 %v2593, %v3345
        %v3347 = vand.u32 %v3346, 4294901760
        %3348 = vmatmul.mubr.f32.gmra.mxu0 %v3347
        %v3349 = vpop.f32.mrf.mxu0
        %v3350 = vadd.f32 %v3158, %v3349
        %v3351 = vpop.f32.mrf.mxu0
        %3352 = vmatprep.mubr.f32.mxu0 0.0
        %v3353 = vand.u32 %v2596, 4294901760
        %v3354 = vsub.f32 %v2596, %v3353
        %v3355 = vand.u32 %v3354, 4294901760
        %3356 = vmatmul.mubr.f32.gmra.mxu0 %v3355
        %v3357 = vpop.f32.mrf.mxu0
        %v3358 = vadd.f32 %v3165, %v3357
        %v3359 = vpop.f32.mrf.mxu0
        %3360 = vmatprep.mubr.f32.mxu0 0.0
        %v3361 = vand.u32 %v2599, 4294901760
        %v3362 = vsub.f32 %v2599, %v3361
        %v3363 = vand.u32 %v3362, 4294901760
        %3364 = vmatmul.mubr.f32.gmra.mxu0 %v3363
        %v3365 = vpop.f32.mrf.mxu0
        %v3366 = vadd.f32 %v3172, %v3365
        %v3367 = vpop.f32.mrf.mxu0
        %3368 = vdwg.mxu0
        %3369 = vmatprep.subr.mxu0 0.0
        %3370 = vmatpush1.msra.mxu0 0.0
        %3371 = vmatprep.subr.mxu0 0.0
        %3372 = vmatpush1.msra.mxu0 0.0
        %3373 = vmatprep.subr.mxu0 0.0
        %3374 = vmatpush1.msra.mxu0 0.0
        %3375 = vmatprep.subr.mxu0 0.0
        %3376 = vmatpush1.msra.mxu0 0.0
        %3377 = vmatprep.subr.mxu0 0.0
        %3378 = vmatpush1.msra.mxu0 0.0
        %3379 = vmatprep.subr.mxu0 0.0
        %3380 = vmatpush1.msra.mxu0 0.0
        %3381 = vmatprep.subr.mxu0 0.0
        %3382 = vmatpush1.msra.mxu0 0.0
        %3383 = vmatprep.subr.mxu0 0.0
        %3384 = vmatpush1.msra.mxu0 0.0
        %3385 = vmatprep.subr.mxu0 0.0
        %3386 = vmatpush1.msra.mxu0 0.0
        %3387 = vmatprep.subr.mxu0 0.0
        %3388 = vmatpush1.msra.mxu0 0.0
        %3389 = vmatprep.subr.mxu0 0.0
        %3390 = vmatpush1.msra.mxu0 0.0
        %3391 = vmatprep.subr.mxu0 0.0
        %3392 = vmatpush1.msra.mxu0 0.0
        %3393 = vmatprep.subr.mxu0 0.0
        %3394 = vmatpush1.msra.mxu0 0.0
        %3395 = vmatprep.subr.mxu0 0.0
        %3396 = vmatpush1.msra.mxu0 0.0
        %3397 = vmatprep.subr.mxu0 0.0
        %3398 = vmatpush1.msra.mxu0 0.0
        %3399 = vmatprep.subr.mxu0 0.0
        %v3400 = vand.u32 %v2602, 4294901760
        %v3401 = vsub.f32 %v2602, %v3400
        %v3402 = vand.u32 %v3401, 4294901760
        %3403 = vmatpush1.msra.mxu0 %v3402
        %3404 = vmatprep.subr.mxu0 0.0
        %3405 = vmatpush2.msra.mxu0 0.0
        %3406 = vmatprep.subr.mxu0 0.0
        %3407 = vmatpush2.msra.mxu0 0.0
        %3408 = vmatprep.subr.mxu0 0.0
        %3409 = vmatpush2.msra.mxu0 0.0
        %3410 = vmatprep.subr.mxu0 0.0
        %3411 = vmatpush2.msra.mxu0 0.0
        %3412 = vmatprep.subr.mxu0 0.0
        %3413 = vmatpush2.msra.mxu0 0.0
        %3414 = vmatprep.subr.mxu0 0.0
        %3415 = vmatpush2.msra.mxu0 0.0
        %3416 = vmatprep.subr.mxu0 0.0
        %3417 = vmatpush2.msra.mxu0 0.0
        %3418 = vmatprep.subr.mxu0 0.0
        %3419 = vmatpush2.msra.mxu0 0.0
        %3420 = vmatprep.subr.mxu0 0.0
        %3421 = vmatpush2.msra.mxu0 0.0
        %3422 = vmatprep.subr.mxu0 0.0
        %3423 = vmatpush2.msra.mxu0 0.0
        %3424 = vmatprep.subr.mxu0 0.0
        %3425 = vmatpush2.msra.mxu0 0.0
        %3426 = vmatprep.subr.mxu0 0.0
        %3427 = vmatpush2.msra.mxu0 0.0
        %3428 = vmatprep.subr.mxu0 0.0
        %3429 = vmatpush2.msra.mxu0 0.0
        %3430 = vmatprep.subr.mxu0 0.0
        %3431 = vmatpush2.msra.mxu0 0.0
        %3432 = vmatprep.subr.mxu0 0.0
        %3433 = vmatpush2.msra.mxu0 0.0
        %3434 = vmatprep.subr.mxu0 0.0
        %3435 = vmatpush2.msra.mxu0 0.0
        %3436 = vmatprep.mubr.f32.mxu0 0.0
        %v3437 = vand.u32 %v2554, 4294901760
        %3438 = vmatmul.mubr.f32.gmra.mxu0 %v3437
        %v3439 = vpop.f32.mrf.mxu0
        %v3440 = vadd.f32 %v3246, %v3439
        %v3441 = vpop.f32.mrf.mxu0
        %3442 = vmatprep.mubr.f32.mxu0 0.0
        %v3443 = vand.u32 %v2557, 4294901760
        %3444 = vmatmul.mubr.f32.gmra.mxu0 %v3443
        %v3445 = vpop.f32.mrf.mxu0
        %v3446 = vadd.f32 %v3254, %v3445
        %v3447 = vpop.f32.mrf.mxu0
        %3448 = vmatprep.mubr.f32.mxu0 0.0
        %v3449 = vand.u32 %v2560, 4294901760
        %3450 = vmatmul.mubr.f32.gmra.mxu0 %v3449
        %v3451 = vpop.f32.mrf.mxu0
        %v3452 = vadd.f32 %v3262, %v3451
        %v3453 = vpop.f32.mrf.mxu0
        %3454 = vmatprep.mubr.f32.mxu0 0.0
        %v3455 = vand.u32 %v2563, 4294901760
        %3456 = vmatmul.mubr.f32.gmra.mxu0 %v3455
        %v3457 = vpop.f32.mrf.mxu0
        %v3458 = vadd.f32 %v3270, %v3457
        %v3459 = vpop.f32.mrf.mxu0
        %3460 = vmatprep.mubr.f32.mxu0 0.0
        %v3461 = vand.u32 %v2566, 4294901760
        %3462 = vmatmul.mubr.f32.gmra.mxu0 %v3461
        %v3463 = vpop.f32.mrf.mxu0
        %v3464 = vadd.f32 %v3278, %v3463
        %v3465 = vpop.f32.mrf.mxu0
        %3466 = vmatprep.mubr.f32.mxu0 0.0
        %v3467 = vand.u32 %v2569, 4294901760
        %3468 = vmatmul.mubr.f32.gmra.mxu0 %v3467
        %v3469 = vpop.f32.mrf.mxu0
        %v3470 = vadd.f32 %v3286, %v3469
        %v3471 = vpop.f32.mrf.mxu0
        %3472 = vmatprep.mubr.f32.mxu0 0.0
        %v3473 = vand.u32 %v2572, 4294901760
        %3474 = vmatmul.mubr.f32.gmra.mxu0 %v3473
        %v3475 = vpop.f32.mrf.mxu0
        %v3476 = vadd.f32 %v3294, %v3475
        %v3477 = vpop.f32.mrf.mxu0
        %3478 = vmatprep.mubr.f32.mxu0 0.0
        %v3479 = vand.u32 %v2575, 4294901760
        %3480 = vmatmul.mubr.f32.gmra.mxu0 %v3479
        %v3481 = vpop.f32.mrf.mxu0
        %v3482 = vadd.f32 %v3302, %v3481
        %v3483 = vpop.f32.mrf.mxu0
        %3484 = vmatprep.mubr.f32.mxu0 0.0
        %v3485 = vand.u32 %v2578, 4294901760
        %3486 = vmatmul.mubr.f32.gmra.mxu0 %v3485
        %v3487 = vpop.f32.mrf.mxu0
        %v3488 = vadd.f32 %v3310, %v3487
        %v3489 = vpop.f32.mrf.mxu0
        %3490 = vmatprep.mubr.f32.mxu0 0.0
        %v3491 = vand.u32 %v2581, 4294901760
        %3492 = vmatmul.mubr.f32.gmra.mxu0 %v3491
        %v3493 = vpop.f32.mrf.mxu0
        %v3494 = vadd.f32 %v3318, %v3493
        %v3495 = vpop.f32.mrf.mxu0
        %3496 = vmatprep.mubr.f32.mxu0 0.0
        %v3497 = vand.u32 %v2584, 4294901760
        %3498 = vmatmul.mubr.f32.gmra.mxu0 %v3497
        %v3499 = vpop.f32.mrf.mxu0
        %v3500 = vadd.f32 %v3326, %v3499
        %v3501 = vpop.f32.mrf.mxu0
        %3502 = vmatprep.mubr.f32.mxu0 0.0
        %v3503 = vand.u32 %v2587, 4294901760
        %3504 = vmatmul.mubr.f32.gmra.mxu0 %v3503
        %v3505 = vpop.f32.mrf.mxu0
        %v3506 = vadd.f32 %v3334, %v3505
        %v3507 = vpop.f32.mrf.mxu0
        %3508 = vmatprep.mubr.f32.mxu0 0.0
        %v3509 = vand.u32 %v2590, 4294901760
        %3510 = vmatmul.mubr.f32.gmra.mxu0 %v3509
        %v3511 = vpop.f32.mrf.mxu0
        %v3512 = vadd.f32 %v3342, %v3511
        %v3513 = vpop.f32.mrf.mxu0
        %3514 = vmatprep.mubr.f32.mxu0 0.0
        %v3515 = vand.u32 %v2593, 4294901760
        %3516 = vmatmul.mubr.f32.gmra.mxu0 %v3515
        %v3517 = vpop.f32.mrf.mxu0
        %v3518 = vadd.f32 %v3350, %v3517
        %v3519 = vpop.f32.mrf.mxu0
        %3520 = vmatprep.mubr.f32.mxu0 0.0
        %v3521 = vand.u32 %v2596, 4294901760
        %3522 = vmatmul.mubr.f32.gmra.mxu0 %v3521
        %v3523 = vpop.f32.mrf.mxu0
        %v3524 = vadd.f32 %v3358, %v3523
        %v3525 = vpop.f32.mrf.mxu0
        %3526 = vmatprep.mubr.f32.mxu0 0.0
        %v3527 = vand.u32 %v2599, 4294901760
        %3528 = vmatmul.mubr.f32.gmra.mxu0 %v3527
        %v3529 = vpop.f32.mrf.mxu0
        %v3530 = vadd.f32 %v3366, %v3529
        %v3531 = vpop.f32.mrf.mxu0
        %3532 = vdwg.mxu0
        %3533 = vmatprep.subr.mxu0 0.0
        %3534 = vmatpush1.msra.mxu0 0.0
        %3535 = vmatprep.subr.mxu0 0.0
        %3536 = vmatpush1.msra.mxu0 0.0
        %3537 = vmatprep.subr.mxu0 0.0
        %3538 = vmatpush1.msra.mxu0 0.0
        %3539 = vmatprep.subr.mxu0 0.0
        %3540 = vmatpush1.msra.mxu0 0.0
        %3541 = vmatprep.subr.mxu0 0.0
        %3542 = vmatpush1.msra.mxu0 0.0
        %3543 = vmatprep.subr.mxu0 0.0
        %3544 = vmatpush1.msra.mxu0 0.0
        %3545 = vmatprep.subr.mxu0 0.0
        %3546 = vmatpush1.msra.mxu0 0.0
        %3547 = vmatprep.subr.mxu0 0.0
        %3548 = vmatpush1.msra.mxu0 0.0
        %3549 = vmatprep.subr.mxu0 0.0
        %3550 = vmatpush1.msra.mxu0 0.0
        %3551 = vmatprep.subr.mxu0 0.0
        %3552 = vmatpush1.msra.mxu0 0.0
        %3553 = vmatprep.subr.mxu0 0.0
        %3554 = vmatpush1.msra.mxu0 0.0
        %3555 = vmatprep.subr.mxu0 0.0
        %3556 = vmatpush1.msra.mxu0 0.0
        %3557 = vmatprep.subr.mxu0 0.0
        %3558 = vmatpush1.msra.mxu0 0.0
        %3559 = vmatprep.subr.mxu0 0.0
        %3560 = vmatpush1.msra.mxu0 0.0
        %3561 = vmatprep.subr.mxu0 0.0
        %3562 = vmatpush1.msra.mxu0 0.0
        %3563 = vmatprep.subr.mxu0 0.0
        %v3564 = vand.u32 %v2602, 4294901760
        %3565 = vmatpush1.msra.mxu0 %v3564
        %3566 = vmatprep.subr.mxu0 0.0
        %3567 = vmatpush2.msra.mxu0 0.0
        %3568 = vmatprep.subr.mxu0 0.0
        %3569 = vmatpush2.msra.mxu0 0.0
        %3570 = vmatprep.subr.mxu0 0.0
        %3571 = vmatpush2.msra.mxu0 0.0
        %3572 = vmatprep.subr.mxu0 0.0
        %3573 = vmatpush2.msra.mxu0 0.0
        %3574 = vmatprep.subr.mxu0 0.0
        %3575 = vmatpush2.msra.mxu0 0.0
        %3576 = vmatprep.subr.mxu0 0.0
        %3577 = vmatpush2.msra.mxu0 0.0
        %3578 = vmatprep.subr.mxu0 0.0
        %3579 = vmatpush2.msra.mxu0 0.0
        %3580 = vmatprep.subr.mxu0 0.0
        %3581 = vmatpush2.msra.mxu0 0.0
        %3582 = vmatprep.subr.mxu0 0.0
        %3583 = vmatpush2.msra.mxu0 0.0
        %3584 = vmatprep.subr.mxu0 0.0
        %3585 = vmatpush2.msra.mxu0 0.0
        %3586 = vmatprep.subr.mxu0 0.0
        %3587 = vmatpush2.msra.mxu0 0.0
        %3588 = vmatprep.subr.mxu0 0.0
        %3589 = vmatpush2.msra.mxu0 0.0
        %3590 = vmatprep.subr.mxu0 0.0
        %3591 = vmatpush2.msra.mxu0 0.0
        %3592 = vmatprep.subr.mxu0 0.0
        %3593 = vmatpush2.msra.mxu0 0.0
        %3594 = vmatprep.subr.mxu0 0.0
        %3595 = vmatpush2.msra.mxu0 0.0
        %3596 = vmatprep.subr.mxu0 0.0
        %3597 = vmatpush2.msra.mxu0 0.0
        %3598 = vmatprep.mubr.f32.mxu0 0.0
        %v3599 = vand.u32 %v2554, 4294901760
        %3600 = vmatmul.mubr.f32.gmra.mxu0 %v3599
        %v3601 = vpop.f32.mrf.mxu0
        %v3602 = vadd.f32 %v3440, %v3601
        %v3603 = vpop.f32.mrf.mxu0
        %3604 = vmatprep.mubr.f32.mxu0 0.0
        %v3605 = vand.u32 %v2557, 4294901760
        %3606 = vmatmul.mubr.f32.gmra.mxu0 %v3605
        %v3607 = vpop.f32.mrf.mxu0
        %v3608 = vadd.f32 %v3446, %v3607
        %v3609 = vpop.f32.mrf.mxu0
        %3610 = vmatprep.mubr.f32.mxu0 0.0
        %v3611 = vand.u32 %v2560, 4294901760
        %3612 = vmatmul.mubr.f32.gmra.mxu0 %v3611
        %v3613 = vpop.f32.mrf.mxu0
        %v3614 = vadd.f32 %v3452, %v3613
        %v3615 = vpop.f32.mrf.mxu0
        %3616 = vmatprep.mubr.f32.mxu0 0.0
        %v3617 = vand.u32 %v2563, 4294901760
        %3618 = vmatmul.mubr.f32.gmra.mxu0 %v3617
        %v3619 = vpop.f32.mrf.mxu0
        %v3620 = vadd.f32 %v3458, %v3619
        %v3621 = vpop.f32.mrf.mxu0
        %3622 = vmatprep.mubr.f32.mxu0 0.0
        %v3623 = vand.u32 %v2566, 4294901760
        %3624 = vmatmul.mubr.f32.gmra.mxu0 %v3623
        %v3625 = vpop.f32.mrf.mxu0
        %v3626 = vadd.f32 %v3464, %v3625
        %v3627 = vpop.f32.mrf.mxu0
        %3628 = vmatprep.mubr.f32.mxu0 0.0
        %v3629 = vand.u32 %v2569, 4294901760
        %3630 = vmatmul.mubr.f32.gmra.mxu0 %v3629
        %v3631 = vpop.f32.mrf.mxu0
        %v3632 = vadd.f32 %v3470, %v3631
        %v3633 = vpop.f32.mrf.mxu0
        %3634 = vmatprep.mubr.f32.mxu0 0.0
        %v3635 = vand.u32 %v2572, 4294901760
        %3636 = vmatmul.mubr.f32.gmra.mxu0 %v3635
        %v3637 = vpop.f32.mrf.mxu0
        %v3638 = vadd.f32 %v3476, %v3637
        %v3639 = vpop.f32.mrf.mxu0
        %3640 = vmatprep.mubr.f32.mxu0 0.0
        %v3641 = vand.u32 %v2575, 4294901760
        %3642 = vmatmul.mubr.f32.gmra.mxu0 %v3641
        %v3643 = vpop.f32.mrf.mxu0
        %v3644 = vadd.f32 %v3482, %v3643
        %v3645 = vpop.f32.mrf.mxu0
        %3646 = vmatprep.mubr.f32.mxu0 0.0
        %v3647 = vand.u32 %v2578, 4294901760
        %3648 = vmatmul.mubr.f32.gmra.mxu0 %v3647
        %v3649 = vpop.f32.mrf.mxu0
        %v3650 = vadd.f32 %v3488, %v3649
        %v3651 = vpop.f32.mrf.mxu0
        %3652 = vmatprep.mubr.f32.mxu0 0.0
        %v3653 = vand.u32 %v2581, 4294901760
        %3654 = vmatmul.mubr.f32.gmra.mxu0 %v3653
        %v3655 = vpop.f32.mrf.mxu0
        %v3656 = vadd.f32 %v3494, %v3655
        %v3657 = vpop.f32.mrf.mxu0
        %3658 = vmatprep.mubr.f32.mxu0 0.0
        %v3659 = vand.u32 %v2584, 4294901760
        %3660 = vmatmul.mubr.f32.gmra.mxu0 %v3659
        %v3661 = vpop.f32.mrf.mxu0
        %v3662 = vadd.f32 %v3500, %v3661
        %v3663 = vpop.f32.mrf.mxu0
        %3664 = vmatprep.mubr.f32.mxu0 0.0
        %v3665 = vand.u32 %v2587, 4294901760
        %3666 = vmatmul.mubr.f32.gmra.mxu0 %v3665
        %v3667 = vpop.f32.mrf.mxu0
        %v3668 = vadd.f32 %v3506, %v3667
        %v3669 = vpop.f32.mrf.mxu0
        %3670 = vmatprep.mubr.f32.mxu0 0.0
        %v3671 = vand.u32 %v2590, 4294901760
        %3672 = vmatmul.mubr.f32.gmra.mxu0 %v3671
        %v3673 = vpop.f32.mrf.mxu0
        %v3674 = vadd.f32 %v3512, %v3673
        %v3675 = vpop.f32.mrf.mxu0
        %3676 = vmatprep.mubr.f32.mxu0 0.0
        %v3677 = vand.u32 %v2593, 4294901760
        %3678 = vmatmul.mubr.f32.gmra.mxu0 %v3677
        %v3679 = vpop.f32.mrf.mxu0
        %v3680 = vadd.f32 %v3518, %v3679
        %v3681 = vpop.f32.mrf.mxu0
        %3682 = vmatprep.mubr.f32.mxu0 0.0
        %v3683 = vand.u32 %v2596, 4294901760
        %3684 = vmatmul.mubr.f32.gmra.mxu0 %v3683
        %v3685 = vpop.f32.mrf.mxu0
        %v3686 = vadd.f32 %v3524, %v3685
        %v3687 = vpop.f32.mrf.mxu0
        %3688 = vmatprep.mubr.f32.mxu0 0.0
        %v3689 = vand.u32 %v2599, 4294901760
        %3690 = vmatmul.mubr.f32.gmra.mxu0 %v3689
        %v3691 = vpop.f32.mrf.mxu0
        %v3692 = vadd.f32 %v3530, %v3691
        %v3693 = vpop.f32.mrf.mxu0
        %3694 = vdwg.mxu0
        %v3695 = vadd.f32 %v215, %v3602
        %v3696 = vadd.f32 %v216, %v3608
        %v3697 = vadd.f32 %v217, %v3614
        %v3698 = vadd.f32 %v218, %v3620
        %v3699 = vadd.f32 %v219, %v3626
        %v3700 = vadd.f32 %v220, %v3632
        %v3701 = vadd.f32 %v221, %v3638
        %v3702 = vadd.f32 %v222, %v3644
        %v3703 = vadd.f32 %v223, %v3650
        %v3704 = vadd.f32 %v224, %v3656
        %v3705 = vadd.f32 %v225, %v3662
        %v3706 = vadd.f32 %v226, %v3668
        %v3707 = vadd.f32 %v227, %v3674
        %v3708 = vadd.f32 %v228, %v3680
        %v3709 = vadd.f32 %v229, %v3686
        %v3710 = vadd.f32 %v230, %v3692
        %3711 = vst.msk [vmem:[%s213] sm:$0xff] %vm233, %v3695
        %3712 = vst.msk [vmem:[%s213 + $0x8] sm:$0xff] %vm233, %v3696
        %3713 = vst.msk [vmem:[%s213 + $0x10] sm:$0xff] %vm233, %v3697
        %3714 = vst.msk [vmem:[%s213 + $0x18] sm:$0xff] %vm233, %v3698
        %3715 = vst.msk [vmem:[%s213 + $0x20] sm:$0xff] %vm233, %v3699
        %3716 = vst.msk [vmem:[%s213 + $0x28] sm:$0xff] %vm233, %v3700
        %3717 = vst.msk [vmem:[%s213 + $0x30] sm:$0xff] %vm233, %v3701
        %3718 = vst.msk [vmem:[%s213 + $0x38] sm:$0xff] %vm233, %v3702
        %3719 = vst.msk [vmem:[%s213 + $0x40] sm:$0xff] %vm233, %v3703
        %3720 = vst.msk [vmem:[%s213 + $0x48] sm:$0xff] %vm233, %v3704
        %3721 = vst.msk [vmem:[%s213 + $0x50] sm:$0xff] %vm233, %v3705
        %3722 = vst.msk [vmem:[%s213 + $0x58] sm:$0xff] %vm233, %v3706
        %3723 = vst.msk [vmem:[%s213 + $0x60] sm:$0xff] %vm233, %v3707
        %3724 = vst.msk [vmem:[%s213 + $0x68] sm:$0xff] %vm233, %v3708
        %3725 = vst.msk [vmem:[%s213 + $0x70] sm:$0xff] %vm233, %v3709
        %3726 = vst.msk [vmem:[%s213 + $0x78] sm:$0xff] %vm233, %v3710
        %s3727 = smul.u32 16, %s16
        %p3728 = scmp.lt.s32.totalorder %s3727, 31
        %s3729 = scalar_select %p3728, %s3727, 31
        %s3730 = smul.addr %s3729, 8
        %s3731 = scalar_lea.vmem %s4, %s3730
        // Predicated region
        $region41: #{tpu_custom_call.1} parent=35 // pred_check
          %p3732 = pneg %p123
        $region42: #{tpu_custom_call.1} parent=35 // pred_check_branch
          %3734 = sbr.rel (%p3732) target = $region44
        $region43: #{tpu_custom_call.1} parent=35 // pred_region
          %s3735 = smul.u32 16, %s16
        $region44: #{tpu_custom_call.1} parent=35 // pred_fallthru
          _
      $region36: #{tpu_custom_call.1} parent=5 // pred_fallthru
        _
      %p3736 = scmp.le.s32.totalorder 2, %s11
      // Predicated region
      $region45: #{tpu_custom_call.1} parent=5 // pred_check
        %p3737 = pneg %p3736
      $region46: #{tpu_custom_call.1} parent=5 // pred_check_branch
        %3739 = sbr.rel (%p3737) target = $region48
      $region47: #{tpu_custom_call.1} parent=5 // pred_region
        %s3740 = ssub.s32 %s11, 2
        // Predicated region
        $region49: #{tpu_custom_call.1} parent=47 // pred_check
          %p3741 = pneg %p129
        $region50: #{tpu_custom_call.1} parent=47 // pred_check_branch
          %3743 = sbr.rel (%p3741) target = $region52
        $region51: #{tpu_custom_call.1} parent=47 // pred_region
          %s3744 = smul.u32 16, %s17
          %p3745 = scmp.lt.s32.totalorder %s3744, 31
          %s3746 = scalar_select %p3745, %s3744, 31
          %s3747 = smul.addr %s3746, 8
          %s3748 = scalar_lea.vmem %s4, %s3747
        $region52: #{tpu_custom_call.1} parent=47 // pred_fallthru
          _
      $region48: #{tpu_custom_call.1} parent=5 // pred_fallthru
        _
    $region6: #{tpu_custom_call.1} parent=1 // loop_footer
      %s15 = sadd.s32 1, %s11
    $region7: #{tpu_custom_call.1} parent=1 // loop_footer_branch
      %10 = sbr.rel target = $region3
    $region8: #{tpu_custom_call.1} parent=1 // loop_exit
      _
    %3749 = vsyncpa [#allocation3], 1
    %s3750 = scalar_lea.sflag [#allocation3], 1
    %3751 = vsyncpa %s3750, 1

</llo_original>
